<compile_context>
chip_gen: v6e
topology: v6e:2x2x1
jax: 0.10.0
libtpu: 0.0.40
codegen_flags: <defaults>
</compile_context>

<pallas_src>
import functools

import numpy as np
import jax
import jax.numpy as jnp
from jax.experimental import pallas as pl
from jax.experimental.pallas import tpu as pltpu

BN_EPS = 1e-5


# ------------------------------- fused kernel --------------------------------

def _bottleneck_kernel(*refs, stride, has_shortcut, rows_per_strip):
    """One batch element of the full Bottleneck block, entirely in VMEM."""
    if has_shortcut:
        (x_ref, w1_ref, b1_ref, wdw_ref, b2_ref, w2_ref, b3_ref, wsc_ref,
         o_ref, hpad_ref, d_ref) = refs
    else:
        (x_ref, w1_ref, b1_ref, wdw_ref, b2_ref, w2_ref, b3_ref,
         o_ref, hpad_ref, d_ref) = refs
        wsc_ref = None

    _, H, W, Cin = x_ref.shape
    Cmid = w1_ref.shape[1]
    _, Ho, Wo, Cout = o_ref.shape

    # ---- expand: 1x1 conv (MXU, bf16) -- BN scale already folded into w1 ----
    x2 = x_ref[0].reshape(H * W, Cin)                              # f32 (kept for shortcut)
    h = jnp.dot(x2.astype(jnp.bfloat16), w1_ref[...],
                preferred_element_type=jnp.float32)
    h = jnp.clip(h + b1_ref[...], 0.0, 6.0)                        # folded BN bias + ReLU6

    # ---- stage padded expanded activation: zero ONLY the 1-px halo ring ----
    hpad_ref[0:1, :, :] = jnp.zeros((1, W + 2, Cmid), jnp.float32)
    hpad_ref[H + 1:H + 2, :, :] = jnp.zeros((1, W + 2, Cmid), jnp.float32)
    hpad_ref[1:H + 1, 0:1, :] = jnp.zeros((H, 1, Cmid), jnp.float32)
    hpad_ref[1:H + 1, W + 1:W + 2, :] = jnp.zeros((H, 1, Cmid), jnp.float32)
    hpad_ref[1:H + 1, 1:W + 1, :] = h.reshape(H, W, Cmid)

    # ---- depthwise 3x3 (BN scale folded into wdw), strip-mined over output rows.
    #      Stride is applied on H only (row addressing); W stays dense here and is
    #      compacted once before the project matmul.
    w9 = wdw_ref[...]                                              # (9, Cmid) f32
    b2 = b2_ref[...]                                               # (1, Cmid) f32
    R = rows_per_strip

    for r0 in range(0, Ho, R):                                     # small static loop
        def tap(ki, kj):
            if stride == 1:
                return hpad_ref[r0 + ki:r0 + ki + R, kj:kj + W, :]
            return hpad_ref[pl.ds(r0 * stride + ki, R, stride=stride),
                            kj:kj + W, :]
        acc = tap(0, 0) * w9[0:1, :]                               # first tap = init
        for k in range(1, 9):
            ki, kj = divmod(k, 3)
            acc = acc + tap(ki, kj) * w9[k:k + 1, :]
        d_ref[r0:r0 + R] = jnp.clip(acc + b2, 0.0, 6.0)            # BN bias + ReLU6

    # ---- project: 1x1 conv (MXU, bf16) + fused conv-shortcut + residual ----
    if stride == 1:
        d = d_ref[...]                                             # (Ho, W==Wo, Cmid)
    else:
        d = d_ref[:, pl.ds(0, Wo, stride=stride), :]               # single W compaction
    out = jnp.dot(d.reshape(Ho * Wo, Cmid).astype(jnp.bfloat16), w2_ref[...],
                  preferred_element_type=jnp.float32) + b3_ref[...]
    if has_shortcut:
        # shortcut kept in f32 (precision of the residual path)
        out = out + jnp.dot(x2, wsc_ref[...], preferred_element_type=jnp.float32)
    o_ref[0] = out.reshape(Ho, Wo, Cout).astype(o_ref.dtype)


# --------------------------------- wrappers ------------------------------------

def bottleneck_forward_nhwc(x_nhwc, kp):
    """Fused Bottleneck forward, NHWC in / NHWC out (preferred block boundary)."""
    stride = kp["stride"]
    has_sc = stride == 1
    x = x_nhwc.astype(jnp.float32)
    N, H, W, Cin = x.shape
    assert H % stride == 0 and W % stride == 0
    Cmid = kp["w1"].shape[1]
    Cout = kp["w2"].shape[1]
    Ho, Wo = H // stride, W // stride

    rows = 4                                  # strip size for the depthwise stage
    while Ho % rows:
        rows //= 2

    inputs = [x, kp["w1"], kp["b1"], kp["wdw"], kp["b2"], kp["w2"], kp["b3"]]
    in_specs = [
        pl.BlockSpec((1, H, W, Cin), lambda n: (n, 0, 0, 0)),
        pl.BlockSpec((Cin, Cmid), lambda n: (0, 0)),
        pl.BlockSpec((1, Cmid), lambda n: (0, 0)),
        pl.BlockSpec((9, Cmid), lambda n: (0, 0)),
        pl.BlockSpec((1, Cmid), lambda n: (0, 0)),
        pl.BlockSpec((Cmid, Cout), lambda n: (0, 0)),
        pl.BlockSpec((1, Cout), lambda n: (0, 0)),
    ]
    if has_sc:
        inputs.append(kp["wsc"])
        in_specs.append(pl.BlockSpec((Cin, Cout), lambda n: (0, 0)))

    return pl.pallas_call(
        functools.partial(_bottleneck_kernel, stride=stride,
                          has_shortcut=has_sc, rows_per_strip=rows),
        out_shape=jax.ShapeDtypeStruct((N, Ho, Wo, Cout), jnp.float32),
        grid=(N,),
        in_specs=in_specs,
        out_specs=pl.BlockSpec((1, Ho, Wo, Cout), lambda n: (n, 0, 0, 0)),
        scratch_shapes=[pltpu.VMEM((H + 2, W + 2, Cmid), jnp.float32),  # padded expand
                        pltpu.VMEM((Ho, W, Cmid), jnp.float32)],        # dense-W dw out
        compiler_params=pltpu.CompilerParams(dimension_semantics=("parallel",)),
    )(*inputs)


def bottleneck_forward(x_nchw, kp):
    """NCHW convenience wrapper (matches the PyTorch module's layout).
    In an end-to-end network, keep activations NHWC and call the _nhwc entry
    directly to avoid the two layout-conversion HBM passes."""
    x = jnp.transpose(x_nchw, (0, 2, 3, 1))
    y = bottleneck_forward_nhwc(x, kp)
    return jnp.transpose(y, (0, 3, 1, 2))


# ----------------------------- parameters -------------------------------------

def init_bottleneck_params(key, in_c, out_c, stride, expansion_factor):
    """Module-semantics parameters (BN in inference mode as per-channel scale/bias)."""
    mid = int(in_c * expansion_factor)
    keys = iter(jax.random.split(key, 20))
    nk = lambda: next(keys)

    def bn(c):
        gamma = 1.0 + 0.1 * jax.random.normal(nk(), (c,), jnp.float32)
        beta = 0.1 * jax.random.normal(nk(), (c,), jnp.float32)
        mean = 0.1 * jax.random.normal(nk(), (c,), jnp.float32)
        var = 1.0 + 0.1 * jnp.abs(jax.random.normal(nk(), (c,), jnp.float32))
        return gamma, beta, mean, var

    def fold(conv_bias, g, b, m, v):
        s = g / jnp.sqrt(v + BN_EPS)
        return s, (conv_bias - m) * s + b

    # full_conv (1x1 expand) + bn1
    w1 = jax.random.normal(nk(), (in_c, mid), jnp.float32) / np.sqrt(in_c)
    b1c = 0.01 * jax.random.normal(nk(), (mid,), jnp.float32)
    s1, b1 = fold(b1c, *bn(mid))
    # depth_conv (3x3 depthwise) + bn2
    wdw = jax.random.normal(nk(), (9, mid), jnp.float32) / 3.0
    b2c = 0.01 * jax.random.normal(nk(), (mid,), jnp.float32)
    s2, b2 = fold(b2c, *bn(mid))
    # linear_conv (1x1 project, NO BatchNorm per the reference module)
    w2 = jax.random.normal(nk(), (mid, out_c), jnp.float32) / np.sqrt(mid)
    b3 = 0.01 * jax.random.normal(nk(), (out_c,), jnp.float32)

    p = dict(stride=stride, w1=w1, s1=s1, b1=b1,
             wdw=wdw, s2=s2, b2=b2, w2=w2, b3=b3)
    if stride == 1:   # short_conv exists whenever stride == 1 (matches reference)
        wsc = jax.random.normal(nk(), (in_c, out_c), jnp.float32) / np.sqrt(in_c)
        bsc = 0.01 * jax.random.normal(nk(), (out_c,), jnp.float32)
        p.update(wsc=wsc, bsc=bsc)
    return p


def prepare_kernel_params(p):
    """One-time parameter prep: fold BN scales into weights, pre-sum biases, cast."""
    row = lambda v: v.reshape(1, -1).astype(jnp.float32)
    kp = dict(
        stride=p["stride"],
        w1=(p["w1"] * p["s1"][None, :]).astype(jnp.bfloat16),   # s1 folded into expand
        b1=row(p["b1"]),
        wdw=(p["wdw"] * p["s2"][None, :]).astype(jnp.float32),  # s2 folded into depthwise
        b2=row(p["b2"]),
        w2=p["w2"].astype(jnp.bfloat16),
    )
    if p["stride"] == 1:
        kp["b3"] = row(p["b3"] + p["bsc"])                       # pre-summed biases
        kp["wsc"] = p["wsc"].astype(jnp.float32)
    else:
        kp["b3"] = row(p["b3"])
    return kp


# ------------------------ pure-JAX reference (f32) -----------------------------

def bottleneck_reference(x_nchw, p):
    x = jnp.transpose(x_nchw, (0, 2, 3, 1)).astype(jnp.float32)   # NHWC
    s = p["stride"]
    h = jnp.einsum("nhwc,cm->nhwm", x, p["w1"]) * p["s1"] + p["b1"]
    h = jnp.clip(h, 0.0, 6.0)
    wdw = p["wdw"].reshape(3, 3, 1, -1)                            # HWIO, grouped
    d = jax.lax.conv_general_dilated(
        h, wdw, window_strides=(s, s), padding=((1, 1), (1, 1)),
        dimension_numbers=("NHWC", "HWIO", "NHWC"),
        feature_group_count=h.shape[-1])
    d = jnp.clip(d * p["s2"] + p["b2"], 0.0, 6.0)
    out = jnp.einsum("nhwc,co->nhwo", d, p["w2"]) + p["b3"]
    if s == 1:
        out = out + jnp.einsum("nhwc,co->nhwo", x, p["wsc"]) + p["bsc"]
    return jnp.transpose(out, (0, 3, 1, 2))


# ----------------------------------- main --------------------------------------

if __name__ == "__main__":
    x = jax.random.normal(jax.random.PRNGKey(0), (2, 32, 16, 16), jnp.float32)  # NCHW

    # stride-1 block (conv shortcut + residual) and stride-2 block (no shortcut)
    p_s1 = init_bottleneck_params(jax.random.PRNGKey(1), in_c=32, out_c=64,
                                  stride=1, expansion_factor=6)
    p_s2 = init_bottleneck_params(jax.random.PRNGKey(2), in_c=32, out_c=64,
                                  stride=2, expansion_factor=6)
    kp_s1 = prepare_kernel_params(p_s1)   # one-time BN fold / cast
    kp_s2 = prepare_kernel_params(p_s2)

    fwd_s1 = jax.jit(lambda inp: bottleneck_forward(inp, kp_s1))
    fwd_s2 = jax.jit(lambda inp: bottleneck_forward(inp, kp_s2))

    y1 = fwd_s1(x)
    y2 = fwd_s2(x)
    jax.block_until_ready((y1, y2))

    assert y1.shape == (2, 64, 16, 16), y1.shape
    assert y2.shape == (2, 64, 8, 8), y2.shape
    assert bool(jnp.all(jnp.isfinite(y1))) and bool(jnp.all(jnp.isfinite(y2)))

    # correctness vs. pure-JAX f32 reference (kernel uses bf16 MXU operands)
    r1 = bottleneck_reference(x, p_s1)
    r2 = bottleneck_reference(x, p_s2)
    np.testing.assert_allclose(np.asarray(y1), np.asarray(r1), rtol=0.1, atol=0.35)
    np.testing.assert_allclose(np.asarray(y2), np.asarray(r2), rtol=0.1, atol=0.35)

    print("KERNEL_OK")
</pallas_src>

<mosaic_0001>
module attributes {stable_mosaic.version = 11 : i64} {
  func.func @_bottleneck_kernel(%arg0: i32, %arg1: memref<1x16x16x32xf32, #tpu.memory_space<vmem>>, %arg2: memref<32x192xbf16, #tpu.memory_space<vmem>>, %arg3: memref<1x192xf32, #tpu.memory_space<vmem>>, %arg4: memref<9x192xf32, #tpu.memory_space<vmem>>, %arg5: memref<1x192xf32, #tpu.memory_space<vmem>>, %arg6: memref<192x64xbf16, #tpu.memory_space<vmem>>, %arg7: memref<1x64xf32, #tpu.memory_space<vmem>>, %arg8: memref<32x64xf32, #tpu.memory_space<vmem>>, %arg9: memref<1x16x16x64xf32, #tpu.memory_space<vmem>>, %arg10: memref<18x18x192xf32, #tpu.memory_space<vmem>>, %arg11: memref<16x16x192xf32, #tpu.memory_space<vmem>>) attributes {dimension_semantics = [#tpu.dimension_semantics<parallel>], iteration_bounds = array<i64: 2>, scalar_prefetch = 0 : i64, scratch_operands = 2 : i64, tpu.core_type = #tpu.core_type<tc>, window_params = [{transform_indices = @transform_0, window_bounds = array<i64: 1, 16, 16, 32>}, {pipeline_mode = #tpu.pipeline_mode<synchronous>, transform_indices = @transform_1, window_bounds = array<i64: 32, 192>}, {pipeline_mode = #tpu.pipeline_mode<synchronous>, transform_indices = @transform_2, window_bounds = array<i64: 1, 192>}, {pipeline_mode = #tpu.pipeline_mode<synchronous>, transform_indices = @transform_3, window_bounds = array<i64: 9, 192>}, {pipeline_mode = #tpu.pipeline_mode<synchronous>, transform_indices = @transform_4, window_bounds = array<i64: 1, 192>}, {pipeline_mode = #tpu.pipeline_mode<synchronous>, transform_indices = @transform_5, window_bounds = array<i64: 192, 64>}, {pipeline_mode = #tpu.pipeline_mode<synchronous>, transform_indices = @transform_6, window_bounds = array<i64: 1, 64>}, {pipeline_mode = #tpu.pipeline_mode<synchronous>, transform_indices = @transform_7, window_bounds = array<i64: 32, 64>}, {transform_indices = @transform_8, window_bounds = array<i64: 1, 16, 16, 64>}]} {
    %c0 = arith.constant 0 : index
    %c0_0 = arith.constant 0 : index
    %c0_1 = arith.constant 0 : index
    %c0_2 = arith.constant 0 : index
    %0 = vector.load %arg1[%c0, %c0_0, %c0_1, %c0_2] : memref<1x16x16x32xf32, #tpu.memory_space<vmem>>, vector<1x16x16x32xf32>
    %1 = vector.shape_cast %0 : vector<1x16x16x32xf32> to vector<16x16x32xf32>
    %2 = vector.shape_cast %1 : vector<16x16x32xf32> to vector<256x32xf32>
    %3 = arith.truncf %2 : vector<256x32xf32> to vector<256x32xbf16>
    %c0_3 = arith.constant 0 : index
    %c0_4 = arith.constant 0 : index
    %4 = vector.load %arg2[%c0_3, %c0_4] : memref<32x192xbf16, #tpu.memory_space<vmem>>, vector<32x192xbf16>
    %cst = arith.constant dense<0.000000e+00> : vector<256x192xf32>
    %5 = tpu.matmul %3, %4, %cst {dimension_numbers = #tpu.dot_dimension_numbers<[1], [0], [0], [1], [0, 0, 1, 1], [], []>} : vector<256x32xbf16>, vector<32x192xbf16>, vector<256x192xf32> -> vector<256x192xf32>
    %c0_5 = arith.constant 0 : index
    %c0_6 = arith.constant 0 : index
    %6 = vector.load %arg3[%c0_5, %c0_6] : memref<1x192xf32, #tpu.memory_space<vmem>>, vector<1x192xf32>
    %7 = vector.broadcast %6 : vector<1x192xf32> to vector<256x192xf32>
    %8 = arith.addf %5, %7 : vector<256x192xf32>
    %cst_7 = arith.constant 0.000000e+00 : f32
    %cst_8 = arith.constant 6.000000e+00 : f32
    %9 = vector.broadcast %cst_7 : f32 to vector<256x192xf32>
    %10 = arith.maximumf %9, %8 : vector<256x192xf32>
    %11 = vector.broadcast %cst_8 : f32 to vector<256x192xf32>
    %12 = arith.minimumf %11, %10 : vector<256x192xf32>
    %cst_9 = arith.constant 0.000000e+00 : f32
    %13 = vector.broadcast %cst_9 : f32 to vector<1x18x192xf32>
    %c0_10 = arith.constant 0 : index
    %c0_11 = arith.constant 0 : index
    %c0_12 = arith.constant 0 : index
    %14 = vector.load %arg10[%c0_10, %c0_11, %c0_12] : memref<18x18x192xf32, #tpu.memory_space<vmem>>, vector<1x18x192xf32>
    tpu.vector_store %arg10[%c0_10, %c0_11, %c0_12], %13 {strides = array<i32>} : memref<18x18x192xf32, #tpu.memory_space<vmem>>, vector<1x18x192xf32>,
    %cst_13 = arith.constant 0.000000e+00 : f32
    %15 = vector.broadcast %cst_13 : f32 to vector<1x18x192xf32>
    %c17 = arith.constant 17 : index
    %c0_14 = arith.constant 0 : index
    %c0_15 = arith.constant 0 : index
    %16 = vector.load %arg10[%c17, %c0_14, %c0_15] : memref<18x18x192xf32, #tpu.memory_space<vmem>>, vector<1x18x192xf32>
    tpu.vector_store %arg10[%c17, %c0_14, %c0_15], %15 {strides = array<i32>} : memref<18x18x192xf32, #tpu.memory_space<vmem>>, vector<1x18x192xf32>,
    %cst_16 = arith.constant 0.000000e+00 : f32
    %17 = vector.broadcast %cst_16 : f32 to vector<16x1x192xf32>
    %c1 = arith.constant 1 : index
    %c0_17 = arith.constant 0 : index
    %c0_18 = arith.constant 0 : index
    %18 = vector.load %arg10[%c1, %c0_17, %c0_18] : memref<18x18x192xf32, #tpu.memory_space<vmem>>, vector<16x1x192xf32>
    tpu.vector_store %arg10[%c1, %c0_17, %c0_18], %17 {strides = array<i32>} : memref<18x18x192xf32, #tpu.memory_space<vmem>>, vector<16x1x192xf32>,
    %cst_19 = arith.constant 0.000000e+00 : f32
    %19 = vector.broadcast %cst_19 : f32 to vector<16x1x192xf32>
    %c1_20 = arith.constant 1 : index
    %c17_21 = arith.constant 17 : index
    %c0_22 = arith.constant 0 : index
    %20 = vector.load %arg10[%c1_20, %c17_21, %c0_22] : memref<18x18x192xf32, #tpu.memory_space<vmem>>, vector<16x1x192xf32>
    tpu.vector_store %arg10[%c1_20, %c17_21, %c0_22], %19 {strides = array<i32>} : memref<18x18x192xf32, #tpu.memory_space<vmem>>, vector<16x1x192xf32>,
    %21 = vector.shape_cast %12 : vector<256x192xf32> to vector<16x16x192xf32>
    %c1_23 = arith.constant 1 : index
    %c1_24 = arith.constant 1 : index
    %c0_25 = arith.constant 0 : index
    %22 = vector.load %arg10[%c1_23, %c1_24, %c0_25] : memref<18x18x192xf32, #tpu.memory_space<vmem>>, vector<16x16x192xf32>
    tpu.vector_store %arg10[%c1_23, %c1_24, %c0_25], %21 {strides = array<i32>} : memref<18x18x192xf32, #tpu.memory_space<vmem>>, vector<16x16x192xf32>,
    %c0_26 = arith.constant 0 : index
    %c0_27 = arith.constant 0 : index
    %23 = vector.load %arg4[%c0_26, %c0_27] : memref<9x192xf32, #tpu.memory_space<vmem>>, vector<9x192xf32>
    %c0_28 = arith.constant 0 : index
    %c0_29 = arith.constant 0 : index
    %24 = vector.load %arg5[%c0_28, %c0_29] : memref<1x192xf32, #tpu.memory_space<vmem>>, vector<1x192xf32>
    %c0_30 = arith.constant 0 : index
    %c0_31 = arith.constant 0 : index
    %c0_32 = arith.constant 0 : index
    %25 = vector.load %arg10[%c0_30, %c0_31, %c0_32] : memref<18x18x192xf32, #tpu.memory_space<vmem>>, vector<4x16x192xf32>
    %26 = vector.extract_strided_slice %23 {offsets = [0, 0], sizes = [1, 192], strides = [1, 1]} : vector<9x192xf32> to vector<1x192xf32>
    %27 = vector.shape_cast %26 : vector<1x192xf32> to vector<1x1x192xf32>
    %28 = vector.broadcast %27 : vector<1x1x192xf32> to vector<4x16x192xf32>
    %29 = arith.mulf %25, %28 : vector<4x16x192xf32>
    %c0_33 = arith.constant 0 : index
    %c1_34 = arith.constant 1 : index
    %c0_35 = arith.constant 0 : index
    %30 = vector.load %arg10[%c0_33, %c1_34, %c0_35] : memref<18x18x192xf32, #tpu.memory_space<vmem>>, vector<4x16x192xf32>
    %31 = vector.extract_strided_slice %23 {offsets = [1, 0], sizes = [1, 192], strides = [1, 1]} : vector<9x192xf32> to vector<1x192xf32>
    %32 = vector.shape_cast %31 : vector<1x192xf32> to vector<1x1x192xf32>
    %33 = vector.broadcast %32 : vector<1x1x192xf32> to vector<4x16x192xf32>
    %34 = arith.mulf %30, %33 : vector<4x16x192xf32>
    %35 = arith.addf %29, %34 : vector<4x16x192xf32>
    %c0_36 = arith.constant 0 : index
    %c2 = arith.constant 2 : index
    %c0_37 = arith.constant 0 : index
    %36 = vector.load %arg10[%c0_36, %c2, %c0_37] : memref<18x18x192xf32, #tpu.memory_space<vmem>>, vector<4x16x192xf32>
    %37 = vector.extract_strided_slice %23 {offsets = [2, 0], sizes = [1, 192], strides = [1, 1]} : vector<9x192xf32> to vector<1x192xf32>
    %38 = vector.shape_cast %37 : vector<1x192xf32> to vector<1x1x192xf32>
    %39 = vector.broadcast %38 : vector<1x1x192xf32> to vector<4x16x192xf32>
    %40 = arith.mulf %36, %39 : vector<4x16x192xf32>
    %41 = arith.addf %35, %40 : vector<4x16x192xf32>
    %c1_38 = arith.constant 1 : index
    %c0_39 = arith.constant 0 : index
    %c0_40 = arith.constant 0 : index
    %42 = vector.load %arg10[%c1_38, %c0_39, %c0_40] : memref<18x18x192xf32, #tpu.memory_space<vmem>>, vector<4x16x192xf32>
    %43 = vector.extract_strided_slice %23 {offsets = [3, 0], sizes = [1, 192], strides = [1, 1]} : vector<9x192xf32> to vector<1x192xf32>
    %44 = vector.shape_cast %43 : vector<1x192xf32> to vector<1x1x192xf32>
    %45 = vector.broadcast %44 : vector<1x1x192xf32> to vector<4x16x192xf32>
    %46 = arith.mulf %42, %45 : vector<4x16x192xf32>
    %47 = arith.addf %41, %46 : vector<4x16x192xf32>
    %c1_41 = arith.constant 1 : index
    %c1_42 = arith.constant 1 : index
    %c0_43 = arith.constant 0 : index
    %48 = vector.load %arg10[%c1_41, %c1_42, %c0_43] : memref<18x18x192xf32, #tpu.memory_space<vmem>>, vector<4x16x192xf32>
    %49 = vector.extract_strided_slice %23 {offsets = [4, 0], sizes = [1, 192], strides = [1, 1]} : vector<9x192xf32> to vector<1x192xf32>
    %50 = vector.shape_cast %49 : vector<1x192xf32> to vector<1x1x192xf32>
    %51 = vector.broadcast %50 : vector<1x1x192xf32> to vector<4x16x192xf32>
    %52 = arith.mulf %48, %51 : vector<4x16x192xf32>
    %53 = arith.addf %47, %52 : vector<4x16x192xf32>
    %c1_44 = arith.constant 1 : index
    %c2_45 = arith.constant 2 : index
    %c0_46 = arith.constant 0 : index
    %54 = vector.load %arg10[%c1_44, %c2_45, %c0_46] : memref<18x18x192xf32, #tpu.memory_space<vmem>>, vector<4x16x192xf32>
    %55 = vector.extract_strided_slice %23 {offsets = [5, 0], sizes = [1, 192], strides = [1, 1]} : vector<9x192xf32> to vector<1x192xf32>
    %56 = vector.shape_cast %55 : vector<1x192xf32> to vector<1x1x192xf32>
    %57 = vector.broadcast %56 : vector<1x1x192xf32> to vector<4x16x192xf32>
    %58 = arith.mulf %54, %57 : vector<4x16x192xf32>
    %59 = arith.addf %53, %58 : vector<4x16x192xf32>
    %c2_47 = arith.constant 2 : index
    %c0_48 = arith.constant 0 : index
    %c0_49 = arith.constant 0 : index
    %60 = vector.load %arg10[%c2_47, %c0_48, %c0_49] : memref<18x18x192xf32, #tpu.memory_space<vmem>>, vector<4x16x192xf32>
    %61 = vector.extract_strided_slice %23 {offsets = [6, 0], sizes = [1, 192], strides = [1, 1]} : vector<9x192xf32> to vector<1x192xf32>
    %62 = vector.shape_cast %61 : vector<1x192xf32> to vector<1x1x192xf32>
    %63 = vector.broadcast %62 : vector<1x1x192xf32> to vector<4x16x192xf32>
    %64 = arith.mulf %60, %63 : vector<4x16x192xf32>
    %65 = arith.addf %59, %64 : vector<4x16x192xf32>
    %c2_50 = arith.constant 2 : index
    %c1_51 = arith.constant 1 : index
    %c0_52 = arith.constant 0 : index
    %66 = vector.load %arg10[%c2_50, %c1_51, %c0_52] : memref<18x18x192xf32, #tpu.memory_space<vmem>>, vector<4x16x192xf32>
    %67 = vector.extract_strided_slice %23 {offsets = [7, 0], sizes = [1, 192], strides = [1, 1]} : vector<9x192xf32> to vector<1x192xf32>
    %68 = vector.shape_cast %67 : vector<1x192xf32> to vector<1x1x192xf32>
    %69 = vector.broadcast %68 : vector<1x1x192xf32> to vector<4x16x192xf32>
    %70 = arith.mulf %66, %69 : vector<4x16x192xf32>
    %71 = arith.addf %65, %70 : vector<4x16x192xf32>
    %c2_53 = arith.constant 2 : index
    %c2_54 = arith.constant 2 : index
    %c0_55 = arith.constant 0 : index
    %72 = vector.load %arg10[%c2_53, %c2_54, %c0_55] : memref<18x18x192xf32, #tpu.memory_space<vmem>>, vector<4x16x192xf32>
    %73 = vector.extract_strided_slice %23 {offsets = [8, 0], sizes = [1, 192], strides = [1, 1]} : vector<9x192xf32> to vector<1x192xf32>
    %74 = vector.shape_cast %73 : vector<1x192xf32> to vector<1x1x192xf32>
    %75 = vector.broadcast %74 : vector<1x1x192xf32> to vector<4x16x192xf32>
    %76 = arith.mulf %72, %75 : vector<4x16x192xf32>
    %77 = arith.addf %71, %76 : vector<4x16x192xf32>
    %78 = vector.shape_cast %24 : vector<1x192xf32> to vector<1x1x192xf32>
    %79 = vector.broadcast %78 : vector<1x1x192xf32> to vector<4x16x192xf32>
    %80 = arith.addf %77, %79 : vector<4x16x192xf32>
    %cst_56 = arith.constant 0.000000e+00 : f32
    %cst_57 = arith.constant 6.000000e+00 : f32
    %81 = vector.broadcast %cst_56 : f32 to vector<4x16x192xf32>
    %82 = arith.maximumf %81, %80 : vector<4x16x192xf32>
    %83 = vector.broadcast %cst_57 : f32 to vector<4x16x192xf32>
    %84 = arith.minimumf %83, %82 : vector<4x16x192xf32>
    %c0_58 = arith.constant 0 : index
    %c0_59 = arith.constant 0 : index
    %c0_60 = arith.constant 0 : index
    %85 = vector.load %arg11[%c0_58, %c0_59, %c0_60] : memref<16x16x192xf32, #tpu.memory_space<vmem>>, vector<4x16x192xf32>
    tpu.vector_store %arg11[%c0_58, %c0_59, %c0_60], %84 {strides = array<i32>} : memref<16x16x192xf32, #tpu.memory_space<vmem>>, vector<4x16x192xf32>,
    %c4 = arith.constant 4 : index
    %c0_61 = arith.constant 0 : index
    %c0_62 = arith.constant 0 : index
    %86 = vector.load %arg10[%c4, %c0_61, %c0_62] : memref<18x18x192xf32, #tpu.memory_space<vmem>>, vector<4x16x192xf32>
    %87 = vector.extract_strided_slice %23 {offsets = [0, 0], sizes = [1, 192], strides = [1, 1]} : vector<9x192xf32> to vector<1x192xf32>
    %88 = vector.shape_cast %87 : vector<1x192xf32> to vector<1x1x192xf32>
    %89 = vector.broadcast %88 : vector<1x1x192xf32> to vector<4x16x192xf32>
    %90 = arith.mulf %86, %89 : vector<4x16x192xf32>
    %c4_63 = arith.constant 4 : index
    %c1_64 = arith.constant 1 : index
    %c0_65 = arith.constant 0 : index
    %91 = vector.load %arg10[%c4_63, %c1_64, %c0_65] : memref<18x18x192xf32, #tpu.memory_space<vmem>>, vector<4x16x192xf32>
    %92 = vector.extract_strided_slice %23 {offsets = [1, 0], sizes = [1, 192], strides = [1, 1]} : vector<9x192xf32> to vector<1x192xf32>
    %93 = vector.shape_cast %92 : vector<1x192xf32> to vector<1x1x192xf32>
    %94 = vector.broadcast %93 : vector<1x1x192xf32> to vector<4x16x192xf32>
    %95 = arith.mulf %91, %94 : vector<4x16x192xf32>
    %96 = arith.addf %90, %95 : vector<4x16x192xf32>
    %c4_66 = arith.constant 4 : index
    %c2_67 = arith.constant 2 : index
    %c0_68 = arith.constant 0 : index
    %97 = vector.load %arg10[%c4_66, %c2_67, %c0_68] : memref<18x18x192xf32, #tpu.memory_space<vmem>>, vector<4x16x192xf32>
    %98 = vector.extract_strided_slice %23 {offsets = [2, 0], sizes = [1, 192], strides = [1, 1]} : vector<9x192xf32> to vector<1x192xf32>
    %99 = vector.shape_cast %98 : vector<1x192xf32> to vector<1x1x192xf32>
    %100 = vector.broadcast %99 : vector<1x1x192xf32> to vector<4x16x192xf32>
    %101 = arith.mulf %97, %100 : vector<4x16x192xf32>
    %102 = arith.addf %96, %101 : vector<4x16x192xf32>
    %c5 = arith.constant 5 : index
    %c0_69 = arith.constant 0 : index
    %c0_70 = arith.constant 0 : index
    %103 = vector.load %arg10[%c5, %c0_69, %c0_70] : memref<18x18x192xf32, #tpu.memory_space<vmem>>, vector<4x16x192xf32>
    %104 = vector.extract_strided_slice %23 {offsets = [3, 0], sizes = [1, 192], strides = [1, 1]} : vector<9x192xf32> to vector<1x192xf32>
    %105 = vector.shape_cast %104 : vector<1x192xf32> to vector<1x1x192xf32>
    %106 = vector.broadcast %105 : vector<1x1x192xf32> to vector<4x16x192xf32>
    %107 = arith.mulf %103, %106 : vector<4x16x192xf32>
    %108 = arith.addf %102, %107 : vector<4x16x192xf32>
    %c5_71 = arith.constant 5 : index
    %c1_72 = arith.constant 1 : index
    %c0_73 = arith.constant 0 : index
    %109 = vector.load %arg10[%c5_71, %c1_72, %c0_73] : memref<18x18x192xf32, #tpu.memory_space<vmem>>, vector<4x16x192xf32>
    %110 = vector.extract_strided_slice %23 {offsets = [4, 0], sizes = [1, 192], strides = [1, 1]} : vector<9x192xf32> to vector<1x192xf32>
    %111 = vector.shape_cast %110 : vector<1x192xf32> to vector<1x1x192xf32>
    %112 = vector.broadcast %111 : vector<1x1x192xf32> to vector<4x16x192xf32>
    %113 = arith.mulf %109, %112 : vector<4x16x192xf32>
    %114 = arith.addf %108, %113 : vector<4x16x192xf32>
    %c5_74 = arith.constant 5 : index
    %c2_75 = arith.constant 2 : index
    %c0_76 = arith.constant 0 : index
    %115 = vector.load %arg10[%c5_74, %c2_75, %c0_76] : memref<18x18x192xf32, #tpu.memory_space<vmem>>, vector<4x16x192xf32>
    %116 = vector.extract_strided_slice %23 {offsets = [5, 0], sizes = [1, 192], strides = [1, 1]} : vector<9x192xf32> to vector<1x192xf32>
    %117 = vector.shape_cast %116 : vector<1x192xf32> to vector<1x1x192xf32>
    %118 = vector.broadcast %117 : vector<1x1x192xf32> to vector<4x16x192xf32>
    %119 = arith.mulf %115, %118 : vector<4x16x192xf32>
    %120 = arith.addf %114, %119 : vector<4x16x192xf32>
    %c6 = arith.constant 6 : index
    %c0_77 = arith.constant 0 : index
    %c0_78 = arith.constant 0 : index
    %121 = vector.load %arg10[%c6, %c0_77, %c0_78] : memref<18x18x192xf32, #tpu.memory_space<vmem>>, vector<4x16x192xf32>
    %122 = vector.extract_strided_slice %23 {offsets = [6, 0], sizes = [1, 192], strides = [1, 1]} : vector<9x192xf32> to vector<1x192xf32>
    %123 = vector.shape_cast %122 : vector<1x192xf32> to vector<1x1x192xf32>
    %124 = vector.broadcast %123 : vector<1x1x192xf32> to vector<4x16x192xf32>
    %125 = arith.mulf %121, %124 : vector<4x16x192xf32>
    %126 = arith.addf %120, %125 : vector<4x16x192xf32>
    %c6_79 = arith.constant 6 : index
    %c1_80 = arith.constant 1 : index
    %c0_81 = arith.constant 0 : index
    %127 = vector.load %arg10[%c6_79, %c1_80, %c0_81] : memref<18x18x192xf32, #tpu.memory_space<vmem>>, vector<4x16x192xf32>
    %128 = vector.extract_strided_slice %23 {offsets = [7, 0], sizes = [1, 192], strides = [1, 1]} : vector<9x192xf32> to vector<1x192xf32>
    %129 = vector.shape_cast %128 : vector<1x192xf32> to vector<1x1x192xf32>
    %130 = vector.broadcast %129 : vector<1x1x192xf32> to vector<4x16x192xf32>
    %131 = arith.mulf %127, %130 : vector<4x16x192xf32>
    %132 = arith.addf %126, %131 : vector<4x16x192xf32>
    %c6_82 = arith.constant 6 : index
    %c2_83 = arith.constant 2 : index
    %c0_84 = arith.constant 0 : index
    %133 = vector.load %arg10[%c6_82, %c2_83, %c0_84] : memref<18x18x192xf32, #tpu.memory_space<vmem>>, vector<4x16x192xf32>
    %134 = vector.extract_strided_slice %23 {offsets = [8, 0], sizes = [1, 192], strides = [1, 1]} : vector<9x192xf32> to vector<1x192xf32>
    %135 = vector.shape_cast %134 : vector<1x192xf32> to vector<1x1x192xf32>
    %136 = vector.broadcast %135 : vector<1x1x192xf32> to vector<4x16x192xf32>
    %137 = arith.mulf %133, %136 : vector<4x16x192xf32>
    %138 = arith.addf %132, %137 : vector<4x16x192xf32>
    %139 = vector.shape_cast %24 : vector<1x192xf32> to vector<1x1x192xf32>
    %140 = vector.broadcast %139 : vector<1x1x192xf32> to vector<4x16x192xf32>
    %141 = arith.addf %138, %140 : vector<4x16x192xf32>
    %cst_85 = arith.constant 0.000000e+00 : f32
    %cst_86 = arith.constant 6.000000e+00 : f32
    %142 = vector.broadcast %cst_85 : f32 to vector<4x16x192xf32>
    %143 = arith.maximumf %142, %141 : vector<4x16x192xf32>
    %144 = vector.broadcast %cst_86 : f32 to vector<4x16x192xf32>
    %145 = arith.minimumf %144, %143 : vector<4x16x192xf32>
    %c4_87 = arith.constant 4 : index
    %c0_88 = arith.constant 0 : index
    %c0_89 = arith.constant 0 : index
    %146 = vector.load %arg11[%c4_87, %c0_88, %c0_89] : memref<16x16x192xf32, #tpu.memory_space<vmem>>, vector<4x16x192xf32>
    tpu.vector_store %arg11[%c4_87, %c0_88, %c0_89], %145 {strides = array<i32>} : memref<16x16x192xf32, #tpu.memory_space<vmem>>, vector<4x16x192xf32>,
    %c8 = arith.constant 8 : index
    %c0_90 = arith.constant 0 : index
    %c0_91 = arith.constant 0 : index
    %147 = vector.load %arg10[%c8, %c0_90, %c0_91] : memref<18x18x192xf32, #tpu.memory_space<vmem>>, vector<4x16x192xf32>
    %148 = vector.extract_strided_slice %23 {offsets = [0, 0], sizes = [1, 192], strides = [1, 1]} : vector<9x192xf32> to vector<1x192xf32>
    %149 = vector.shape_cast %148 : vector<1x192xf32> to vector<1x1x192xf32>
    %150 = vector.broadcast %149 : vector<1x1x192xf32> to vector<4x16x192xf32>
    %151 = arith.mulf %147, %150 : vector<4x16x192xf32>
    %c8_92 = arith.constant 8 : index
    %c1_93 = arith.constant 1 : index
    %c0_94 = arith.constant 0 : index
    %152 = vector.load %arg10[%c8_92, %c1_93, %c0_94] : memref<18x18x192xf32, #tpu.memory_space<vmem>>, vector<4x16x192xf32>
    %153 = vector.extract_strided_slice %23 {offsets = [1, 0], sizes = [1, 192], strides = [1, 1]} : vector<9x192xf32> to vector<1x192xf32>
    %154 = vector.shape_cast %153 : vector<1x192xf32> to vector<1x1x192xf32>
    %155 = vector.broadcast %154 : vector<1x1x192xf32> to vector<4x16x192xf32>
    %156 = arith.mulf %152, %155 : vector<4x16x192xf32>
    %157 = arith.addf %151, %156 : vector<4x16x192xf32>
    %c8_95 = arith.constant 8 : index
    %c2_96 = arith.constant 2 : index
    %c0_97 = arith.constant 0 : index
    %158 = vector.load %arg10[%c8_95, %c2_96, %c0_97] : memref<18x18x192xf32, #tpu.memory_space<vmem>>, vector<4x16x192xf32>
    %159 = vector.extract_strided_slice %23 {offsets = [2, 0], sizes = [1, 192], strides = [1, 1]} : vector<9x192xf32> to vector<1x192xf32>
    %160 = vector.shape_cast %159 : vector<1x192xf32> to vector<1x1x192xf32>
    %161 = vector.broadcast %160 : vector<1x1x192xf32> to vector<4x16x192xf32>
    %162 = arith.mulf %158, %161 : vector<4x16x192xf32>
    %163 = arith.addf %157, %162 : vector<4x16x192xf32>
    %c9 = arith.constant 9 : index
    %c0_98 = arith.constant 0 : index
    %c0_99 = arith.constant 0 : index
    %164 = vector.load %arg10[%c9, %c0_98, %c0_99] : memref<18x18x192xf32, #tpu.memory_space<vmem>>, vector<4x16x192xf32>
    %165 = vector.extract_strided_slice %23 {offsets = [3, 0], sizes = [1, 192], strides = [1, 1]} : vector<9x192xf32> to vector<1x192xf32>
    %166 = vector.shape_cast %165 : vector<1x192xf32> to vector<1x1x192xf32>
    %167 = vector.broadcast %166 : vector<1x1x192xf32> to vector<4x16x192xf32>
    %168 = arith.mulf %164, %167 : vector<4x16x192xf32>
    %169 = arith.addf %163, %168 : vector<4x16x192xf32>
    %c9_100 = arith.constant 9 : index
    %c1_101 = arith.constant 1 : index
    %c0_102 = arith.constant 0 : index
    %170 = vector.load %arg10[%c9_100, %c1_101, %c0_102] : memref<18x18x192xf32, #tpu.memory_space<vmem>>, vector<4x16x192xf32>
    %171 = vector.extract_strided_slice %23 {offsets = [4, 0], sizes = [1, 192], strides = [1, 1]} : vector<9x192xf32> to vector<1x192xf32>
    %172 = vector.shape_cast %171 : vector<1x192xf32> to vector<1x1x192xf32>
    %173 = vector.broadcast %172 : vector<1x1x192xf32> to vector<4x16x192xf32>
    %174 = arith.mulf %170, %173 : vector<4x16x192xf32>
    %175 = arith.addf %169, %174 : vector<4x16x192xf32>
    %c9_103 = arith.constant 9 : index
    %c2_104 = arith.constant 2 : index
    %c0_105 = arith.constant 0 : index
    %176 = vector.load %arg10[%c9_103, %c2_104, %c0_105] : memref<18x18x192xf32, #tpu.memory_space<vmem>>, vector<4x16x192xf32>
    %177 = vector.extract_strided_slice %23 {offsets = [5, 0], sizes = [1, 192], strides = [1, 1]} : vector<9x192xf32> to vector<1x192xf32>
    %178 = vector.shape_cast %177 : vector<1x192xf32> to vector<1x1x192xf32>
    %179 = vector.broadcast %178 : vector<1x1x192xf32> to vector<4x16x192xf32>
    %180 = arith.mulf %176, %179 : vector<4x16x192xf32>
    %181 = arith.addf %175, %180 : vector<4x16x192xf32>
    %c10 = arith.constant 10 : index
    %c0_106 = arith.constant 0 : index
    %c0_107 = arith.constant 0 : index
    %182 = vector.load %arg10[%c10, %c0_106, %c0_107] : memref<18x18x192xf32, #tpu.memory_space<vmem>>, vector<4x16x192xf32>
    %183 = vector.extract_strided_slice %23 {offsets = [6, 0], sizes = [1, 192], strides = [1, 1]} : vector<9x192xf32> to vector<1x192xf32>
    %184 = vector.shape_cast %183 : vector<1x192xf32> to vector<1x1x192xf32>
    %185 = vector.broadcast %184 : vector<1x1x192xf32> to vector<4x16x192xf32>
    %186 = arith.mulf %182, %185 : vector<4x16x192xf32>
    %187 = arith.addf %181, %186 : vector<4x16x192xf32>
    %c10_108 = arith.constant 10 : index
    %c1_109 = arith.constant 1 : index
    %c0_110 = arith.constant 0 : index
    %188 = vector.load %arg10[%c10_108, %c1_109, %c0_110] : memref<18x18x192xf32, #tpu.memory_space<vmem>>, vector<4x16x192xf32>
    %189 = vector.extract_strided_slice %23 {offsets = [7, 0], sizes = [1, 192], strides = [1, 1]} : vector<9x192xf32> to vector<1x192xf32>
    %190 = vector.shape_cast %189 : vector<1x192xf32> to vector<1x1x192xf32>
    %191 = vector.broadcast %190 : vector<1x1x192xf32> to vector<4x16x192xf32>
    %192 = arith.mulf %188, %191 : vector<4x16x192xf32>
    %193 = arith.addf %187, %192 : vector<4x16x192xf32>
    %c10_111 = arith.constant 10 : index
    %c2_112 = arith.constant 2 : index
    %c0_113 = arith.constant 0 : index
    %194 = vector.load %arg10[%c10_111, %c2_112, %c0_113] : memref<18x18x192xf32, #tpu.memory_space<vmem>>, vector<4x16x192xf32>
    %195 = vector.extract_strided_slice %23 {offsets = [8, 0], sizes = [1, 192], strides = [1, 1]} : vector<9x192xf32> to vector<1x192xf32>
    %196 = vector.shape_cast %195 : vector<1x192xf32> to vector<1x1x192xf32>
    %197 = vector.broadcast %196 : vector<1x1x192xf32> to vector<4x16x192xf32>
    %198 = arith.mulf %194, %197 : vector<4x16x192xf32>
    %199 = arith.addf %193, %198 : vector<4x16x192xf32>
    %200 = vector.shape_cast %24 : vector<1x192xf32> to vector<1x1x192xf32>
    %201 = vector.broadcast %200 : vector<1x1x192xf32> to vector<4x16x192xf32>
    %202 = arith.addf %199, %201 : vector<4x16x192xf32>
    %cst_114 = arith.constant 0.000000e+00 : f32
    %cst_115 = arith.constant 6.000000e+00 : f32
    %203 = vector.broadcast %cst_114 : f32 to vector<4x16x192xf32>
    %204 = arith.maximumf %203, %202 : vector<4x16x192xf32>
    %205 = vector.broadcast %cst_115 : f32 to vector<4x16x192xf32>
    %206 = arith.minimumf %205, %204 : vector<4x16x192xf32>
    %c8_116 = arith.constant 8 : index
    %c0_117 = arith.constant 0 : index
    %c0_118 = arith.constant 0 : index
    %207 = vector.load %arg11[%c8_116, %c0_117, %c0_118] : memref<16x16x192xf32, #tpu.memory_space<vmem>>, vector<4x16x192xf32>
    tpu.vector_store %arg11[%c8_116, %c0_117, %c0_118], %206 {strides = array<i32>} : memref<16x16x192xf32, #tpu.memory_space<vmem>>, vector<4x16x192xf32>,
    %c12 = arith.constant 12 : index
    %c0_119 = arith.constant 0 : index
    %c0_120 = arith.constant 0 : index
    %208 = vector.load %arg10[%c12, %c0_119, %c0_120] : memref<18x18x192xf32, #tpu.memory_space<vmem>>, vector<4x16x192xf32>
    %209 = vector.extract_strided_slice %23 {offsets = [0, 0], sizes = [1, 192], strides = [1, 1]} : vector<9x192xf32> to vector<1x192xf32>
    %210 = vector.shape_cast %209 : vector<1x192xf32> to vector<1x1x192xf32>
    %211 = vector.broadcast %210 : vector<1x1x192xf32> to vector<4x16x192xf32>
    %212 = arith.mulf %208, %211 : vector<4x16x192xf32>
    %c12_121 = arith.constant 12 : index
    %c1_122 = arith.constant 1 : index
    %c0_123 = arith.constant 0 : index
    %213 = vector.load %arg10[%c12_121, %c1_122, %c0_123] : memref<18x18x192xf32, #tpu.memory_space<vmem>>, vector<4x16x192xf32>
    %214 = vector.extract_strided_slice %23 {offsets = [1, 0], sizes = [1, 192], strides = [1, 1]} : vector<9x192xf32> to vector<1x192xf32>
    %215 = vector.shape_cast %214 : vector<1x192xf32> to vector<1x1x192xf32>
    %216 = vector.broadcast %215 : vector<1x1x192xf32> to vector<4x16x192xf32>
    %217 = arith.mulf %213, %216 : vector<4x16x192xf32>
    %218 = arith.addf %212, %217 : vector<4x16x192xf32>
    %c12_124 = arith.constant 12 : index
    %c2_125 = arith.constant 2 : index
    %c0_126 = arith.constant 0 : index
    %219 = vector.load %arg10[%c12_124, %c2_125, %c0_126] : memref<18x18x192xf32, #tpu.memory_space<vmem>>, vector<4x16x192xf32>
    %220 = vector.extract_strided_slice %23 {offsets = [2, 0], sizes = [1, 192], strides = [1, 1]} : vector<9x192xf32> to vector<1x192xf32>
    %221 = vector.shape_cast %220 : vector<1x192xf32> to vector<1x1x192xf32>
    %222 = vector.broadcast %221 : vector<1x1x192xf32> to vector<4x16x192xf32>
    %223 = arith.mulf %219, %222 : vector<4x16x192xf32>
    %224 = arith.addf %218, %223 : vector<4x16x192xf32>
    %c13 = arith.constant 13 : index
    %c0_127 = arith.constant 0 : index
    %c0_128 = arith.constant 0 : index
    %225 = vector.load %arg10[%c13, %c0_127, %c0_128] : memref<18x18x192xf32, #tpu.memory_space<vmem>>, vector<4x16x192xf32>
    %226 = vector.extract_strided_slice %23 {offsets = [3, 0], sizes = [1, 192], strides = [1, 1]} : vector<9x192xf32> to vector<1x192xf32>
    %227 = vector.shape_cast %226 : vector<1x192xf32> to vector<1x1x192xf32>
    %228 = vector.broadcast %227 : vector<1x1x192xf32> to vector<4x16x192xf32>
    %229 = arith.mulf %225, %228 : vector<4x16x192xf32>
    %230 = arith.addf %224, %229 : vector<4x16x192xf32>
    %c13_129 = arith.constant 13 : index
    %c1_130 = arith.constant 1 : index
    %c0_131 = arith.constant 0 : index
    %231 = vector.load %arg10[%c13_129, %c1_130, %c0_131] : memref<18x18x192xf32, #tpu.memory_space<vmem>>, vector<4x16x192xf32>
    %232 = vector.extract_strided_slice %23 {offsets = [4, 0], sizes = [1, 192], strides = [1, 1]} : vector<9x192xf32> to vector<1x192xf32>
    %233 = vector.shape_cast %232 : vector<1x192xf32> to vector<1x1x192xf32>
    %234 = vector.broadcast %233 : vector<1x1x192xf32> to vector<4x16x192xf32>
    %235 = arith.mulf %231, %234 : vector<4x16x192xf32>
    %236 = arith.addf %230, %235 : vector<4x16x192xf32>
    %c13_132 = arith.constant 13 : index
    %c2_133 = arith.constant 2 : index
    %c0_134 = arith.constant 0 : index
    %237 = vector.load %arg10[%c13_132, %c2_133, %c0_134] : memref<18x18x192xf32, #tpu.memory_space<vmem>>, vector<4x16x192xf32>
    %238 = vector.extract_strided_slice %23 {offsets = [5, 0], sizes = [1, 192], strides = [1, 1]} : vector<9x192xf32> to vector<1x192xf32>
    %239 = vector.shape_cast %238 : vector<1x192xf32> to vector<1x1x192xf32>
    %240 = vector.broadcast %239 : vector<1x1x192xf32> to vector<4x16x192xf32>
    %241 = arith.mulf %237, %240 : vector<4x16x192xf32>
    %242 = arith.addf %236, %241 : vector<4x16x192xf32>
    %c14 = arith.constant 14 : index
    %c0_135 = arith.constant 0 : index
    %c0_136 = arith.constant 0 : index
    %243 = vector.load %arg10[%c14, %c0_135, %c0_136] : memref<18x18x192xf32, #tpu.memory_space<vmem>>, vector<4x16x192xf32>
    %244 = vector.extract_strided_slice %23 {offsets = [6, 0], sizes = [1, 192], strides = [1, 1]} : vector<9x192xf32> to vector<1x192xf32>
    %245 = vector.shape_cast %244 : vector<1x192xf32> to vector<1x1x192xf32>
    %246 = vector.broadcast %245 : vector<1x1x192xf32> to vector<4x16x192xf32>
    %247 = arith.mulf %243, %246 : vector<4x16x192xf32>
    %248 = arith.addf %242, %247 : vector<4x16x192xf32>
    %c14_137 = arith.constant 14 : index
    %c1_138 = arith.constant 1 : index
    %c0_139 = arith.constant 0 : index
    %249 = vector.load %arg10[%c14_137, %c1_138, %c0_139] : memref<18x18x192xf32, #tpu.memory_space<vmem>>, vector<4x16x192xf32>
    %250 = vector.extract_strided_slice %23 {offsets = [7, 0], sizes = [1, 192], strides = [1, 1]} : vector<9x192xf32> to vector<1x192xf32>
    %251 = vector.shape_cast %250 : vector<1x192xf32> to vector<1x1x192xf32>
    %252 = vector.broadcast %251 : vector<1x1x192xf32> to vector<4x16x192xf32>
    %253 = arith.mulf %249, %252 : vector<4x16x192xf32>
    %254 = arith.addf %248, %253 : vector<4x16x192xf32>
    %c14_140 = arith.constant 14 : index
    %c2_141 = arith.constant 2 : index
    %c0_142 = arith.constant 0 : index
    %255 = vector.load %arg10[%c14_140, %c2_141, %c0_142] : memref<18x18x192xf32, #tpu.memory_space<vmem>>, vector<4x16x192xf32>
    %256 = vector.extract_strided_slice %23 {offsets = [8, 0], sizes = [1, 192], strides = [1, 1]} : vector<9x192xf32> to vector<1x192xf32>
    %257 = vector.shape_cast %256 : vector<1x192xf32> to vector<1x1x192xf32>
    %258 = vector.broadcast %257 : vector<1x1x192xf32> to vector<4x16x192xf32>
    %259 = arith.mulf %255, %258 : vector<4x16x192xf32>
    %260 = arith.addf %254, %259 : vector<4x16x192xf32>
    %261 = vector.shape_cast %24 : vector<1x192xf32> to vector<1x1x192xf32>
    %262 = vector.broadcast %261 : vector<1x1x192xf32> to vector<4x16x192xf32>
    %263 = arith.addf %260, %262 : vector<4x16x192xf32>
    %cst_143 = arith.constant 0.000000e+00 : f32
    %cst_144 = arith.constant 6.000000e+00 : f32
    %264 = vector.broadcast %cst_143 : f32 to vector<4x16x192xf32>
    %265 = arith.maximumf %264, %263 : vector<4x16x192xf32>
    %266 = vector.broadcast %cst_144 : f32 to vector<4x16x192xf32>
    %267 = arith.minimumf %266, %265 : vector<4x16x192xf32>
    %c12_145 = arith.constant 12 : index
    %c0_146 = arith.constant 0 : index
    %c0_147 = arith.constant 0 : index
    %268 = vector.load %arg11[%c12_145, %c0_146, %c0_147] : memref<16x16x192xf32, #tpu.memory_space<vmem>>, vector<4x16x192xf32>
    tpu.vector_store %arg11[%c12_145, %c0_146, %c0_147], %267 {strides = array<i32>} : memref<16x16x192xf32, #tpu.memory_space<vmem>>, vector<4x16x192xf32>,
    %c0_148 = arith.constant 0 : index
    %c0_149 = arith.constant 0 : index
    %c0_150 = arith.constant 0 : index
    %269 = vector.load %arg11[%c0_148, %c0_149, %c0_150] : memref<16x16x192xf32, #tpu.memory_space<vmem>>, vector<16x16x192xf32>
    %270 = vector.shape_cast %269 : vector<16x16x192xf32> to vector<256x192xf32>
    %271 = arith.truncf %270 : vector<256x192xf32> to vector<256x192xbf16>
    %c0_151 = arith.constant 0 : index
    %c0_152 = arith.constant 0 : index
    %272 = vector.load %arg6[%c0_151, %c0_152] : memref<192x64xbf16, #tpu.memory_space<vmem>>, vector<192x64xbf16>
    %cst_153 = arith.constant dense<0.000000e+00> : vector<256x64xf32>
    %273 = tpu.matmul %271, %272, %cst_153 {dimension_numbers = #tpu.dot_dimension_numbers<[1], [0], [0], [1], [0, 0, 1, 1], [], []>} : vector<256x192xbf16>, vector<192x64xbf16>, vector<256x64xf32> -> vector<256x64xf32>
    %c0_154 = arith.constant 0 : index
    %c0_155 = arith.constant 0 : index
    %274 = vector.load %arg7[%c0_154, %c0_155] : memref<1x64xf32, #tpu.memory_space<vmem>>, vector<1x64xf32>
    %275 = vector.broadcast %274 : vector<1x64xf32> to vector<256x64xf32>
    %276 = arith.addf %273, %275 : vector<256x64xf32>
    %c0_156 = arith.constant 0 : index
    %c0_157 = arith.constant 0 : index
    %277 = vector.load %arg8[%c0_156, %c0_157] : memref<32x64xf32, #tpu.memory_space<vmem>>, vector<32x64xf32>
    %cst_158 = arith.constant dense<0.000000e+00> : vector<256x64xf32>
    %278 = tpu.matmul %2, %277, %cst_158 {dimension_numbers = #tpu.dot_dimension_numbers<[1], [0], [0], [1], [0, 0, 1, 1], [], []>} : vector<256x32xf32>, vector<32x64xf32>, vector<256x64xf32> -> vector<256x64xf32>
    %279 = arith.addf %276, %278 : vector<256x64xf32>
    %280 = vector.shape_cast %279 : vector<256x64xf32> to vector<16x16x64xf32>
    %c0_159 = arith.constant 0 : index
    %c0_160 = arith.constant 0 : index
    %c0_161 = arith.constant 0 : index
    %c0_162 = arith.constant 0 : index
    %281 = vector.load %arg9[%c0_159, %c0_160, %c0_161, %c0_162] : memref<1x16x16x64xf32, #tpu.memory_space<vmem>>, vector<1x16x16x64xf32>
    %282 = vector.shape_cast %281 : vector<1x16x16x64xf32> to vector<16x16x64xf32>
    %283 = vector.shape_cast %280 : vector<16x16x64xf32> to vector<1x16x16x64xf32>
    tpu.vector_store %arg9[%c0_159, %c0_160, %c0_161, %c0_162], %283 {strides = array<i32>} : memref<1x16x16x64xf32, #tpu.memory_space<vmem>>, vector<1x16x16x64xf32>,
    return
  }
  func.func @transform_0(%arg0: i32) -> (i32, i32, i32, i32) {
    %c0_i32 = arith.constant 0 : i32
    %c0_i32_0 = arith.constant 0 : i32
    %c0_i32_1 = arith.constant 0 : i32
    %c0_i32_2 = arith.constant 0 : i32
    return %arg0, %c0_i32, %c0_i32_0, %c0_i32_1 : i32, i32, i32, i32
  }
  func.func @transform_1(%arg0: i32) -> (i32, i32) {
    %c0_i32 = arith.constant 0 : i32
    %c0_i32_0 = arith.constant 0 : i32
    %c0_i32_1 = arith.constant 0 : i32
    return %c0_i32, %c0_i32_0 : i32, i32
  }
  func.func @transform_2(%arg0: i32) -> (i32, i32) {
    %c0_i32 = arith.constant 0 : i32
    %c0_i32_0 = arith.constant 0 : i32
    %c0_i32_1 = arith.constant 0 : i32
    return %c0_i32, %c0_i32_0 : i32, i32
  }
  func.func @transform_3(%arg0: i32) -> (i32, i32) {
    %c0_i32 = arith.constant 0 : i32
    %c0_i32_0 = arith.constant 0 : i32
    %c0_i32_1 = arith.constant 0 : i32
    return %c0_i32, %c0_i32_0 : i32, i32
  }
  func.func @transform_4(%arg0: i32) -> (i32, i32) {
    %c0_i32 = arith.constant 0 : i32
    %c0_i32_0 = arith.constant 0 : i32
    %c0_i32_1 = arith.constant 0 : i32
    return %c0_i32, %c0_i32_0 : i32, i32
  }
  func.func @transform_5(%arg0: i32) -> (i32, i32) {
    %c0_i32 = arith.constant 0 : i32
    %c0_i32_0 = arith.constant 0 : i32
    %c0_i32_1 = arith.constant 0 : i32
    return %c0_i32, %c0_i32_0 : i32, i32
  }
  func.func @transform_6(%arg0: i32) -> (i32, i32) {
    %c0_i32 = arith.constant 0 : i32
    %c0_i32_0 = arith.constant 0 : i32
    %c0_i32_1 = arith.constant 0 : i32
    return %c0_i32, %c0_i32_0 : i32, i32
  }
  func.func @transform_7(%arg0: i32) -> (i32, i32) {
    %c0_i32 = arith.constant 0 : i32
    %c0_i32_0 = arith.constant 0 : i32
    %c0_i32_1 = arith.constant 0 : i32
    return %c0_i32, %c0_i32_0 : i32, i32
  }
  func.func @transform_8(%arg0: i32) -> (i32, i32, i32, i32) {
    %c0_i32 = arith.constant 0 : i32
    %c0_i32_0 = arith.constant 0 : i32
    %c0_i32_1 = arith.constant 0 : i32
    %c0_i32_2 = arith.constant 0 : i32
    return %arg0, %c0_i32, %c0_i32_0, %c0_i32_1 : i32, i32, i32, i32
  }
}

</mosaic_0001>

<llo_original>
// kernel: _lambda_.1
$region0: #{_lambda_.1}
  #allocation0 [shape = 'u32[]', space=smem, size = 0x4, offset = 0x4, fixed_abs, tag = 'smem constant byte address 0x4 - core index']
  #allocation1 [shape = 'u32[144,128]{1,0:T(1,128)}', space=vmem, size = 0x12000, scoped, tag = 'internal scratch']
  #allocation2 [shape = 'f32[18,18,192]{2,1,0:T(8,128)}', space=vmem, size = 0x6c000, scoped, tag = 'scratch operand']
  #allocation3 [shape = 'f32[16,16,192]{2,1,0:T(8,128)}', space=vmem, size = 0x40000, scoped, tag = 'scratch operand']
  %s0 = inlined_call_operand.hbm [shape: f32[2,16,16,32], index: 0, kind: input, shape index: {}]
  %s1 = inlined_call_operand.hbm [shape: bf16[32,192], index: 1, kind: input, shape index: {}]
  %s2 = inlined_call_operand.vmem [shape: f32[1,192], index: 2, kind: input, shape index: {}]
  %s3 = inlined_call_operand.hbm [shape: f32[9,192], index: 3, kind: input, shape index: {}]
  %s4 = inlined_call_operand.vmem [shape: f32[1,192], index: 4, kind: input, shape index: {}]
  %s5 = inlined_call_operand.hbm [shape: bf16[192,64], index: 5, kind: input, shape index: {}]
  %s6 = inlined_call_operand.vmem [shape: f32[1,64], index: 6, kind: input, shape index: {}]
  %s7 = inlined_call_operand.hbm [shape: f32[32,64], index: 7, kind: input, shape index: {}]
  %s8 = inlined_call_operand.hbm [shape: f32[2,16,16,64], index: 8, kind: output, shape index: {}]
  %s9 = sld [smem:[#allocation0]]
  $region85: #{_lambda_.1} parent=0
    _
  %s11 = ssub.s32 1, %s9
  %s12 = scalar_select 0, %s11, %s9
  $region1: #{_lambda_.1} parent=0
    #allocation4 [shape = 'u8[262144]{0}', space=vmem, size = 0x40000, scoped, tag = 'input window, operand 0']
    #allocation5 [shape = 's32[2]{0}', space=sflag, size = 0x8, scoped, tag = 'scoped memory for _lambda_.1']
    #allocation6 [shape = 's32[2]{0}', space=sflag, size = 0x8, scoped, tag = 'scoped memory for _lambda_.1']
    #allocation7 [shape = 'u8[16384]{0}', space=vmem, size = 0x4000, scoped, tag = 'input window, operand 1, single buffered']
    #allocation8 [shape = 's32[1]{0}', space=sflag, size = 0x4, scoped, tag = 'scoped memory for _lambda_.1']
    #allocation9 [shape = 'u8[16384]{0}', space=vmem, size = 0x4000, scoped, tag = 'input window, operand 3, single buffered']
    #allocation10 [shape = 'u8[49152]{0}', space=vmem, size = 0xc000, scoped, tag = 'input window, operand 5, single buffered']
    #allocation11 [shape = 's32[1]{0}', space=sflag, size = 0x4, scoped, tag = 'scoped memory for _lambda_.1']
    #allocation12 [shape = 'u8[16384]{0}', space=vmem, size = 0x4000, scoped, tag = 'input window, operand 7, single buffered']
    #allocation13 [shape = 'u8[262144]{0}', space=vmem, size = 0x40000, scoped, tag = 'output window, operand 0']
    %13 = vsyncpa [#allocation5], 0
    %s14 = scalar_lea.sflag [#allocation5], 1
    %15 = vsyncpa %s14, 0
    %16 = vsyncpa [#allocation8], 0
    %17 = vsyncpa [#allocation11], 0
    %18 = vsyncpa [#allocation6], 0
    %s19 = scalar_lea.sflag [#allocation6], 1
    %20 = vsyncpa %s19, 0
    loop: start=0, step=1, limit=4
    $region2: #{_lambda_.1} parent=1 // loop_pre_header
      _
    $region3: #{_lambda_.1} parent=1 // loop_header
      %s22 = sphi 0, %s26
      %p23 = scmp.ge.s32.totalorder %s22, 4
      %s32 = sphi 0, %s34
      %s35 = sphi 0, %s32
      %s36 = sphi 0, %s35
      %s52 = sphi 0, %s36
      %s56 = sphi 0, %s56
      %s58 = sphi 0, %s56
      %s59 = sphi 0, %s58
      %s73 = sphi 0, %s59
      %s77 = sphi 0, %s77
      %s79 = sphi 0, %s77
      %s80 = sphi 0, %s79
      %s94 = sphi 0, %s80
      %s98 = sphi 0, %s98
      %s100 = sphi 0, %s98
      %s101 = sphi 0, %s100
      %s115 = sphi 0, %s101
      %s119 = sphi 0, %s119
      %s121 = sphi 0, %s119
      %s122 = sphi 0, %s121
      %s136 = sphi 0, %s122
      %s140 = sphi 0, %s140
      %s142 = sphi 0, %s140
      %s143 = sphi 0, %s142
      %s157 = sphi 0, %s143
      %s161 = sphi 0, %s161
      %s163 = sphi 0, %s161
      %s164 = sphi 0, %s163
      %s178 = sphi 0, %s164
      %s182 = sphi 0, %s182
      %s184 = sphi 0, %s182
      %s185 = sphi 0, %s184
      %s199 = sphi 0, %s185
      %s205 = sphi 0, %s207
      %s208 = sphi 0, %s205
      %s209 = sphi 0, %s208
      %s225 = sphi 0, %s209
    $region4: #{_lambda_.1} parent=1 // loop_header_branch
      %25 = sbr.rel (%p23) target = $region8
    $region5: #{_lambda_.1} parent=1 // loop_body
      %s27 = ssub.s32 %s22, 1
      %s28 = ssub.s32 %s22, 2
      %s29 = sadd.s32 %s22, 1
      %s30 = ssub.s32 %s22, %s29
      %p31 = scmp.eq.s32.totalorder %s30, 0
      %s33 = sadd.s32 %s32, 1
      %s34 = scalar_select %p31, %s32, %s33
      %p37 = pneg %p31
      %p38 = scmp.eq.s32.totalorder %s22, 1
      %p39 = por %p37, %p38
      %p40 = scmp.ne.s32.totalorder %s32, %s35
      %p41 = scmp.eq.s32.totalorder %s22, 0
      %p42 = por %p40, %p41
      %p43 = scmp.ne.s32.totalorder %s32, %s35
      %p44 = scmp.eq.s32.totalorder %s27, 1
      %p45 = por %p43, %p44
      %p46 = scmp.ne.s32.totalorder %s35, %s36
      %p47 = scmp.eq.s32.totalorder %s27, 0
      %p48 = por %p46, %p47
      %p49 = scmp.ne.s32.totalorder %s35, %s36
      %p50 = scmp.eq.s32.totalorder %s28, 1
      %p51 = por %p49, %p50
      %p53 = scmp.ne.s32.totalorder %s36, %s52
      %p54 = scmp.eq.s32.totalorder %s28, 0
      %p55 = por %p53, %p54
      %s57 = sadd.s32 %s56, 1
      %p60 = scmp.eq.s32.totalorder %s22, 1
      %p61 = scmp.ne.s32.totalorder %s56, %s58
      %p62 = scmp.eq.s32.totalorder %s22, 0
      %p63 = por %p61, %p62
      %p64 = scmp.ne.s32.totalorder %s56, %s58
      %p65 = scmp.eq.s32.totalorder %s27, 1
      %p66 = por %p64, %p65
      %p67 = scmp.ne.s32.totalorder %s58, %s59
      %p68 = scmp.eq.s32.totalorder %s27, 0
      %p69 = por %p67, %p68
      %p70 = scmp.ne.s32.totalorder %s58, %s59
      %p71 = scmp.eq.s32.totalorder %s28, 1
      %p72 = por %p70, %p71
      %p74 = scmp.ne.s32.totalorder %s59, %s73
      %p75 = scmp.eq.s32.totalorder %s28, 0
      %p76 = por %p74, %p75
      %s78 = sadd.s32 %s77, 1
      %p81 = scmp.eq.s32.totalorder %s22, 1
      %p82 = scmp.ne.s32.totalorder %s77, %s79
      %p83 = scmp.eq.s32.totalorder %s22, 0
      %p84 = por %p82, %p83
      %p85 = scmp.ne.s32.totalorder %s77, %s79
      %p86 = scmp.eq.s32.totalorder %s27, 1
      %p87 = por %p85, %p86
      %p88 = scmp.ne.s32.totalorder %s79, %s80
      %p89 = scmp.eq.s32.totalorder %s27, 0
      %p90 = por %p88, %p89
      %p91 = scmp.ne.s32.totalorder %s79, %s80
      %p92 = scmp.eq.s32.totalorder %s28, 1
      %p93 = por %p91, %p92
      %p95 = scmp.ne.s32.totalorder %s80, %s94
      %p96 = scmp.eq.s32.totalorder %s28, 0
      %p97 = por %p95, %p96
      %s99 = sadd.s32 %s98, 1
      %p102 = scmp.eq.s32.totalorder %s22, 1
      %p103 = scmp.ne.s32.totalorder %s98, %s100
      %p104 = scmp.eq.s32.totalorder %s22, 0
      %p105 = por %p103, %p104
      %p106 = scmp.ne.s32.totalorder %s98, %s100
      %p107 = scmp.eq.s32.totalorder %s27, 1
      %p108 = por %p106, %p107
      %p109 = scmp.ne.s32.totalorder %s100, %s101
      %p110 = scmp.eq.s32.totalorder %s27, 0
      %p111 = por %p109, %p110
      %p112 = scmp.ne.s32.totalorder %s100, %s101
      %p113 = scmp.eq.s32.totalorder %s28, 1
      %p114 = por %p112, %p113
      %p116 = scmp.ne.s32.totalorder %s101, %s115
      %p117 = scmp.eq.s32.totalorder %s28, 0
      %p118 = por %p116, %p117
      %s120 = sadd.s32 %s119, 1
      %p123 = scmp.eq.s32.totalorder %s22, 1
      %p124 = scmp.ne.s32.totalorder %s119, %s121
      %p125 = scmp.eq.s32.totalorder %s22, 0
      %p126 = por %p124, %p125
      %p127 = scmp.ne.s32.totalorder %s119, %s121
      %p128 = scmp.eq.s32.totalorder %s27, 1
      %p129 = por %p127, %p128
      %p130 = scmp.ne.s32.totalorder %s121, %s122
      %p131 = scmp.eq.s32.totalorder %s27, 0
      %p132 = por %p130, %p131
      %p133 = scmp.ne.s32.totalorder %s121, %s122
      %p134 = scmp.eq.s32.totalorder %s28, 1
      %p135 = por %p133, %p134
      %p137 = scmp.ne.s32.totalorder %s122, %s136
      %p138 = scmp.eq.s32.totalorder %s28, 0
      %p139 = por %p137, %p138
      %s141 = sadd.s32 %s140, 1
      %p144 = scmp.eq.s32.totalorder %s22, 1
      %p145 = scmp.ne.s32.totalorder %s140, %s142
      %p146 = scmp.eq.s32.totalorder %s22, 0
      %p147 = por %p145, %p146
      %p148 = scmp.ne.s32.totalorder %s140, %s142
      %p149 = scmp.eq.s32.totalorder %s27, 1
      %p150 = por %p148, %p149
      %p151 = scmp.ne.s32.totalorder %s142, %s143
      %p152 = scmp.eq.s32.totalorder %s27, 0
      %p153 = por %p151, %p152
      %p154 = scmp.ne.s32.totalorder %s142, %s143
      %p155 = scmp.eq.s32.totalorder %s28, 1
      %p156 = por %p154, %p155
      %p158 = scmp.ne.s32.totalorder %s143, %s157
      %p159 = scmp.eq.s32.totalorder %s28, 0
      %p160 = por %p158, %p159
      %s162 = sadd.s32 %s161, 1
      %p165 = scmp.eq.s32.totalorder %s22, 1
      %p166 = scmp.ne.s32.totalorder %s161, %s163
      %p167 = scmp.eq.s32.totalorder %s22, 0
      %p168 = por %p166, %p167
      %p169 = scmp.ne.s32.totalorder %s161, %s163
      %p170 = scmp.eq.s32.totalorder %s27, 1
      %p171 = por %p169, %p170
      %p172 = scmp.ne.s32.totalorder %s163, %s164
      %p173 = scmp.eq.s32.totalorder %s27, 0
      %p174 = por %p172, %p173
      %p175 = scmp.ne.s32.totalorder %s163, %s164
      %p176 = scmp.eq.s32.totalorder %s28, 1
      %p177 = por %p175, %p176
      %p179 = scmp.ne.s32.totalorder %s164, %s178
      %p180 = scmp.eq.s32.totalorder %s28, 0
      %p181 = por %p179, %p180
      %s183 = sadd.s32 %s182, 1
      %p186 = scmp.eq.s32.totalorder %s22, 1
      %p187 = scmp.ne.s32.totalorder %s182, %s184
      %p188 = scmp.eq.s32.totalorder %s22, 0
      %p189 = por %p187, %p188
      %p190 = scmp.ne.s32.totalorder %s182, %s184
      %p191 = scmp.eq.s32.totalorder %s27, 1
      %p192 = por %p190, %p191
      %p193 = scmp.ne.s32.totalorder %s184, %s185
      %p194 = scmp.eq.s32.totalorder %s27, 0
      %p195 = por %p193, %p194
      %p196 = scmp.ne.s32.totalorder %s184, %s185
      %p197 = scmp.eq.s32.totalorder %s28, 1
      %p198 = por %p196, %p197
      %p200 = scmp.ne.s32.totalorder %s185, %s199
      %p201 = scmp.eq.s32.totalorder %s28, 0
      %p202 = por %p200, %p201
      %s203 = ssub.s32 %s22, %s29
      %p204 = scmp.eq.s32.totalorder %s203, 0
      %s206 = sadd.s32 %s205, 1
      %s207 = scalar_select %p204, %s205, %s206
      %p210 = pneg %p204
      %p211 = scmp.eq.s32.totalorder %s22, 1
      %p212 = por %p210, %p211
      %p213 = scmp.ne.s32.totalorder %s205, %s208
      %p214 = scmp.eq.s32.totalorder %s22, 0
      %p215 = por %p213, %p214
      %p216 = scmp.ne.s32.totalorder %s205, %s208
      %p217 = scmp.eq.s32.totalorder %s27, 1
      %p218 = por %p216, %p217
      %p219 = scmp.ne.s32.totalorder %s208, %s209
      %p220 = scmp.eq.s32.totalorder %s27, 0
      %p221 = por %p219, %p220
      %p222 = scmp.ne.s32.totalorder %s208, %s209
      %p223 = scmp.eq.s32.totalorder %s28, 1
      %p224 = por %p222, %p223
      %p226 = scmp.ne.s32.totalorder %s209, %s225
      %p227 = scmp.eq.s32.totalorder %s28, 0
      %p228 = por %p226, %p227
      %p229 = scmp.le.s32.totalorder 1, %s22
      %p230 = scmp.lt.s32.totalorder %s22, 3
      %p231 = pnand %p229, %p230
      %p232 = pneg %p231
      // Predicated region
      $region9: #{_lambda_.1} parent=5 // pred_check
        _
      $region10: #{_lambda_.1} parent=5 // pred_check_branch
        %234 = sbr.rel (%p231) target = $region12
      $region11: #{_lambda_.1} parent=5 // pred_region
        %s235 = ssub.s32 %s22, 1
        // Predicated region
        $region13: #{_lambda_.1} parent=11 // pred_check
          %p236 = pneg %p69
        $region14: #{_lambda_.1} parent=11 // pred_check_branch
          %238 = sbr.rel (%p236) target = $region16
        $region15: #{_lambda_.1} parent=11 // pred_region
          %s240 = ssub.s32 512, 512
          %241 = vsyncadd [#allocation8], %s240
          %s242 = sshll.u32 [#allocation7], 4
          %s243 = int_to_ptr.vmem [resolvable:$true] %s242
          %248 = dma.hbm_to_vmem [thread:$0]  %s1, 512, %s243, [#allocation8], 128, 128, 8
        $region16: #{_lambda_.1} parent=11 // pred_fallthru
          _
        // Predicated region
        $region17: #{_lambda_.1} parent=11 // pred_check
          %p249 = pneg %p90
        $region18: #{_lambda_.1} parent=11 // pred_check_branch
          %251 = sbr.rel (%p249) target = $region20
        $region19: #{_lambda_.1} parent=11 // pred_region
          _
        $region20: #{_lambda_.1} parent=11 // pred_fallthru
          _
        // Predicated region
        $region21: #{_lambda_.1} parent=11 // pred_check
          %p252 = pneg %p111
        $region22: #{_lambda_.1} parent=11 // pred_check_branch
          %254 = sbr.rel (%p252) target = $region24
        $region23: #{_lambda_.1} parent=11 // pred_region
          %s256 = ssub.s32 512, 512
          %257 = vsyncadd [#allocation8], %s256
          %s258 = sshll.u32 [#allocation9], 4
          %s259 = int_to_ptr.vmem [resolvable:$true] %s258
          %264 = dma.hbm_to_vmem [thread:$0]  %s3, 512, %s259, [#allocation8], 256, 256, 16
        $region24: #{_lambda_.1} parent=11 // pred_fallthru
          _
        // Predicated region
        $region25: #{_lambda_.1} parent=11 // pred_check
          %p265 = pneg %p132
        $region26: #{_lambda_.1} parent=11 // pred_check_branch
          %267 = sbr.rel (%p265) target = $region28
        $region27: #{_lambda_.1} parent=11 // pred_region
          _
        $region28: #{_lambda_.1} parent=11 // pred_fallthru
          _
        // Predicated region
        $region29: #{_lambda_.1} parent=11 // pred_check
          %p268 = pneg %p153
        $region30: #{_lambda_.1} parent=11 // pred_check_branch
          %270 = sbr.rel (%p268) target = $region32
        $region31: #{_lambda_.1} parent=11 // pred_region
          %s272 = ssub.s32 1536, 1536
          %273 = vsyncadd [#allocation11], %s272
          %s274 = sshll.u32 [#allocation10], 4
          %s275 = int_to_ptr.vmem [resolvable:$true] %s274
          %280 = dma.hbm_to_vmem [thread:$0]  %s5, 1536, %s275, [#allocation11], 64, 64, 4
        $region32: #{_lambda_.1} parent=11 // pred_fallthru
          _
        // Predicated region
        $region33: #{_lambda_.1} parent=11 // pred_check
          %p281 = pneg %p174
        $region34: #{_lambda_.1} parent=11 // pred_check_branch
          %283 = sbr.rel (%p281) target = $region36
        $region35: #{_lambda_.1} parent=11 // pred_region
          _
        $region36: #{_lambda_.1} parent=11 // pred_fallthru
          _
        // Predicated region
        $region37: #{_lambda_.1} parent=11 // pred_check
          %p284 = pneg %p195
        $region38: #{_lambda_.1} parent=11 // pred_check_branch
          %286 = sbr.rel (%p284) target = $region40
        $region39: #{_lambda_.1} parent=11 // pred_region
          %s288 = ssub.s32 512, 512
          %289 = vsyncadd [#allocation11], %s288
          %s290 = sshll.u32 [#allocation12], 4
          %s291 = int_to_ptr.vmem [resolvable:$true] %s290
          %296 = dma.hbm_to_vmem [thread:$0]  %s7, 512, %s291, [#allocation11], 128, 128, 8
        $region40: #{_lambda_.1} parent=11 // pred_fallthru
          _
      $region12: #{_lambda_.1} parent=5 // pred_fallthru
        _
      %p297 = scmp.lt.s32.totalorder %s22, 2
      // Predicated region
      $region41: #{_lambda_.1} parent=5 // pred_check
        %p298 = pneg %p297
      $region42: #{_lambda_.1} parent=5 // pred_check_branch
        %300 = sbr.rel (%p298) target = $region44
      $region43: #{_lambda_.1} parent=5 // pred_region
        // Predicated region
        $region45: #{_lambda_.1} parent=43 // pred_check
          %p301 = pneg %p42
        $region46: #{_lambda_.1} parent=43 // pred_check_branch
          %303 = sbr.rel (%p301) target = $region48
        $region47: #{_lambda_.1} parent=43 // pred_region
          %s304 = sand.u32 %s32, 1
          %s305 = scalar_lea.sflag [#allocation5], %s304
          %s306 = sand.u32 %s32, 1
          %s307 = smul.addr %s306, 256
          %s308 = scalar_lea.vmem [#allocation4], %s307
          %s310 = ssub.s32 4096, 4096
          %311 = vsyncadd %s305, %s310
          %s312 = smul.addr %s22, 32
          %s313 = smul.addr %s312, 128
          %s314 = scalar_lea.hbm %s0, %s313
          %s315 = sshll.u32 %s308, 4
          %s316 = int_to_ptr.vmem [resolvable:$true] %s315
          %321 = dma.hbm_to_vmem [thread:$0]  %s314, 4096, %s316, %s305, 128, 128, 8
        $region48: #{_lambda_.1} parent=43 // pred_fallthru
          _
      $region44: #{_lambda_.1} parent=5 // pred_fallthru
        _
      %p322 = scmp.le.s32.totalorder 1, %s22
      %p323 = scmp.lt.s32.totalorder %s22, 3
      %p324 = pnand %p322, %p323
      %p325 = pneg %p324
      // Predicated region
      $region49: #{_lambda_.1} parent=5 // pred_check
        _
      $region50: #{_lambda_.1} parent=5 // pred_check_branch
        %327 = sbr.rel (%p324) target = $region52
      $region51: #{_lambda_.1} parent=5 // pred_region
        %s328 = ssub.s32 %s22, 1
        %s329 = sand.u32 %s35, 1
        %s330 = scalar_lea.sflag [#allocation5], %s329
        %s331 = sand.u32 %s35, 1
        %s332 = smul.addr %s331, 256
        %s333 = scalar_lea.vmem [#allocation4], %s332
        // Predicated region
        $region53: #{_lambda_.1} parent=51 // pred_check
          %p334 = pneg %p48
        $region54: #{_lambda_.1} parent=51 // pred_check_branch
          %336 = sbr.rel (%p334) target = $region56
        $region55: #{_lambda_.1} parent=51 // pred_region
          %337 = dma.done %s330, 4096
        $region56: #{_lambda_.1} parent=51 // pred_fallthru
          _
        // Predicated region
        $region57: #{_lambda_.1} parent=51 // pred_check
          %p338 = pneg %p69
        $region58: #{_lambda_.1} parent=51 // pred_check_branch
          %340 = sbr.rel (%p338) target = $region60
        $region59: #{_lambda_.1} parent=51 // pred_region
          %341 = dma.done [#allocation8], 512
        $region60: #{_lambda_.1} parent=51 // pred_fallthru
          _
        // Predicated region
        $region61: #{_lambda_.1} parent=51 // pred_check
          %p342 = pneg %p111
        $region62: #{_lambda_.1} parent=51 // pred_check_branch
          %344 = sbr.rel (%p342) target = $region64
        $region63: #{_lambda_.1} parent=51 // pred_region
          %345 = dma.done [#allocation8], 512
        $region64: #{_lambda_.1} parent=51 // pred_fallthru
          _
        // Predicated region
        $region65: #{_lambda_.1} parent=51 // pred_check
          %p346 = pneg %p153
        $region66: #{_lambda_.1} parent=51 // pred_check_branch
          %348 = sbr.rel (%p346) target = $region68
        $region67: #{_lambda_.1} parent=51 // pred_region
          %349 = dma.done [#allocation11], 1536
        $region68: #{_lambda_.1} parent=51 // pred_fallthru
          _
        // Predicated region
        $region69: #{_lambda_.1} parent=51 // pred_check
          %p350 = pneg %p195
        $region70: #{_lambda_.1} parent=51 // pred_check_branch
          %352 = sbr.rel (%p350) target = $region72
        $region71: #{_lambda_.1} parent=51 // pred_region
          %353 = dma.done [#allocation11], 512
        $region72: #{_lambda_.1} parent=51 // pred_fallthru
          _
        %s354 = sand.u32 %s35, 1
        %s355 = scalar_lea.sflag [#allocation5], %s354
        %s356 = sand.u32 %s35, 1
        %s357 = smul.addr %s356, 256
        %s358 = scalar_lea.vmem [#allocation4], %s357
        %p359 = pneg %p48
        %p360 = pneg %p45
        %p361 = pneg %p69
        %p362 = pneg %p66
        %p363 = pneg %p90
        %p364 = pneg %p87
        %p365 = pneg %p111
        %p366 = pneg %p108
        %p367 = pneg %p132
        %p368 = pneg %p129
        %p369 = pneg %p153
        %p370 = pneg %p150
        %p371 = pneg %p174
        %p372 = pneg %p171
        %p373 = pneg %p195
        %p374 = pneg %p192
        %p375 = pneg %p221
        %p376 = pneg %p218
        %s377 = sand.u32 %s208, 1
        %s378 = scalar_lea.sflag [#allocation6], %s377
        %s379 = sand.u32 %s208, 1
        %s380 = smul.addr %s379, 256
        %s381 = scalar_lea.vmem [#allocation13], %s380
        %v383 = vld [vmem:[%s333] sm:$0xff]
        %v384 = vld [vmem:[%s333 + $0x8] sm:$0xff]
        %v385 = vld [vmem:[%s333 + $0x10] sm:$0xff]
        %v386 = vld [vmem:[%s333 + $0x18] sm:$0xff]
        %v387 = vld [vmem:[%s333 + $0x20] sm:$0xff]
        %v388 = vld [vmem:[%s333 + $0x28] sm:$0xff]
        %v389 = vld [vmem:[%s333 + $0x30] sm:$0xff]
        %v390 = vld [vmem:[%s333 + $0x38] sm:$0xff]
        %v391 = vld [vmem:[%s333 + $0x40] sm:$0xff]
        %v392 = vld [vmem:[%s333 + $0x48] sm:$0xff]
        %v393 = vld [vmem:[%s333 + $0x50] sm:$0xff]
        %v394 = vld [vmem:[%s333 + $0x58] sm:$0xff]
        %v395 = vld [vmem:[%s333 + $0x60] sm:$0xff]
        %v396 = vld [vmem:[%s333 + $0x68] sm:$0xff]
        %v397 = vld [vmem:[%s333 + $0x70] sm:$0xff]
        %v398 = vld [vmem:[%s333 + $0x78] sm:$0xff]
        %v399 = vld [vmem:[%s333 + $0x80] sm:$0xff]
        %v400 = vld [vmem:[%s333 + $0x88] sm:$0xff]
        %v401 = vld [vmem:[%s333 + $0x90] sm:$0xff]
        %v402 = vld [vmem:[%s333 + $0x98] sm:$0xff]
        %v403 = vld [vmem:[%s333 + $0xa0] sm:$0xff]
        %v404 = vld [vmem:[%s333 + $0xa8] sm:$0xff]
        %v405 = vld [vmem:[%s333 + $0xb0] sm:$0xff]
        %v406 = vld [vmem:[%s333 + $0xb8] sm:$0xff]
        %v407 = vld [vmem:[%s333 + $0xc0] sm:$0xff]
        %v408 = vld [vmem:[%s333 + $0xc8] sm:$0xff]
        %v409 = vld [vmem:[%s333 + $0xd0] sm:$0xff]
        %v410 = vld [vmem:[%s333 + $0xd8] sm:$0xff]
        %v411 = vld [vmem:[%s333 + $0xe0] sm:$0xff]
        %v412 = vld [vmem:[%s333 + $0xe8] sm:$0xff]
        %v413 = vld [vmem:[%s333 + $0xf0] sm:$0xff]
        %v414 = vld [vmem:[%s333 + $0xf8] sm:$0xff]
        %v415 = vpack.c.bf16 %v384, %v383
        %v416 = vpack.c.bf16 %v386, %v385
        %v417 = vpack.c.bf16 %v388, %v387
        %v418 = vpack.c.bf16 %v390, %v389
        %v419 = vpack.c.bf16 %v392, %v391
        %v420 = vpack.c.bf16 %v394, %v393
        %v421 = vpack.c.bf16 %v396, %v395
        %v422 = vpack.c.bf16 %v398, %v397
        %v423 = vpack.c.bf16 %v400, %v399
        %v424 = vpack.c.bf16 %v402, %v401
        %v425 = vpack.c.bf16 %v404, %v403
        %v426 = vpack.c.bf16 %v406, %v405
        %v427 = vpack.c.bf16 %v408, %v407
        %v428 = vpack.c.bf16 %v410, %v409
        %v429 = vpack.c.bf16 %v412, %v411
        %v430 = vpack.c.bf16 %v414, %v413
        %v431 = vld [vmem:[#allocation7] sm:$0xff]
        %v432 = vld [vmem:[#allocation7 + $0x8] sm:$0xff]
        %v433 = vld [vmem:[#allocation7 + $0x10] sm:$0xff]
        %v434 = vld [vmem:[#allocation7 + $0x18] sm:$0xff]
        %v435 = vld [vmem:[%s2] sm:$0x3]
        %v437 = vlaneseq
        %v438 = vshrl.u32 %v437, 7
        %v439 = vsub.s32 0, %v438
        %v440 = vrot.slane %v435, %v439
        %v441 = vlaneseq
        %v442 = vshrl.u32 %v441, 7
        %v443 = vsub.s32 1, %v442
        %v444 = vrot.slane %v435, %v443
        %v451 = vunpack.c.l.b16 %v431
        %v452 = vunpack.c.h.b16 %v431
        %v453 = vunpack.c.l.b16 %v432
        %v454 = vunpack.c.h.b16 %v432
        %v455 = vunpack.c.l.b16 %v433
        %v456 = vunpack.c.h.b16 %v433
        %v457 = vunpack.c.l.b16 %v434
        %v458 = vunpack.c.h.b16 %v434
        %v459 = vpack.c.b16 %v453, %v451
        %v460 = vpack.c.b16 %v454, %v452
        %v461 = vpack.c.b16 %v457, %v455
        %v462 = vpack.c.b16 %v458, %v456
        %vm467 = vcmask 261120
        %v469 = vsel %vm467, %v415, 0
        %v472 = vsel %vm467, %v416, 0
        %v475 = vsel %vm467, %v417, 0
        %v478 = vsel %vm467, %v418, 0
        %v481 = vsel %vm467, %v419, 0
        %v484 = vsel %vm467, %v420, 0
        %v487 = vsel %vm467, %v421, 0
        %v490 = vsel %vm467, %v422, 0
        %v493 = vsel %vm467, %v423, 0
        %v496 = vsel %vm467, %v424, 0
        %v499 = vsel %vm467, %v425, 0
        %v502 = vsel %vm467, %v426, 0
        %v505 = vsel %vm467, %v427, 0
        %v508 = vsel %vm467, %v428, 0
        %v511 = vsel %vm467, %v429, 0
        %v514 = vsel %vm467, %v430, 0
        %516 = vmatprep.subr.bf16.mxu0 0
        %517 = vmatpush1.bf16.msra.mxu0 0
        %518 = vmatprep.subr.bf16.mxu0 0
        %519 = vmatpush1.bf16.msra.mxu0 0
        %520 = vmatprep.subr.bf16.mxu0 0
        %521 = vmatpush1.bf16.msra.mxu0 0
        %522 = vmatprep.subr.bf16.mxu0 0
        %523 = vmatpush1.bf16.msra.mxu0 0
        %524 = vmatprep.subr.bf16.mxu0 0
        %525 = vmatpush1.bf16.msra.mxu0 0
        %526 = vmatprep.subr.bf16.mxu0 0
        %527 = vmatpush1.bf16.msra.mxu0 0
        %528 = vmatprep.subr.bf16.mxu0 %v462
        %529 = vmatpush1.bf16.msra.mxu0 %v461
        %530 = vmatprep.subr.bf16.mxu0 %v460
        %531 = vmatpush1.bf16.msra.mxu0 %v459
        %532 = vmatprep.subr.bf16.mxu0 0
        %533 = vmatpush2.bf16.msra.mxu0 0
        %534 = vmatprep.subr.bf16.mxu0 0
        %535 = vmatpush2.bf16.msra.mxu0 0
        %536 = vmatprep.subr.bf16.mxu0 0
        %537 = vmatpush2.bf16.msra.mxu0 0
        %538 = vmatprep.subr.bf16.mxu0 0
        %539 = vmatpush2.bf16.msra.mxu0 0
        %540 = vmatprep.subr.bf16.mxu0 0
        %541 = vmatpush2.bf16.msra.mxu0 0
        %542 = vmatprep.subr.bf16.mxu0 0
        %543 = vmatpush2.bf16.msra.mxu0 0
        %544 = vmatprep.subr.bf16.mxu0 0
        %545 = vmatpush2.bf16.msra.mxu0 0
        %546 = vmatprep.subr.bf16.mxu0 0
        %547 = vmatpush2.bf16.msra.mxu0 0
        %548 = vmatprep.mubr.bf16.mxu0 0
        %549 = vmatmul.mubr.bf16.gmra.mxu0 %v469
        %v550 = vpop.f32.mrf.mxu0
        %v551 = vadd.f32 %v440, %v550
        %v552 = vpop.f32.mrf.mxu0
        %v553 = vadd.f32 %v444, %v552
        %v554 = vpop.f32.mrf.mxu0
        %v555 = vadd.f32 %v440, %v554
        %v556 = vpop.f32.mrf.mxu0
        %v557 = vadd.f32 %v444, %v556
        %558 = vmatprep.mubr.bf16.mxu0 0
        %559 = vmatmul.mubr.bf16.gmra.mxu0 %v472
        %v560 = vpop.f32.mrf.mxu0
        %v561 = vadd.f32 %v440, %v560
        %v562 = vpop.f32.mrf.mxu0
        %v563 = vadd.f32 %v444, %v562
        %v564 = vpop.f32.mrf.mxu0
        %v565 = vadd.f32 %v440, %v564
        %v566 = vpop.f32.mrf.mxu0
        %v567 = vadd.f32 %v444, %v566
        %568 = vmatprep.mubr.bf16.mxu0 0
        %569 = vmatmul.mubr.bf16.gmra.mxu0 %v475
        %v570 = vpop.f32.mrf.mxu0
        %v571 = vadd.f32 %v440, %v570
        %v572 = vpop.f32.mrf.mxu0
        %v573 = vadd.f32 %v444, %v572
        %v574 = vpop.f32.mrf.mxu0
        %v575 = vadd.f32 %v440, %v574
        %v576 = vpop.f32.mrf.mxu0
        %v577 = vadd.f32 %v444, %v576
        %578 = vmatprep.mubr.bf16.mxu0 0
        %579 = vmatmul.mubr.bf16.gmra.mxu0 %v478
        %v580 = vpop.f32.mrf.mxu0
        %v581 = vadd.f32 %v440, %v580
        %v582 = vpop.f32.mrf.mxu0
        %v583 = vadd.f32 %v444, %v582
        %v584 = vpop.f32.mrf.mxu0
        %v585 = vadd.f32 %v440, %v584
        %v586 = vpop.f32.mrf.mxu0
        %v587 = vadd.f32 %v444, %v586
        %588 = vmatprep.mubr.bf16.mxu0 0
        %589 = vmatmul.mubr.bf16.gmra.mxu0 %v481
        %v590 = vpop.f32.mrf.mxu0
        %v591 = vadd.f32 %v440, %v590
        %v592 = vpop.f32.mrf.mxu0
        %v593 = vadd.f32 %v444, %v592
        %v594 = vpop.f32.mrf.mxu0
        %v595 = vadd.f32 %v440, %v594
        %v596 = vpop.f32.mrf.mxu0
        %v597 = vadd.f32 %v444, %v596
        %598 = vmatprep.mubr.bf16.mxu0 0
        %599 = vmatmul.mubr.bf16.gmra.mxu0 %v484
        %v600 = vpop.f32.mrf.mxu0
        %v601 = vadd.f32 %v440, %v600
        %v602 = vpop.f32.mrf.mxu0
        %v603 = vadd.f32 %v444, %v602
        %v604 = vpop.f32.mrf.mxu0
        %v605 = vadd.f32 %v440, %v604
        %v606 = vpop.f32.mrf.mxu0
        %v607 = vadd.f32 %v444, %v606
        %608 = vmatprep.mubr.bf16.mxu0 0
        %609 = vmatmul.mubr.bf16.gmra.mxu0 %v487
        %v610 = vpop.f32.mrf.mxu0
        %v611 = vadd.f32 %v440, %v610
        %v612 = vpop.f32.mrf.mxu0
        %v613 = vadd.f32 %v444, %v612
        %v614 = vpop.f32.mrf.mxu0
        %v615 = vadd.f32 %v440, %v614
        %v616 = vpop.f32.mrf.mxu0
        %v617 = vadd.f32 %v444, %v616
        %618 = vmatprep.mubr.bf16.mxu0 0
        %619 = vmatmul.mubr.bf16.gmra.mxu0 %v490
        %v620 = vpop.f32.mrf.mxu0
        %v621 = vadd.f32 %v440, %v620
        %v622 = vpop.f32.mrf.mxu0
        %v623 = vadd.f32 %v444, %v622
        %v624 = vpop.f32.mrf.mxu0
        %v625 = vadd.f32 %v440, %v624
        %v626 = vpop.f32.mrf.mxu0
        %v627 = vadd.f32 %v444, %v626
        %628 = vmatprep.mubr.bf16.mxu0 0
        %629 = vmatmul.mubr.bf16.gmra.mxu0 %v493
        %v630 = vpop.f32.mrf.mxu0
        %v631 = vadd.f32 %v440, %v630
        %v632 = vpop.f32.mrf.mxu0
        %v633 = vadd.f32 %v444, %v632
        %v634 = vpop.f32.mrf.mxu0
        %v635 = vadd.f32 %v440, %v634
        %v636 = vpop.f32.mrf.mxu0
        %v637 = vadd.f32 %v444, %v636
        %638 = vmatprep.mubr.bf16.mxu0 0
        %639 = vmatmul.mubr.bf16.gmra.mxu0 %v496
        %v640 = vpop.f32.mrf.mxu0
        %v641 = vadd.f32 %v440, %v640
        %v642 = vpop.f32.mrf.mxu0
        %v643 = vadd.f32 %v444, %v642
        %v644 = vpop.f32.mrf.mxu0
        %v645 = vadd.f32 %v440, %v644
        %v646 = vpop.f32.mrf.mxu0
        %v647 = vadd.f32 %v444, %v646
        %648 = vmatprep.mubr.bf16.mxu0 0
        %649 = vmatmul.mubr.bf16.gmra.mxu0 %v499
        %v650 = vpop.f32.mrf.mxu0
        %v651 = vadd.f32 %v440, %v650
        %v652 = vpop.f32.mrf.mxu0
        %v653 = vadd.f32 %v444, %v652
        %v654 = vpop.f32.mrf.mxu0
        %v655 = vadd.f32 %v440, %v654
        %v656 = vpop.f32.mrf.mxu0
        %v657 = vadd.f32 %v444, %v656
        %658 = vmatprep.mubr.bf16.mxu0 0
        %659 = vmatmul.mubr.bf16.gmra.mxu0 %v502
        %v660 = vpop.f32.mrf.mxu0
        %v661 = vadd.f32 %v440, %v660
        %v662 = vpop.f32.mrf.mxu0
        %v663 = vadd.f32 %v444, %v662
        %v664 = vpop.f32.mrf.mxu0
        %v665 = vadd.f32 %v440, %v664
        %v666 = vpop.f32.mrf.mxu0
        %v667 = vadd.f32 %v444, %v666
        %668 = vmatprep.mubr.bf16.mxu0 0
        %669 = vmatmul.mubr.bf16.gmra.mxu0 %v505
        %v670 = vpop.f32.mrf.mxu0
        %v671 = vadd.f32 %v440, %v670
        %v672 = vpop.f32.mrf.mxu0
        %v673 = vadd.f32 %v444, %v672
        %v674 = vpop.f32.mrf.mxu0
        %v675 = vadd.f32 %v440, %v674
        %v676 = vpop.f32.mrf.mxu0
        %v677 = vadd.f32 %v444, %v676
        %678 = vmatprep.mubr.bf16.mxu0 0
        %679 = vmatmul.mubr.bf16.gmra.mxu0 %v508
        %v680 = vpop.f32.mrf.mxu0
        %v681 = vadd.f32 %v440, %v680
        %v682 = vpop.f32.mrf.mxu0
        %v683 = vadd.f32 %v444, %v682
        %v684 = vpop.f32.mrf.mxu0
        %v685 = vadd.f32 %v440, %v684
        %v686 = vpop.f32.mrf.mxu0
        %v687 = vadd.f32 %v444, %v686
        %688 = vmatprep.mubr.bf16.mxu0 0
        %689 = vmatmul.mubr.bf16.gmra.mxu0 %v511
        %v690 = vpop.f32.mrf.mxu0
        %v691 = vadd.f32 %v440, %v690
        %v692 = vpop.f32.mrf.mxu0
        %v693 = vadd.f32 %v444, %v692
        %v694 = vpop.f32.mrf.mxu0
        %v695 = vadd.f32 %v440, %v694
        %v696 = vpop.f32.mrf.mxu0
        %v697 = vadd.f32 %v444, %v696
        %698 = vmatprep.mubr.bf16.mxu0 0
        %699 = vmatmul.mubr.bf16.gmra.mxu0 %v514
        %v700 = vpop.f32.mrf.mxu0
        %v701 = vadd.f32 %v440, %v700
        %v702 = vpop.f32.mrf.mxu0
        %v703 = vadd.f32 %v444, %v702
        %v704 = vpop.f32.mrf.mxu0
        %v705 = vadd.f32 %v440, %v704
        %v706 = vpop.f32.mrf.mxu0
        %v707 = vadd.f32 %v444, %v706
        %708 = vdwg.mxu0
        %v709 = vmax.f32 %v551, 0.0
        %v710 = vmax.f32 %v553, 0.0
        %v711 = vmax.f32 %v555, 0.0
        %v712 = vmax.f32 %v557, 0.0
        %v713 = vmax.f32 %v561, 0.0
        %v714 = vmax.f32 %v563, 0.0
        %v715 = vmax.f32 %v565, 0.0
        %v716 = vmax.f32 %v567, 0.0
        %v717 = vmax.f32 %v571, 0.0
        %v718 = vmax.f32 %v573, 0.0
        %v719 = vmax.f32 %v575, 0.0
        %v720 = vmax.f32 %v577, 0.0
        %v721 = vmax.f32 %v581, 0.0
        %v722 = vmax.f32 %v583, 0.0
        %v723 = vmax.f32 %v585, 0.0
        %v724 = vmax.f32 %v587, 0.0
        %v725 = vmax.f32 %v591, 0.0
        %v726 = vmax.f32 %v593, 0.0
        %v727 = vmax.f32 %v595, 0.0
        %v728 = vmax.f32 %v597, 0.0
        %v729 = vmax.f32 %v601, 0.0
        %v730 = vmax.f32 %v603, 0.0
        %v731 = vmax.f32 %v605, 0.0
        %v732 = vmax.f32 %v607, 0.0
        %v733 = vmax.f32 %v611, 0.0
        %v734 = vmax.f32 %v613, 0.0
        %v735 = vmax.f32 %v615, 0.0
        %v736 = vmax.f32 %v617, 0.0
        %v737 = vmax.f32 %v621, 0.0
        %v738 = vmax.f32 %v623, 0.0
        %v739 = vmax.f32 %v625, 0.0
        %v740 = vmax.f32 %v627, 0.0
        %v741 = vmax.f32 %v631, 0.0
        %v742 = vmax.f32 %v633, 0.0
        %v743 = vmax.f32 %v635, 0.0
        %v744 = vmax.f32 %v637, 0.0
        %v745 = vmax.f32 %v641, 0.0
        %v746 = vmax.f32 %v643, 0.0
        %v747 = vmax.f32 %v645, 0.0
        %v748 = vmax.f32 %v647, 0.0
        %v749 = vmax.f32 %v651, 0.0
        %v750 = vmax.f32 %v653, 0.0
        %v751 = vmax.f32 %v655, 0.0
        %v752 = vmax.f32 %v657, 0.0
        %v753 = vmax.f32 %v661, 0.0
        %v754 = vmax.f32 %v663, 0.0
        %v755 = vmax.f32 %v665, 0.0
        %v756 = vmax.f32 %v667, 0.0
        %v757 = vmax.f32 %v671, 0.0
        %v758 = vmax.f32 %v673, 0.0
        %v759 = vmax.f32 %v675, 0.0
        %v760 = vmax.f32 %v677, 0.0
        %v761 = vmax.f32 %v681, 0.0
        %v762 = vmax.f32 %v683, 0.0
        %v763 = vmax.f32 %v685, 0.0
        %v764 = vmax.f32 %v687, 0.0
        %v765 = vmax.f32 %v691, 0.0
        %v766 = vmax.f32 %v693, 0.0
        %v767 = vmax.f32 %v695, 0.0
        %v768 = vmax.f32 %v697, 0.0
        %v769 = vmax.f32 %v701, 0.0
        %v770 = vmax.f32 %v703, 0.0
        %v771 = vmax.f32 %v705, 0.0
        %v772 = vmax.f32 %v707, 0.0
        %v773 = vmin.f32 %v709, 6.0
        %v774 = vmin.f32 %v710, 6.0
        %v775 = vmin.f32 %v711, 6.0
        %v776 = vmin.f32 %v712, 6.0
        %v777 = vmin.f32 %v713, 6.0
        %v778 = vmin.f32 %v714, 6.0
        %v779 = vmin.f32 %v715, 6.0
        %v780 = vmin.f32 %v716, 6.0
        %v781 = vmin.f32 %v717, 6.0
        %v782 = vmin.f32 %v718, 6.0
        %v783 = vmin.f32 %v719, 6.0
        %v784 = vmin.f32 %v720, 6.0
        %v785 = vmin.f32 %v721, 6.0
        %v786 = vmin.f32 %v722, 6.0
        %v787 = vmin.f32 %v723, 6.0
        %v788 = vmin.f32 %v724, 6.0
        %v789 = vmin.f32 %v725, 6.0
        %v790 = vmin.f32 %v726, 6.0
        %v791 = vmin.f32 %v727, 6.0
        %v792 = vmin.f32 %v728, 6.0
        %v793 = vmin.f32 %v729, 6.0
        %v794 = vmin.f32 %v730, 6.0
        %v795 = vmin.f32 %v731, 6.0
        %v796 = vmin.f32 %v732, 6.0
        %v797 = vmin.f32 %v733, 6.0
        %v798 = vmin.f32 %v734, 6.0
        %v799 = vmin.f32 %v735, 6.0
        %v800 = vmin.f32 %v736, 6.0
        %v801 = vmin.f32 %v737, 6.0
        %v802 = vmin.f32 %v738, 6.0
        %v803 = vmin.f32 %v739, 6.0
        %v804 = vmin.f32 %v740, 6.0
        %v805 = vmin.f32 %v741, 6.0
        %v806 = vmin.f32 %v742, 6.0
        %v807 = vmin.f32 %v743, 6.0
        %v808 = vmin.f32 %v744, 6.0
        %v809 = vmin.f32 %v745, 6.0
        %v810 = vmin.f32 %v746, 6.0
        %v811 = vmin.f32 %v747, 6.0
        %v812 = vmin.f32 %v748, 6.0
        %v813 = vmin.f32 %v749, 6.0
        %v814 = vmin.f32 %v750, 6.0
        %v815 = vmin.f32 %v751, 6.0
        %v816 = vmin.f32 %v752, 6.0
        %v817 = vmin.f32 %v753, 6.0
        %v818 = vmin.f32 %v754, 6.0
        %v819 = vmin.f32 %v755, 6.0
        %v820 = vmin.f32 %v756, 6.0
        %v821 = vmin.f32 %v757, 6.0
        %v822 = vmin.f32 %v758, 6.0
        %v823 = vmin.f32 %v759, 6.0
        %v824 = vmin.f32 %v760, 6.0
        %v825 = vmin.f32 %v761, 6.0
        %v826 = vmin.f32 %v762, 6.0
        %v827 = vmin.f32 %v763, 6.0
        %v828 = vmin.f32 %v764, 6.0
        %v829 = vmin.f32 %v765, 6.0
        %v830 = vmin.f32 %v766, 6.0
        %v831 = vmin.f32 %v767, 6.0
        %v832 = vmin.f32 %v768, 6.0
        %v833 = vmin.f32 %v769, 6.0
        %v834 = vmin.f32 %v770, 6.0
        %v835 = vmin.f32 %v771, 6.0
        %v836 = vmin.f32 %v772, 6.0
        %837 = vst [vmem:[#allocation2] sm:$0xff] 0.0
        %vm838 = vcmask 523264
        %839 = vst.msk [vmem:[#allocation2 + $0x8] sm:$0xff] %vm838, 0.0
        %840 = vst [vmem:[#allocation2 + $0x10] sm:$0xff] 0.0
        %841 = vst.msk [vmem:[#allocation2 + $0x18] sm:$0xff] %vm838, 0.0
        %842 = vst [vmem:[#allocation2 + $0x20] sm:$0x3] 0.0
        %vm843 = vcmask 517120
        %844 = vst.msk [vmem:[#allocation2 + $0x28] sm:$0x3] %vm843, 0.0
        %s845 = scalar_lea.vmem [#allocation2], 816
        %846 = vst [vmem:[%s845] sm:$0xff] 0.0
        %847 = vst.msk [vmem:[%s845 + $0x8] sm:$0xff] %vm838, 0.0
        %848 = vst [vmem:[%s845 + $0x10] sm:$0xff] 0.0
        %849 = vst.msk [vmem:[%s845 + $0x18] sm:$0xff] %vm838, 0.0
        %850 = vst [vmem:[%s845 + $0x20] sm:$0x3] 0.0
        %851 = vst.msk [vmem:[%s845 + $0x28] sm:$0x3] %vm843, 0.0
        %s852 = scalar_lea.vmem [#allocation2], 48
        %v853 = vlaneseq
        %vm854 = vcmp.ge.s32.totalorder %v853, 0
        %vm855 = vcmp.lt.s32.totalorder %v853, 192
        %vm856 = vmand %vm854, %vm855
        %857 = vst.msk [vmem:[%s852] ss:$8 sm:$0x3] %vm856, 0.0
        %858 = vst.msk [vmem:[%s852] ss:$8 sm:$0x0] %vm856, 0.0
        %s859 = scalar_lea.vmem %s852, 48 [#allocation2]
        %860 = vst.msk [vmem:[%s859] ss:$8 sm:$0x3] %vm856, 0.0
        %861 = vst.msk [vmem:[%s859] ss:$8 sm:$0x0] %vm856, 0.0
        %s862 = scalar_lea.vmem %s852, 96 [#allocation2]
        %863 = vst.msk [vmem:[%s862] ss:$8 sm:$0x3] %vm856, 0.0
        %864 = vst.msk [vmem:[%s862] ss:$8 sm:$0x0] %vm856, 0.0
        %s865 = scalar_lea.vmem %s852, 144 [#allocation2]
        %866 = vst.msk [vmem:[%s865] ss:$8 sm:$0x3] %vm856, 0.0
        %867 = vst.msk [vmem:[%s865] ss:$8 sm:$0x0] %vm856, 0.0
        %s868 = scalar_lea.vmem %s852, 192 [#allocation2]
        %869 = vst.msk [vmem:[%s868] ss:$8 sm:$0x3] %vm856, 0.0
        %870 = vst.msk [vmem:[%s868] ss:$8 sm:$0x0] %vm856, 0.0
        %s871 = scalar_lea.vmem %s852, 240 [#allocation2]
        %872 = vst.msk [vmem:[%s871] ss:$8 sm:$0x3] %vm856, 0.0
        %873 = vst.msk [vmem:[%s871] ss:$8 sm:$0x0] %vm856, 0.0
        %s874 = scalar_lea.vmem %s852, 288 [#allocation2]
        %875 = vst.msk [vmem:[%s874] ss:$8 sm:$0x3] %vm856, 0.0
        %876 = vst.msk [vmem:[%s874] ss:$8 sm:$0x0] %vm856, 0.0
        %s877 = scalar_lea.vmem %s852, 336 [#allocation2]
        %878 = vst.msk [vmem:[%s877] ss:$8 sm:$0x3] %vm856, 0.0
        %879 = vst.msk [vmem:[%s877] ss:$8 sm:$0x0] %vm856, 0.0
        %s880 = scalar_lea.vmem %s852, 384 [#allocation2]
        %881 = vst.msk [vmem:[%s880] ss:$8 sm:$0x3] %vm856, 0.0
        %882 = vst.msk [vmem:[%s880] ss:$8 sm:$0x0] %vm856, 0.0
        %s883 = scalar_lea.vmem %s852, 432 [#allocation2]
        %884 = vst.msk [vmem:[%s883] ss:$8 sm:$0x3] %vm856, 0.0
        %885 = vst.msk [vmem:[%s883] ss:$8 sm:$0x0] %vm856, 0.0
        %s886 = scalar_lea.vmem %s852, 480 [#allocation2]
        %887 = vst.msk [vmem:[%s886] ss:$8 sm:$0x3] %vm856, 0.0
        %888 = vst.msk [vmem:[%s886] ss:$8 sm:$0x0] %vm856, 0.0
        %s889 = scalar_lea.vmem %s852, 528 [#allocation2]
        %890 = vst.msk [vmem:[%s889] ss:$8 sm:$0x3] %vm856, 0.0
        %891 = vst.msk [vmem:[%s889] ss:$8 sm:$0x0] %vm856, 0.0
        %s892 = scalar_lea.vmem %s852, 576 [#allocation2]
        %893 = vst.msk [vmem:[%s892] ss:$8 sm:$0x3] %vm856, 0.0
        %894 = vst.msk [vmem:[%s892] ss:$8 sm:$0x0] %vm856, 0.0
        %s895 = scalar_lea.vmem %s852, 624 [#allocation2]
        %896 = vst.msk [vmem:[%s895] ss:$8 sm:$0x3] %vm856, 0.0
        %897 = vst.msk [vmem:[%s895] ss:$8 sm:$0x0] %vm856, 0.0
        %s898 = scalar_lea.vmem %s852, 672 [#allocation2]
        %899 = vst.msk [vmem:[%s898] ss:$8 sm:$0x3] %vm856, 0.0
        %900 = vst.msk [vmem:[%s898] ss:$8 sm:$0x0] %vm856, 0.0
        %s901 = scalar_lea.vmem %s852, 720 [#allocation2]
        %902 = vst.msk [vmem:[%s901] ss:$8 sm:$0x3] %vm856, 0.0
        %903 = vst.msk [vmem:[%s901] ss:$8 sm:$0x0] %vm856, 0.0
        %s904 = scalar_lea.vmem %s852, 33 [#allocation2]
        %905 = vst.msk [vmem:[%s904] ss:$8 sm:$0x3] %vm856, 0.0
        %906 = vst.msk [vmem:[%s904] ss:$8 sm:$0x0] %vm856, 0.0
        %s907 = scalar_lea.vmem %s852, 81 [#allocation2]
        %908 = vst.msk [vmem:[%s907] ss:$8 sm:$0x3] %vm856, 0.0
        %909 = vst.msk [vmem:[%s907] ss:$8 sm:$0x0] %vm856, 0.0
        %s910 = scalar_lea.vmem %s852, 129 [#allocation2]
        %911 = vst.msk [vmem:[%s910] ss:$8 sm:$0x3] %vm856, 0.0
        %912 = vst.msk [vmem:[%s910] ss:$8 sm:$0x0] %vm856, 0.0
        %s913 = scalar_lea.vmem %s852, 177 [#allocation2]
        %914 = vst.msk [vmem:[%s913] ss:$8 sm:$0x3] %vm856, 0.0
        %915 = vst.msk [vmem:[%s913] ss:$8 sm:$0x0] %vm856, 0.0
        %s916 = scalar_lea.vmem %s852, 225 [#allocation2]
        %917 = vst.msk [vmem:[%s916] ss:$8 sm:$0x3] %vm856, 0.0
        %918 = vst.msk [vmem:[%s916] ss:$8 sm:$0x0] %vm856, 0.0
        %s919 = scalar_lea.vmem %s852, 273 [#allocation2]
        %920 = vst.msk [vmem:[%s919] ss:$8 sm:$0x3] %vm856, 0.0
        %921 = vst.msk [vmem:[%s919] ss:$8 sm:$0x0] %vm856, 0.0
        %s922 = scalar_lea.vmem %s852, 321 [#allocation2]
        %923 = vst.msk [vmem:[%s922] ss:$8 sm:$0x3] %vm856, 0.0
        %924 = vst.msk [vmem:[%s922] ss:$8 sm:$0x0] %vm856, 0.0
        %s925 = scalar_lea.vmem %s852, 369 [#allocation2]
        %926 = vst.msk [vmem:[%s925] ss:$8 sm:$0x3] %vm856, 0.0
        %927 = vst.msk [vmem:[%s925] ss:$8 sm:$0x0] %vm856, 0.0
        %s928 = scalar_lea.vmem %s852, 417 [#allocation2]
        %929 = vst.msk [vmem:[%s928] ss:$8 sm:$0x3] %vm856, 0.0
        %930 = vst.msk [vmem:[%s928] ss:$8 sm:$0x0] %vm856, 0.0
        %s931 = scalar_lea.vmem %s852, 465 [#allocation2]
        %932 = vst.msk [vmem:[%s931] ss:$8 sm:$0x3] %vm856, 0.0
        %933 = vst.msk [vmem:[%s931] ss:$8 sm:$0x0] %vm856, 0.0
        %s934 = scalar_lea.vmem %s852, 513 [#allocation2]
        %935 = vst.msk [vmem:[%s934] ss:$8 sm:$0x3] %vm856, 0.0
        %936 = vst.msk [vmem:[%s934] ss:$8 sm:$0x0] %vm856, 0.0
        %s937 = scalar_lea.vmem %s852, 561 [#allocation2]
        %938 = vst.msk [vmem:[%s937] ss:$8 sm:$0x3] %vm856, 0.0
        %939 = vst.msk [vmem:[%s937] ss:$8 sm:$0x0] %vm856, 0.0
        %s940 = scalar_lea.vmem %s852, 609 [#allocation2]
        %941 = vst.msk [vmem:[%s940] ss:$8 sm:$0x3] %vm856, 0.0
        %942 = vst.msk [vmem:[%s940] ss:$8 sm:$0x0] %vm856, 0.0
        %s943 = scalar_lea.vmem %s852, 657 [#allocation2]
        %944 = vst.msk [vmem:[%s943] ss:$8 sm:$0x3] %vm856, 0.0
        %945 = vst.msk [vmem:[%s943] ss:$8 sm:$0x0] %vm856, 0.0
        %s946 = scalar_lea.vmem %s852, 705 [#allocation2]
        %947 = vst.msk [vmem:[%s946] ss:$8 sm:$0x3] %vm856, 0.0
        %948 = vst.msk [vmem:[%s946] ss:$8 sm:$0x0] %vm856, 0.0
        %s949 = scalar_lea.vmem %s852, 753 [#allocation2]
        %950 = vst.msk [vmem:[%s949] ss:$8 sm:$0x3] %vm856, 0.0
        %951 = vst.msk [vmem:[%s949] ss:$8 sm:$0x0] %vm856, 0.0
        %vm1016 = vcmask 1040384
        %v1017 = vrot.slane %v773, 7
        %v1018 = vrot.slane %v774, 7
        %v1019 = vrot.slane %v775, 7
        %v1020 = vsel %vm1016, %v1017, %v1019
        %v1021 = vrot.slane %v776, 7
        %v1022 = vsel %vm1016, %v1018, %v1021
        %v1023 = vrot.slane %v777, 7
        %v1024 = vrot.slane %v778, 7
        %v1025 = vrot.slane %v779, 7
        %v1026 = vsel %vm1016, %v1023, %v1025
        %v1027 = vrot.slane %v780, 7
        %v1028 = vsel %vm1016, %v1024, %v1027
        %v1029 = vrot.slane %v781, 7
        %v1030 = vrot.slane %v782, 7
        %v1031 = vrot.slane %v783, 7
        %v1032 = vsel %vm1016, %v1029, %v1031
        %v1033 = vrot.slane %v784, 7
        %v1034 = vsel %vm1016, %v1030, %v1033
        %v1035 = vrot.slane %v785, 7
        %v1036 = vrot.slane %v786, 7
        %v1037 = vrot.slane %v787, 7
        %v1038 = vsel %vm1016, %v1035, %v1037
        %v1039 = vrot.slane %v788, 7
        %v1040 = vsel %vm1016, %v1036, %v1039
        %v1041 = vrot.slane %v789, 7
        %v1042 = vrot.slane %v790, 7
        %v1043 = vrot.slane %v791, 7
        %v1044 = vsel %vm1016, %v1041, %v1043
        %v1045 = vrot.slane %v792, 7
        %v1046 = vsel %vm1016, %v1042, %v1045
        %v1047 = vrot.slane %v793, 7
        %v1048 = vrot.slane %v794, 7
        %v1049 = vrot.slane %v795, 7
        %v1050 = vsel %vm1016, %v1047, %v1049
        %v1051 = vrot.slane %v796, 7
        %v1052 = vsel %vm1016, %v1048, %v1051
        %v1053 = vrot.slane %v797, 7
        %v1054 = vrot.slane %v798, 7
        %v1055 = vrot.slane %v799, 7
        %v1056 = vsel %vm1016, %v1053, %v1055
        %v1057 = vrot.slane %v800, 7
        %v1058 = vsel %vm1016, %v1054, %v1057
        %v1059 = vrot.slane %v801, 7
        %v1060 = vrot.slane %v802, 7
        %v1061 = vrot.slane %v803, 7
        %v1062 = vsel %vm1016, %v1059, %v1061
        %v1063 = vrot.slane %v804, 7
        %v1064 = vsel %vm1016, %v1060, %v1063
        %v1065 = vrot.slane %v805, 7
        %v1066 = vrot.slane %v806, 7
        %v1067 = vrot.slane %v807, 7
        %v1068 = vsel %vm1016, %v1065, %v1067
        %v1069 = vrot.slane %v808, 7
        %v1070 = vsel %vm1016, %v1066, %v1069
        %v1071 = vrot.slane %v809, 7
        %v1072 = vrot.slane %v810, 7
        %v1073 = vrot.slane %v811, 7
        %v1074 = vsel %vm1016, %v1071, %v1073
        %v1075 = vrot.slane %v812, 7
        %v1076 = vsel %vm1016, %v1072, %v1075
        %v1077 = vrot.slane %v813, 7
        %v1078 = vrot.slane %v814, 7
        %v1079 = vrot.slane %v815, 7
        %v1080 = vsel %vm1016, %v1077, %v1079
        %v1081 = vrot.slane %v816, 7
        %v1082 = vsel %vm1016, %v1078, %v1081
        %v1083 = vrot.slane %v817, 7
        %v1084 = vrot.slane %v818, 7
        %v1085 = vrot.slane %v819, 7
        %v1086 = vsel %vm1016, %v1083, %v1085
        %v1087 = vrot.slane %v820, 7
        %v1088 = vsel %vm1016, %v1084, %v1087
        %v1089 = vrot.slane %v821, 7
        %v1090 = vrot.slane %v822, 7
        %v1091 = vrot.slane %v823, 7
        %v1092 = vsel %vm1016, %v1089, %v1091
        %v1093 = vrot.slane %v824, 7
        %v1094 = vsel %vm1016, %v1090, %v1093
        %v1095 = vrot.slane %v825, 7
        %v1096 = vrot.slane %v826, 7
        %v1097 = vrot.slane %v827, 7
        %v1098 = vsel %vm1016, %v1095, %v1097
        %v1099 = vrot.slane %v828, 7
        %v1100 = vsel %vm1016, %v1096, %v1099
        %v1101 = vrot.slane %v829, 7
        %v1102 = vrot.slane %v830, 7
        %v1103 = vrot.slane %v831, 7
        %v1104 = vsel %vm1016, %v1101, %v1103
        %v1105 = vrot.slane %v832, 7
        %v1106 = vsel %vm1016, %v1102, %v1105
        %v1107 = vrot.slane %v833, 7
        %v1108 = vrot.slane %v834, 7
        %v1109 = vrot.slane %v835, 7
        %v1110 = vsel %vm1016, %v1107, %v1109
        %v1111 = vrot.slane %v836, 7
        %v1112 = vsel %vm1016, %v1108, %v1111
        %1209 = vst [vmem:[%s852] sm:$0xfe] %v1017
        %vm1210 = vcmask 523265
        %1211 = vst.msk [vmem:[%s852 + $0x8] sm:$0xfe] %vm1210, %v1018
        %1212 = vst [vmem:[%s852 + $0x10] sm:$0xff] %v1020
        %1213 = vst.msk [vmem:[%s852 + $0x18] sm:$0xff] %vm838, %v1022
        %1214 = vst [vmem:[%s852 + $0x20] sm:$0x1] %v1019
        %vm1215 = vcmask 516096
        %1216 = vst.msk [vmem:[%s852 + $0x28] sm:$0x1] %vm1215, %v1021
        %1217 = vst [vmem:[%s852 + $0x30] sm:$0xfe] %v1023
        %1218 = vst.msk [vmem:[%s852 + $0x38] sm:$0xfe] %vm1210, %v1024
        %1219 = vst [vmem:[%s852 + $0x40] sm:$0xff] %v1026
        %1220 = vst.msk [vmem:[%s852 + $0x48] sm:$0xff] %vm838, %v1028
        %1221 = vst [vmem:[%s852 + $0x50] sm:$0x1] %v1025
        %1222 = vst.msk [vmem:[%s852 + $0x58] sm:$0x1] %vm1215, %v1027
        %1223 = vst [vmem:[%s852 + $0x60] sm:$0xfe] %v1029
        %1224 = vst.msk [vmem:[%s852 + $0x68] sm:$0xfe] %vm1210, %v1030
        %1225 = vst [vmem:[%s852 + $0x70] sm:$0xff] %v1032
        %1226 = vst.msk [vmem:[%s852 + $0x78] sm:$0xff] %vm838, %v1034
        %1227 = vst [vmem:[%s852 + $0x80] sm:$0x1] %v1031
        %1228 = vst.msk [vmem:[%s852 + $0x88] sm:$0x1] %vm1215, %v1033
        %1229 = vst [vmem:[%s852 + $0x90] sm:$0xfe] %v1035
        %1230 = vst.msk [vmem:[%s852 + $0x98] sm:$0xfe] %vm1210, %v1036
        %1231 = vst [vmem:[%s852 + $0xa0] sm:$0xff] %v1038
        %1232 = vst.msk [vmem:[%s852 + $0xa8] sm:$0xff] %vm838, %v1040
        %1233 = vst [vmem:[%s852 + $0xb0] sm:$0x1] %v1037
        %1234 = vst.msk [vmem:[%s852 + $0xb8] sm:$0x1] %vm1215, %v1039
        %1235 = vst [vmem:[%s852 + $0xc0] sm:$0xfe] %v1041
        %1236 = vst.msk [vmem:[%s852 + $0xc8] sm:$0xfe] %vm1210, %v1042
        %1237 = vst [vmem:[%s852 + $0xd0] sm:$0xff] %v1044
        %1238 = vst.msk [vmem:[%s852 + $0xd8] sm:$0xff] %vm838, %v1046
        %1239 = vst [vmem:[%s852 + $0xe0] sm:$0x1] %v1043
        %1240 = vst.msk [vmem:[%s852 + $0xe8] sm:$0x1] %vm1215, %v1045
        %1241 = vst [vmem:[%s852 + $0xf0] sm:$0xfe] %v1047
        %1242 = vst.msk [vmem:[%s852 + $0xf8] sm:$0xfe] %vm1210, %v1048
        %1243 = vst [vmem:[%s852 + $0x100] sm:$0xff] %v1050
        %1244 = vst.msk [vmem:[%s852 + $0x108] sm:$0xff] %vm838, %v1052
        %1245 = vst [vmem:[%s852 + $0x110] sm:$0x1] %v1049
        %1246 = vst.msk [vmem:[%s852 + $0x118] sm:$0x1] %vm1215, %v1051
        %1247 = vst [vmem:[%s852 + $0x120] sm:$0xfe] %v1053
        %1248 = vst.msk [vmem:[%s852 + $0x128] sm:$0xfe] %vm1210, %v1054
        %1249 = vst [vmem:[%s852 + $0x130] sm:$0xff] %v1056
        %1250 = vst.msk [vmem:[%s852 + $0x138] sm:$0xff] %vm838, %v1058
        %1251 = vst [vmem:[%s852 + $0x140] sm:$0x1] %v1055
        %1252 = vst.msk [vmem:[%s852 + $0x148] sm:$0x1] %vm1215, %v1057
        %1253 = vst [vmem:[%s852 + $0x150] sm:$0xfe] %v1059
        %1254 = vst.msk [vmem:[%s852 + $0x158] sm:$0xfe] %vm1210, %v1060
        %1255 = vst [vmem:[%s852 + $0x160] sm:$0xff] %v1062
        %1256 = vst.msk [vmem:[%s852 + $0x168] sm:$0xff] %vm838, %v1064
        %1257 = vst [vmem:[%s852 + $0x170] sm:$0x1] %v1061
        %1258 = vst.msk [vmem:[%s852 + $0x178] sm:$0x1] %vm1215, %v1063
        %1259 = vst [vmem:[%s852 + $0x180] sm:$0xfe] %v1065
        %1260 = vst.msk [vmem:[%s852 + $0x188] sm:$0xfe] %vm1210, %v1066
        %1261 = vst [vmem:[%s852 + $0x190] sm:$0xff] %v1068
        %1262 = vst.msk [vmem:[%s852 + $0x198] sm:$0xff] %vm838, %v1070
        %1263 = vst [vmem:[%s852 + $0x1a0] sm:$0x1] %v1067
        %1264 = vst.msk [vmem:[%s852 + $0x1a8] sm:$0x1] %vm1215, %v1069
        %1265 = vst [vmem:[%s852 + $0x1b0] sm:$0xfe] %v1071
        %1266 = vst.msk [vmem:[%s852 + $0x1b8] sm:$0xfe] %vm1210, %v1072
        %1267 = vst [vmem:[%s852 + $0x1c0] sm:$0xff] %v1074
        %1268 = vst.msk [vmem:[%s852 + $0x1c8] sm:$0xff] %vm838, %v1076
        %1269 = vst [vmem:[%s852 + $0x1d0] sm:$0x1] %v1073
        %1270 = vst.msk [vmem:[%s852 + $0x1d8] sm:$0x1] %vm1215, %v1075
        %1271 = vst [vmem:[%s852 + $0x1e0] sm:$0xfe] %v1077
        %1272 = vst.msk [vmem:[%s852 + $0x1e8] sm:$0xfe] %vm1210, %v1078
        %1273 = vst [vmem:[%s852 + $0x1f0] sm:$0xff] %v1080
        %1274 = vst.msk [vmem:[%s852 + $0x1f8] sm:$0xff] %vm838, %v1082
        %1275 = vst [vmem:[%s852 + $0x200] sm:$0x1] %v1079
        %1276 = vst.msk [vmem:[%s852 + $0x208] sm:$0x1] %vm1215, %v1081
        %1277 = vst [vmem:[%s852 + $0x210] sm:$0xfe] %v1083
        %1278 = vst.msk [vmem:[%s852 + $0x218] sm:$0xfe] %vm1210, %v1084
        %1279 = vst [vmem:[%s852 + $0x220] sm:$0xff] %v1086
        %1280 = vst.msk [vmem:[%s852 + $0x228] sm:$0xff] %vm838, %v1088
        %1281 = vst [vmem:[%s852 + $0x230] sm:$0x1] %v1085
        %1282 = vst.msk [vmem:[%s852 + $0x238] sm:$0x1] %vm1215, %v1087
        %1283 = vst [vmem:[%s852 + $0x240] sm:$0xfe] %v1089
        %1284 = vst.msk [vmem:[%s852 + $0x248] sm:$0xfe] %vm1210, %v1090
        %1285 = vst [vmem:[%s852 + $0x250] sm:$0xff] %v1092
        %1286 = vst.msk [vmem:[%s852 + $0x258] sm:$0xff] %vm838, %v1094
        %1287 = vst [vmem:[%s852 + $0x260] sm:$0x1] %v1091
        %1288 = vst.msk [vmem:[%s852 + $0x268] sm:$0x1] %vm1215, %v1093
        %1289 = vst [vmem:[%s852 + $0x270] sm:$0xfe] %v1095
        %1290 = vst.msk [vmem:[%s852 + $0x278] sm:$0xfe] %vm1210, %v1096
        %1291 = vst [vmem:[%s852 + $0x280] sm:$0xff] %v1098
        %1292 = vst.msk [vmem:[%s852 + $0x288] sm:$0xff] %vm838, %v1100
        %1293 = vst [vmem:[%s852 + $0x290] sm:$0x1] %v1097
        %1294 = vst.msk [vmem:[%s852 + $0x298] sm:$0x1] %vm1215, %v1099
        %1295 = vst [vmem:[%s852 + $0x2a0] sm:$0xfe] %v1101
        %1296 = vst.msk [vmem:[%s852 + $0x2a8] sm:$0xfe] %vm1210, %v1102
        %1297 = vst [vmem:[%s852 + $0x2b0] sm:$0xff] %v1104
        %1298 = vst.msk [vmem:[%s852 + $0x2b8] sm:$0xff] %vm838, %v1106
        %1299 = vst [vmem:[%s852 + $0x2c0] sm:$0x1] %v1103
        %1300 = vst.msk [vmem:[%s852 + $0x2c8] sm:$0x1] %vm1215, %v1105
        %1301 = vst [vmem:[%s852 + $0x2d0] sm:$0xfe] %v1107
        %1302 = vst.msk [vmem:[%s852 + $0x2d8] sm:$0xfe] %vm1210, %v1108
        %1303 = vst [vmem:[%s852 + $0x2e0] sm:$0xff] %v1110
        %1304 = vst.msk [vmem:[%s852 + $0x2e8] sm:$0xff] %vm838, %v1112
        %1305 = vst [vmem:[%s852 + $0x2f0] sm:$0x1] %v1109
        %1306 = vst.msk [vmem:[%s852 + $0x2f8] sm:$0x1] %vm1215, %v1111
        %v1307 = vld [vmem:[#allocation9] sm:$0xff]
        %v1308 = vld [vmem:[#allocation9 + $0x8] sm:$0xff]
        %v1309 = vld [vmem:[#allocation9 + $0x10] sm:$0x1]
        %v1310 = vld [vmem:[#allocation9 + $0x18] sm:$0x1]
        %v1311 = vld [vmem:[%s4] sm:$0x3]
        %v1312 = vld [vmem:[#allocation2] sm:$0xff]
        %v1313 = vld [vmem:[#allocation2 + $0x8] sm:$0xff]
        %v1314 = vld [vmem:[#allocation2 + $0x10] sm:$0xff]
        %v1315 = vld [vmem:[#allocation2 + $0x18] sm:$0xff]
        %v1316 = vld [vmem:[#allocation2 + $0x30] sm:$0xff]
        %v1317 = vld [vmem:[#allocation2 + $0x38] sm:$0xff]
        %v1318 = vld [vmem:[#allocation2 + $0x40] sm:$0xff]
        %v1319 = vld [vmem:[#allocation2 + $0x48] sm:$0xff]
        %v1320 = vld [vmem:[#allocation2 + $0x60] sm:$0xff]
        %v1321 = vld [vmem:[#allocation2 + $0x68] sm:$0xff]
        %v1322 = vld [vmem:[#allocation2 + $0x70] sm:$0xff]
        %v1323 = vld [vmem:[#allocation2 + $0x78] sm:$0xff]
        %v1324 = vld [vmem:[#allocation2 + $0x90] sm:$0xff]
        %v1325 = vld [vmem:[#allocation2 + $0x98] sm:$0xff]
        %v1326 = vld [vmem:[#allocation2 + $0xa0] sm:$0xff]
        %v1327 = vld [vmem:[#allocation2 + $0xa8] sm:$0xff]
        %v1328 = vlaneseq
        %v1329 = vshrl.u32 %v1328, 7
        %v1330 = vsub.s32 0, %v1329
        %v1331 = vrot.slane %v1307, %v1330
        %v1332 = vlaneseq
        %v1333 = vshrl.u32 %v1332, 7
        %v1334 = vsub.s32 0, %v1333
        %v1335 = vrot.slane %v1308, %v1334
        %v1336 = vmul.f32 %v1312, %v1331
        %v1337 = vmul.f32 %v1313, %v1335
        %v1338 = vmul.f32 %v1314, %v1331
        %v1339 = vmul.f32 %v1315, %v1335
        %v1340 = vmul.f32 %v1316, %v1331
        %v1341 = vmul.f32 %v1317, %v1335
        %v1342 = vmul.f32 %v1318, %v1331
        %v1343 = vmul.f32 %v1319, %v1335
        %v1344 = vmul.f32 %v1320, %v1331
        %v1345 = vmul.f32 %v1321, %v1335
        %v1346 = vmul.f32 %v1322, %v1331
        %v1347 = vmul.f32 %v1323, %v1335
        %v1348 = vmul.f32 %v1324, %v1331
        %v1349 = vmul.f32 %v1325, %v1335
        %v1350 = vmul.f32 %v1326, %v1331
        %v1351 = vmul.f32 %v1327, %v1335
        %v1352 = vld [vmem:[#allocation2] sm:$0xfe]
        %v1353 = vld [vmem:[#allocation2 + $0x8] sm:$0xfe]
        %v1354 = vld [vmem:[#allocation2 + $0x20] sm:$0x1]
        %v1355 = vld [vmem:[#allocation2 + $0x28] sm:$0x1]
        %v1356 = vld [vmem:[#allocation2 + $0x30] sm:$0xfe]
        %v1357 = vld [vmem:[#allocation2 + $0x38] sm:$0xfe]
        %v1358 = vld [vmem:[#allocation2 + $0x50] sm:$0x1]
        %v1359 = vld [vmem:[#allocation2 + $0x58] sm:$0x1]
        %v1360 = vld [vmem:[#allocation2 + $0x60] sm:$0xfe]
        %v1361 = vld [vmem:[#allocation2 + $0x68] sm:$0xfe]
        %v1362 = vld [vmem:[#allocation2 + $0x80] sm:$0x1]
        %v1363 = vld [vmem:[#allocation2 + $0x88] sm:$0x1]
        %v1364 = vld [vmem:[#allocation2 + $0x90] sm:$0xfe]
        %v1365 = vld [vmem:[#allocation2 + $0x98] sm:$0xfe]
        %v1366 = vld [vmem:[#allocation2 + $0xb0] sm:$0x1]
        %v1367 = vld [vmem:[#allocation2 + $0xb8] sm:$0x1]
        %v1368 = vlaneseq
        %v1369 = vshrl.u32 %v1368, 7
        %v1370 = vsub.s32 1, %v1369
        %v1371 = vrot.slane %v1307, %v1370
        %v1372 = vlaneseq
        %v1373 = vshrl.u32 %v1372, 7
        %v1374 = vsub.s32 1, %v1373
        %v1375 = vrot.slane %v1308, %v1374
        %v1376 = vmul.f32 %v1352, %v1371
        %v1377 = vmul.f32 %v1353, %v1375
        %v1378 = vmul.f32 %v1314, %v1371
        %v1379 = vmul.f32 %v1315, %v1375
        %v1380 = vmul.f32 %v1354, %v1371
        %v1381 = vmul.f32 %v1355, %v1375
        %v1382 = vmul.f32 %v1356, %v1371
        %v1383 = vmul.f32 %v1357, %v1375
        %v1384 = vmul.f32 %v1318, %v1371
        %v1385 = vmul.f32 %v1319, %v1375
        %v1386 = vmul.f32 %v1358, %v1371
        %v1387 = vmul.f32 %v1359, %v1375
        %v1388 = vmul.f32 %v1360, %v1371
        %v1389 = vmul.f32 %v1361, %v1375
        %v1390 = vmul.f32 %v1322, %v1371
        %v1391 = vmul.f32 %v1323, %v1375
        %v1392 = vmul.f32 %v1362, %v1371
        %v1393 = vmul.f32 %v1363, %v1375
        %v1394 = vmul.f32 %v1364, %v1371
        %v1395 = vmul.f32 %v1365, %v1375
        %v1396 = vmul.f32 %v1326, %v1371
        %v1397 = vmul.f32 %v1327, %v1375
        %v1398 = vmul.f32 %v1366, %v1371
        %v1399 = vmul.f32 %v1367, %v1375
        %vm1424 = vcmask 1046528
        %v1425 = vrot.slane %v1376, 1
        %v1426 = vrot.slane %v1378, 1
        %v1427 = vsel %vm1424, %v1425, %v1426
        %v1428 = vrot.slane %v1377, 1
        %v1429 = vrot.slane %v1379, 1
        %v1430 = vsel %vm1424, %v1428, %v1429
        %v1431 = vrot.slane %v1380, 1
        %v1432 = vsel %vm1424, %v1426, %v1431
        %v1433 = vrot.slane %v1381, 1
        %v1434 = vsel %vm1424, %v1429, %v1433
        %v1435 = vrot.slane %v1382, 1
        %v1436 = vrot.slane %v1384, 1
        %v1437 = vsel %vm1424, %v1435, %v1436
        %v1438 = vrot.slane %v1383, 1
        %v1439 = vrot.slane %v1385, 1
        %v1440 = vsel %vm1424, %v1438, %v1439
        %v1441 = vrot.slane %v1386, 1
        %v1442 = vsel %vm1424, %v1436, %v1441
        %v1443 = vrot.slane %v1387, 1
        %v1444 = vsel %vm1424, %v1439, %v1443
        %v1445 = vrot.slane %v1388, 1
        %v1446 = vrot.slane %v1390, 1
        %v1447 = vsel %vm1424, %v1445, %v1446
        %v1448 = vrot.slane %v1389, 1
        %v1449 = vrot.slane %v1391, 1
        %v1450 = vsel %vm1424, %v1448, %v1449
        %v1451 = vrot.slane %v1392, 1
        %v1452 = vsel %vm1424, %v1446, %v1451
        %v1453 = vrot.slane %v1393, 1
        %v1454 = vsel %vm1424, %v1449, %v1453
        %v1455 = vrot.slane %v1394, 1
        %v1456 = vrot.slane %v1396, 1
        %v1457 = vsel %vm1424, %v1455, %v1456
        %v1458 = vrot.slane %v1395, 1
        %v1459 = vrot.slane %v1397, 1
        %v1460 = vsel %vm1424, %v1458, %v1459
        %v1461 = vrot.slane %v1398, 1
        %v1462 = vsel %vm1424, %v1456, %v1461
        %v1463 = vrot.slane %v1399, 1
        %v1464 = vsel %vm1424, %v1459, %v1463
        %v1481 = vadd.f32 %v1336, %v1427
        %v1482 = vadd.f32 %v1337, %v1430
        %v1483 = vadd.f32 %v1338, %v1432
        %v1484 = vadd.f32 %v1339, %v1434
        %v1485 = vadd.f32 %v1340, %v1437
        %v1486 = vadd.f32 %v1341, %v1440
        %v1487 = vadd.f32 %v1342, %v1442
        %v1488 = vadd.f32 %v1343, %v1444
        %v1489 = vadd.f32 %v1344, %v1447
        %v1490 = vadd.f32 %v1345, %v1450
        %v1491 = vadd.f32 %v1346, %v1452
        %v1492 = vadd.f32 %v1347, %v1454
        %v1493 = vadd.f32 %v1348, %v1457
        %v1494 = vadd.f32 %v1349, %v1460
        %v1495 = vadd.f32 %v1350, %v1462
        %v1496 = vadd.f32 %v1351, %v1464
        %v1497 = vld [vmem:[#allocation2] sm:$0xfc]
        %v1498 = vld [vmem:[#allocation2 + $0x8] sm:$0xfc]
        %v1499 = vld [vmem:[#allocation2 + $0x20] sm:$0x3]
        %v1500 = vld [vmem:[#allocation2 + $0x28] sm:$0x3]
        %v1501 = vld [vmem:[#allocation2 + $0x30] sm:$0xfc]
        %v1502 = vld [vmem:[#allocation2 + $0x38] sm:$0xfc]
        %v1503 = vld [vmem:[#allocation2 + $0x50] sm:$0x3]
        %v1504 = vld [vmem:[#allocation2 + $0x58] sm:$0x3]
        %v1505 = vld [vmem:[#allocation2 + $0x60] sm:$0xfc]
        %v1506 = vld [vmem:[#allocation2 + $0x68] sm:$0xfc]
        %v1507 = vld [vmem:[#allocation2 + $0x80] sm:$0x3]
        %v1508 = vld [vmem:[#allocation2 + $0x88] sm:$0x3]
        %v1509 = vld [vmem:[#allocation2 + $0x90] sm:$0xfc]
        %v1510 = vld [vmem:[#allocation2 + $0x98] sm:$0xfc]
        %v1511 = vld [vmem:[#allocation2 + $0xb0] sm:$0x3]
        %v1512 = vld [vmem:[#allocation2 + $0xb8] sm:$0x3]
        %v1513 = vlaneseq
        %v1514 = vshrl.u32 %v1513, 7
        %v1515 = vsub.s32 2, %v1514
        %v1516 = vrot.slane %v1307, %v1515
        %v1517 = vlaneseq
        %v1518 = vshrl.u32 %v1517, 7
        %v1519 = vsub.s32 2, %v1518
        %v1520 = vrot.slane %v1308, %v1519
        %v1521 = vmul.f32 %v1497, %v1516
        %v1522 = vmul.f32 %v1498, %v1520
        %v1523 = vmul.f32 %v1314, %v1516
        %v1524 = vmul.f32 %v1315, %v1520
        %v1525 = vmul.f32 %v1499, %v1516
        %v1526 = vmul.f32 %v1500, %v1520
        %v1527 = vmul.f32 %v1501, %v1516
        %v1528 = vmul.f32 %v1502, %v1520
        %v1529 = vmul.f32 %v1318, %v1516
        %v1530 = vmul.f32 %v1319, %v1520
        %v1531 = vmul.f32 %v1503, %v1516
        %v1532 = vmul.f32 %v1504, %v1520
        %v1533 = vmul.f32 %v1505, %v1516
        %v1534 = vmul.f32 %v1506, %v1520
        %v1535 = vmul.f32 %v1322, %v1516
        %v1536 = vmul.f32 %v1323, %v1520
        %v1537 = vmul.f32 %v1507, %v1516
        %v1538 = vmul.f32 %v1508, %v1520
        %v1539 = vmul.f32 %v1509, %v1516
        %v1540 = vmul.f32 %v1510, %v1520
        %v1541 = vmul.f32 %v1326, %v1516
        %v1542 = vmul.f32 %v1327, %v1520
        %v1543 = vmul.f32 %v1511, %v1516
        %v1544 = vmul.f32 %v1512, %v1520
        %vm1569 = vcmask 1045504
        %v1570 = vrot.slane %v1521, 2
        %v1571 = vrot.slane %v1523, 2
        %v1572 = vsel %vm1569, %v1570, %v1571
        %v1573 = vrot.slane %v1522, 2
        %v1574 = vrot.slane %v1524, 2
        %v1575 = vsel %vm1569, %v1573, %v1574
        %v1576 = vrot.slane %v1525, 2
        %v1577 = vsel %vm1569, %v1571, %v1576
        %v1578 = vrot.slane %v1526, 2
        %v1579 = vsel %vm1569, %v1574, %v1578
        %v1580 = vrot.slane %v1527, 2
        %v1581 = vrot.slane %v1529, 2
        %v1582 = vsel %vm1569, %v1580, %v1581
        %v1583 = vrot.slane %v1528, 2
        %v1584 = vrot.slane %v1530, 2
        %v1585 = vsel %vm1569, %v1583, %v1584
        %v1586 = vrot.slane %v1531, 2
        %v1587 = vsel %vm1569, %v1581, %v1586
        %v1588 = vrot.slane %v1532, 2
        %v1589 = vsel %vm1569, %v1584, %v1588
        %v1590 = vrot.slane %v1533, 2
        %v1591 = vrot.slane %v1535, 2
        %v1592 = vsel %vm1569, %v1590, %v1591
        %v1593 = vrot.slane %v1534, 2
        %v1594 = vrot.slane %v1536, 2
        %v1595 = vsel %vm1569, %v1593, %v1594
        %v1596 = vrot.slane %v1537, 2
        %v1597 = vsel %vm1569, %v1591, %v1596
        %v1598 = vrot.slane %v1538, 2
        %v1599 = vsel %vm1569, %v1594, %v1598
        %v1600 = vrot.slane %v1539, 2
        %v1601 = vrot.slane %v1541, 2
        %v1602 = vsel %vm1569, %v1600, %v1601
        %v1603 = vrot.slane %v1540, 2
        %v1604 = vrot.slane %v1542, 2
        %v1605 = vsel %vm1569, %v1603, %v1604
        %v1606 = vrot.slane %v1543, 2
        %v1607 = vsel %vm1569, %v1601, %v1606
        %v1608 = vrot.slane %v1544, 2
        %v1609 = vsel %vm1569, %v1604, %v1608
        %v1626 = vadd.f32 %v1481, %v1572
        %v1627 = vadd.f32 %v1482, %v1575
        %v1628 = vadd.f32 %v1483, %v1577
        %v1629 = vadd.f32 %v1484, %v1579
        %v1630 = vadd.f32 %v1485, %v1582
        %v1631 = vadd.f32 %v1486, %v1585
        %v1632 = vadd.f32 %v1487, %v1587
        %v1633 = vadd.f32 %v1488, %v1589
        %v1634 = vadd.f32 %v1489, %v1592
        %v1635 = vadd.f32 %v1490, %v1595
        %v1636 = vadd.f32 %v1491, %v1597
        %v1637 = vadd.f32 %v1492, %v1599
        %v1638 = vadd.f32 %v1493, %v1602
        %v1639 = vadd.f32 %v1494, %v1605
        %v1640 = vadd.f32 %v1495, %v1607
        %v1641 = vadd.f32 %v1496, %v1609
        %v1642 = vld [vmem:[%s852] sm:$0xff]
        %v1643 = vld [vmem:[%s852 + $0x8] sm:$0xff]
        %v1644 = vld [vmem:[%s852 + $0x10] sm:$0xff]
        %v1645 = vld [vmem:[%s852 + $0x18] sm:$0xff]
        %v1646 = vld [vmem:[%s852 + $0x30] sm:$0xff]
        %v1647 = vld [vmem:[%s852 + $0x38] sm:$0xff]
        %v1648 = vld [vmem:[%s852 + $0x40] sm:$0xff]
        %v1649 = vld [vmem:[%s852 + $0x48] sm:$0xff]
        %v1650 = vld [vmem:[%s852 + $0x60] sm:$0xff]
        %v1651 = vld [vmem:[%s852 + $0x68] sm:$0xff]
        %v1652 = vld [vmem:[%s852 + $0x70] sm:$0xff]
        %v1653 = vld [vmem:[%s852 + $0x78] sm:$0xff]
        %v1654 = vld [vmem:[%s852 + $0x90] sm:$0xff]
        %v1655 = vld [vmem:[%s852 + $0x98] sm:$0xff]
        %v1656 = vld [vmem:[%s852 + $0xa0] sm:$0xff]
        %v1657 = vld [vmem:[%s852 + $0xa8] sm:$0xff]
        %v1658 = vlaneseq
        %v1659 = vshrl.u32 %v1658, 7
        %v1660 = vsub.s32 3, %v1659
        %v1661 = vrot.slane %v1307, %v1660
        %v1662 = vlaneseq
        %v1663 = vshrl.u32 %v1662, 7
        %v1664 = vsub.s32 3, %v1663
        %v1665 = vrot.slane %v1308, %v1664
        %v1666 = vmul.f32 %v1642, %v1661
        %v1667 = vmul.f32 %v1643, %v1665
        %v1668 = vmul.f32 %v1644, %v1661
        %v1669 = vmul.f32 %v1645, %v1665
        %v1670 = vmul.f32 %v1646, %v1661
        %v1671 = vmul.f32 %v1647, %v1665
        %v1672 = vmul.f32 %v1648, %v1661
        %v1673 = vmul.f32 %v1649, %v1665
        %v1674 = vmul.f32 %v1650, %v1661
        %v1675 = vmul.f32 %v1651, %v1665
        %v1676 = vmul.f32 %v1652, %v1661
        %v1677 = vmul.f32 %v1653, %v1665
        %v1678 = vmul.f32 %v1654, %v1661
        %v1679 = vmul.f32 %v1655, %v1665
        %v1680 = vmul.f32 %v1656, %v1661
        %v1681 = vmul.f32 %v1657, %v1665
        %v1682 = vadd.f32 %v1626, %v1666
        %v1683 = vadd.f32 %v1627, %v1667
        %v1684 = vadd.f32 %v1628, %v1668
        %v1685 = vadd.f32 %v1629, %v1669
        %v1686 = vadd.f32 %v1630, %v1670
        %v1687 = vadd.f32 %v1631, %v1671
        %v1688 = vadd.f32 %v1632, %v1672
        %v1689 = vadd.f32 %v1633, %v1673
        %v1690 = vadd.f32 %v1634, %v1674
        %v1691 = vadd.f32 %v1635, %v1675
        %v1692 = vadd.f32 %v1636, %v1676
        %v1693 = vadd.f32 %v1637, %v1677
        %v1694 = vadd.f32 %v1638, %v1678
        %v1695 = vadd.f32 %v1639, %v1679
        %v1696 = vadd.f32 %v1640, %v1680
        %v1697 = vadd.f32 %v1641, %v1681
        %v1698 = vld [vmem:[%s852] sm:$0xfe]
        %v1699 = vld [vmem:[%s852 + $0x8] sm:$0xfe]
        %v1700 = vld [vmem:[%s852 + $0x20] sm:$0x1]
        %v1701 = vld [vmem:[%s852 + $0x28] sm:$0x1]
        %v1702 = vld [vmem:[%s852 + $0x30] sm:$0xfe]
        %v1703 = vld [vmem:[%s852 + $0x38] sm:$0xfe]
        %v1704 = vld [vmem:[%s852 + $0x50] sm:$0x1]
        %v1705 = vld [vmem:[%s852 + $0x58] sm:$0x1]
        %v1706 = vld [vmem:[%s852 + $0x60] sm:$0xfe]
        %v1707 = vld [vmem:[%s852 + $0x68] sm:$0xfe]
        %v1708 = vld [vmem:[%s852 + $0x80] sm:$0x1]
        %v1709 = vld [vmem:[%s852 + $0x88] sm:$0x1]
        %v1710 = vld [vmem:[%s852 + $0x90] sm:$0xfe]
        %v1711 = vld [vmem:[%s852 + $0x98] sm:$0xfe]
        %v1712 = vld [vmem:[%s852 + $0xb0] sm:$0x1]
        %v1713 = vld [vmem:[%s852 + $0xb8] sm:$0x1]
        %v1714 = vlaneseq
        %v1715 = vshrl.u32 %v1714, 7
        %v1716 = vsub.s32 4, %v1715
        %v1717 = vrot.slane %v1307, %v1716
        %v1718 = vlaneseq
        %v1719 = vshrl.u32 %v1718, 7
        %v1720 = vsub.s32 4, %v1719
        %v1721 = vrot.slane %v1308, %v1720
        %v1722 = vmul.f32 %v1698, %v1717
        %v1723 = vmul.f32 %v1699, %v1721
        %v1724 = vmul.f32 %v1644, %v1717
        %v1725 = vmul.f32 %v1645, %v1721
        %v1726 = vmul.f32 %v1700, %v1717
        %v1727 = vmul.f32 %v1701, %v1721
        %v1728 = vmul.f32 %v1702, %v1717
        %v1729 = vmul.f32 %v1703, %v1721
        %v1730 = vmul.f32 %v1648, %v1717
        %v1731 = vmul.f32 %v1649, %v1721
        %v1732 = vmul.f32 %v1704, %v1717
        %v1733 = vmul.f32 %v1705, %v1721
        %v1734 = vmul.f32 %v1706, %v1717
        %v1735 = vmul.f32 %v1707, %v1721
        %v1736 = vmul.f32 %v1652, %v1717
        %v1737 = vmul.f32 %v1653, %v1721
        %v1738 = vmul.f32 %v1708, %v1717
        %v1739 = vmul.f32 %v1709, %v1721
        %v1740 = vmul.f32 %v1710, %v1717
        %v1741 = vmul.f32 %v1711, %v1721
        %v1742 = vmul.f32 %v1656, %v1717
        %v1743 = vmul.f32 %v1657, %v1721
        %v1744 = vmul.f32 %v1712, %v1717
        %v1745 = vmul.f32 %v1713, %v1721
        %v1770 = vrot.slane %v1722, 1
        %v1771 = vrot.slane %v1724, 1
        %v1772 = vsel %vm1424, %v1770, %v1771
        %v1773 = vrot.slane %v1723, 1
        %v1774 = vrot.slane %v1725, 1
        %v1775 = vsel %vm1424, %v1773, %v1774
        %v1776 = vrot.slane %v1726, 1
        %v1777 = vsel %vm1424, %v1771, %v1776
        %v1778 = vrot.slane %v1727, 1
        %v1779 = vsel %vm1424, %v1774, %v1778
        %v1780 = vrot.slane %v1728, 1
        %v1781 = vrot.slane %v1730, 1
        %v1782 = vsel %vm1424, %v1780, %v1781
        %v1783 = vrot.slane %v1729, 1
        %v1784 = vrot.slane %v1731, 1
        %v1785 = vsel %vm1424, %v1783, %v1784
        %v1786 = vrot.slane %v1732, 1
        %v1787 = vsel %vm1424, %v1781, %v1786
        %v1788 = vrot.slane %v1733, 1
        %v1789 = vsel %vm1424, %v1784, %v1788
        %v1790 = vrot.slane %v1734, 1
        %v1791 = vrot.slane %v1736, 1
        %v1792 = vsel %vm1424, %v1790, %v1791
        %v1793 = vrot.slane %v1735, 1
        %v1794 = vrot.slane %v1737, 1
        %v1795 = vsel %vm1424, %v1793, %v1794
        %v1796 = vrot.slane %v1738, 1
        %v1797 = vsel %vm1424, %v1791, %v1796
        %v1798 = vrot.slane %v1739, 1
        %v1799 = vsel %vm1424, %v1794, %v1798
        %v1800 = vrot.slane %v1740, 1
        %v1801 = vrot.slane %v1742, 1
        %v1802 = vsel %vm1424, %v1800, %v1801
        %v1803 = vrot.slane %v1741, 1
        %v1804 = vrot.slane %v1743, 1
        %v1805 = vsel %vm1424, %v1803, %v1804
        %v1806 = vrot.slane %v1744, 1
        %v1807 = vsel %vm1424, %v1801, %v1806
        %v1808 = vrot.slane %v1745, 1
        %v1809 = vsel %vm1424, %v1804, %v1808
        %v1826 = vadd.f32 %v1682, %v1772
        %v1827 = vadd.f32 %v1683, %v1775
        %v1828 = vadd.f32 %v1684, %v1777
        %v1829 = vadd.f32 %v1685, %v1779
        %v1830 = vadd.f32 %v1686, %v1782
        %v1831 = vadd.f32 %v1687, %v1785
        %v1832 = vadd.f32 %v1688, %v1787
        %v1833 = vadd.f32 %v1689, %v1789
        %v1834 = vadd.f32 %v1690, %v1792
        %v1835 = vadd.f32 %v1691, %v1795
        %v1836 = vadd.f32 %v1692, %v1797
        %v1837 = vadd.f32 %v1693, %v1799
        %v1838 = vadd.f32 %v1694, %v1802
        %v1839 = vadd.f32 %v1695, %v1805
        %v1840 = vadd.f32 %v1696, %v1807
        %v1841 = vadd.f32 %v1697, %v1809
        %v1842 = vld [vmem:[%s852] sm:$0xfc]
        %v1843 = vld [vmem:[%s852 + $0x8] sm:$0xfc]
        %v1844 = vld [vmem:[%s852 + $0x20] sm:$0x3]
        %v1845 = vld [vmem:[%s852 + $0x28] sm:$0x3]
        %v1846 = vld [vmem:[%s852 + $0x30] sm:$0xfc]
        %v1847 = vld [vmem:[%s852 + $0x38] sm:$0xfc]
        %v1848 = vld [vmem:[%s852 + $0x50] sm:$0x3]
        %v1849 = vld [vmem:[%s852 + $0x58] sm:$0x3]
        %v1850 = vld [vmem:[%s852 + $0x60] sm:$0xfc]
        %v1851 = vld [vmem:[%s852 + $0x68] sm:$0xfc]
        %v1852 = vld [vmem:[%s852 + $0x80] sm:$0x3]
        %v1853 = vld [vmem:[%s852 + $0x88] sm:$0x3]
        %v1854 = vld [vmem:[%s852 + $0x90] sm:$0xfc]
        %v1855 = vld [vmem:[%s852 + $0x98] sm:$0xfc]
        %v1856 = vld [vmem:[%s852 + $0xb0] sm:$0x3]
        %v1857 = vld [vmem:[%s852 + $0xb8] sm:$0x3]
        %v1858 = vlaneseq
        %v1859 = vshrl.u32 %v1858, 7
        %v1860 = vsub.s32 5, %v1859
        %v1861 = vrot.slane %v1307, %v1860
        %v1862 = vlaneseq
        %v1863 = vshrl.u32 %v1862, 7
        %v1864 = vsub.s32 5, %v1863
        %v1865 = vrot.slane %v1308, %v1864
        %v1866 = vmul.f32 %v1842, %v1861
        %v1867 = vmul.f32 %v1843, %v1865
        %v1868 = vmul.f32 %v1644, %v1861
        %v1869 = vmul.f32 %v1645, %v1865
        %v1870 = vmul.f32 %v1844, %v1861
        %v1871 = vmul.f32 %v1845, %v1865
        %v1872 = vmul.f32 %v1846, %v1861
        %v1873 = vmul.f32 %v1847, %v1865
        %v1874 = vmul.f32 %v1648, %v1861
        %v1875 = vmul.f32 %v1649, %v1865
        %v1876 = vmul.f32 %v1848, %v1861
        %v1877 = vmul.f32 %v1849, %v1865
        %v1878 = vmul.f32 %v1850, %v1861
        %v1879 = vmul.f32 %v1851, %v1865
        %v1880 = vmul.f32 %v1652, %v1861
        %v1881 = vmul.f32 %v1653, %v1865
        %v1882 = vmul.f32 %v1852, %v1861
        %v1883 = vmul.f32 %v1853, %v1865
        %v1884 = vmul.f32 %v1854, %v1861
        %v1885 = vmul.f32 %v1855, %v1865
        %v1886 = vmul.f32 %v1656, %v1861
        %v1887 = vmul.f32 %v1657, %v1865
        %v1888 = vmul.f32 %v1856, %v1861
        %v1889 = vmul.f32 %v1857, %v1865
        %v1914 = vrot.slane %v1866, 2
        %v1915 = vrot.slane %v1868, 2
        %v1916 = vsel %vm1569, %v1914, %v1915
        %v1917 = vrot.slane %v1867, 2
        %v1918 = vrot.slane %v1869, 2
        %v1919 = vsel %vm1569, %v1917, %v1918
        %v1920 = vrot.slane %v1870, 2
        %v1921 = vsel %vm1569, %v1915, %v1920
        %v1922 = vrot.slane %v1871, 2
        %v1923 = vsel %vm1569, %v1918, %v1922
        %v1924 = vrot.slane %v1872, 2
        %v1925 = vrot.slane %v1874, 2
        %v1926 = vsel %vm1569, %v1924, %v1925
        %v1927 = vrot.slane %v1873, 2
        %v1928 = vrot.slane %v1875, 2
        %v1929 = vsel %vm1569, %v1927, %v1928
        %v1930 = vrot.slane %v1876, 2
        %v1931 = vsel %vm1569, %v1925, %v1930
        %v1932 = vrot.slane %v1877, 2
        %v1933 = vsel %vm1569, %v1928, %v1932
        %v1934 = vrot.slane %v1878, 2
        %v1935 = vrot.slane %v1880, 2
        %v1936 = vsel %vm1569, %v1934, %v1935
        %v1937 = vrot.slane %v1879, 2
        %v1938 = vrot.slane %v1881, 2
        %v1939 = vsel %vm1569, %v1937, %v1938
        %v1940 = vrot.slane %v1882, 2
        %v1941 = vsel %vm1569, %v1935, %v1940
        %v1942 = vrot.slane %v1883, 2
        %v1943 = vsel %vm1569, %v1938, %v1942
        %v1944 = vrot.slane %v1884, 2
        %v1945 = vrot.slane %v1886, 2
        %v1946 = vsel %vm1569, %v1944, %v1945
        %v1947 = vrot.slane %v1885, 2
        %v1948 = vrot.slane %v1887, 2
        %v1949 = vsel %vm1569, %v1947, %v1948
        %v1950 = vrot.slane %v1888, 2
        %v1951 = vsel %vm1569, %v1945, %v1950
        %v1952 = vrot.slane %v1889, 2
        %v1953 = vsel %vm1569, %v1948, %v1952
        %v1970 = vadd.f32 %v1826, %v1916
        %v1971 = vadd.f32 %v1827, %v1919
        %v1972 = vadd.f32 %v1828, %v1921
        %v1973 = vadd.f32 %v1829, %v1923
        %v1974 = vadd.f32 %v1830, %v1926
        %v1975 = vadd.f32 %v1831, %v1929
        %v1976 = vadd.f32 %v1832, %v1931
        %v1977 = vadd.f32 %v1833, %v1933
        %v1978 = vadd.f32 %v1834, %v1936
        %v1979 = vadd.f32 %v1835, %v1939
        %v1980 = vadd.f32 %v1836, %v1941
        %v1981 = vadd.f32 %v1837, %v1943
        %v1982 = vadd.f32 %v1838, %v1946
        %v1983 = vadd.f32 %v1839, %v1949
        %v1984 = vadd.f32 %v1840, %v1951
        %v1985 = vadd.f32 %v1841, %v1953
        %s1986 = scalar_lea.vmem [#allocation2], 96
        %v1987 = vld [vmem:[%s1986] sm:$0xff]
        %v1988 = vld [vmem:[%s1986 + $0x8] sm:$0xff]
        %v1989 = vld [vmem:[%s1986 + $0x10] sm:$0xff]
        %v1990 = vld [vmem:[%s1986 + $0x18] sm:$0xff]
        %v1991 = vld [vmem:[%s1986 + $0x30] sm:$0xff]
        %v1992 = vld [vmem:[%s1986 + $0x38] sm:$0xff]
        %v1993 = vld [vmem:[%s1986 + $0x40] sm:$0xff]
        %v1994 = vld [vmem:[%s1986 + $0x48] sm:$0xff]
        %v1995 = vld [vmem:[%s1986 + $0x60] sm:$0xff]
        %v1996 = vld [vmem:[%s1986 + $0x68] sm:$0xff]
        %v1997 = vld [vmem:[%s1986 + $0x70] sm:$0xff]
        %v1998 = vld [vmem:[%s1986 + $0x78] sm:$0xff]
        %v1999 = vld [vmem:[%s1986 + $0x90] sm:$0xff]
        %v2000 = vld [vmem:[%s1986 + $0x98] sm:$0xff]
        %v2001 = vld [vmem:[%s1986 + $0xa0] sm:$0xff]
        %v2002 = vld [vmem:[%s1986 + $0xa8] sm:$0xff]
        %v2003 = vlaneseq
        %v2004 = vshrl.u32 %v2003, 7
        %v2005 = vsub.s32 6, %v2004
        %v2006 = vrot.slane %v1307, %v2005
        %v2007 = vlaneseq
        %v2008 = vshrl.u32 %v2007, 7
        %v2009 = vsub.s32 6, %v2008
        %v2010 = vrot.slane %v1308, %v2009
        %v2011 = vmul.f32 %v1987, %v2006
        %v2012 = vmul.f32 %v1988, %v2010
        %v2013 = vmul.f32 %v1989, %v2006
        %v2014 = vmul.f32 %v1990, %v2010
        %v2015 = vmul.f32 %v1991, %v2006
        %v2016 = vmul.f32 %v1992, %v2010
        %v2017 = vmul.f32 %v1993, %v2006
        %v2018 = vmul.f32 %v1994, %v2010
        %v2019 = vmul.f32 %v1995, %v2006
        %v2020 = vmul.f32 %v1996, %v2010
        %v2021 = vmul.f32 %v1997, %v2006
        %v2022 = vmul.f32 %v1998, %v2010
        %v2023 = vmul.f32 %v1999, %v2006
        %v2024 = vmul.f32 %v2000, %v2010
        %v2025 = vmul.f32 %v2001, %v2006
        %v2026 = vmul.f32 %v2002, %v2010
        %v2027 = vadd.f32 %v1970, %v2011
        %v2028 = vadd.f32 %v1971, %v2012
        %v2029 = vadd.f32 %v1972, %v2013
        %v2030 = vadd.f32 %v1973, %v2014
        %v2031 = vadd.f32 %v1974, %v2015
        %v2032 = vadd.f32 %v1975, %v2016
        %v2033 = vadd.f32 %v1976, %v2017
        %v2034 = vadd.f32 %v1977, %v2018
        %v2035 = vadd.f32 %v1978, %v2019
        %v2036 = vadd.f32 %v1979, %v2020
        %v2037 = vadd.f32 %v1980, %v2021
        %v2038 = vadd.f32 %v1981, %v2022
        %v2039 = vadd.f32 %v1982, %v2023
        %v2040 = vadd.f32 %v1983, %v2024
        %v2041 = vadd.f32 %v1984, %v2025
        %v2042 = vadd.f32 %v1985, %v2026
        %v2043 = vld [vmem:[%s1986] sm:$0xfe]
        %v2044 = vld [vmem:[%s1986 + $0x8] sm:$0xfe]
        %v2045 = vld [vmem:[%s1986 + $0x20] sm:$0x1]
        %v2046 = vld [vmem:[%s1986 + $0x28] sm:$0x1]
        %v2047 = vld [vmem:[%s1986 + $0x30] sm:$0xfe]
        %v2048 = vld [vmem:[%s1986 + $0x38] sm:$0xfe]
        %v2049 = vld [vmem:[%s1986 + $0x50] sm:$0x1]
        %v2050 = vld [vmem:[%s1986 + $0x58] sm:$0x1]
        %v2051 = vld [vmem:[%s1986 + $0x60] sm:$0xfe]
        %v2052 = vld [vmem:[%s1986 + $0x68] sm:$0xfe]
        %v2053 = vld [vmem:[%s1986 + $0x80] sm:$0x1]
        %v2054 = vld [vmem:[%s1986 + $0x88] sm:$0x1]
        %v2055 = vld [vmem:[%s1986 + $0x90] sm:$0xfe]
        %v2056 = vld [vmem:[%s1986 + $0x98] sm:$0xfe]
        %v2057 = vld [vmem:[%s1986 + $0xb0] sm:$0x1]
        %v2058 = vld [vmem:[%s1986 + $0xb8] sm:$0x1]
        %v2059 = vlaneseq
        %v2060 = vshrl.u32 %v2059, 7
        %v2061 = vsub.s32 7, %v2060
        %v2062 = vrot.slane %v1307, %v2061
        %v2063 = vlaneseq
        %v2064 = vshrl.u32 %v2063, 7
        %v2065 = vsub.s32 7, %v2064
        %v2066 = vrot.slane %v1308, %v2065
        %v2067 = vmul.f32 %v2043, %v2062
        %v2068 = vmul.f32 %v2044, %v2066
        %v2069 = vmul.f32 %v1989, %v2062
        %v2070 = vmul.f32 %v1990, %v2066
        %v2071 = vmul.f32 %v2045, %v2062
        %v2072 = vmul.f32 %v2046, %v2066
        %v2073 = vmul.f32 %v2047, %v2062
        %v2074 = vmul.f32 %v2048, %v2066
        %v2075 = vmul.f32 %v1993, %v2062
        %v2076 = vmul.f32 %v1994, %v2066
        %v2077 = vmul.f32 %v2049, %v2062
        %v2078 = vmul.f32 %v2050, %v2066
        %v2079 = vmul.f32 %v2051, %v2062
        %v2080 = vmul.f32 %v2052, %v2066
        %v2081 = vmul.f32 %v1997, %v2062
        %v2082 = vmul.f32 %v1998, %v2066
        %v2083 = vmul.f32 %v2053, %v2062
        %v2084 = vmul.f32 %v2054, %v2066
        %v2085 = vmul.f32 %v2055, %v2062
        %v2086 = vmul.f32 %v2056, %v2066
        %v2087 = vmul.f32 %v2001, %v2062
        %v2088 = vmul.f32 %v2002, %v2066
        %v2089 = vmul.f32 %v2057, %v2062
        %v2090 = vmul.f32 %v2058, %v2066
        %v2115 = vrot.slane %v2067, 1
        %v2116 = vrot.slane %v2069, 1
        %v2117 = vsel %vm1424, %v2115, %v2116
        %v2118 = vrot.slane %v2068, 1
        %v2119 = vrot.slane %v2070, 1
        %v2120 = vsel %vm1424, %v2118, %v2119
        %v2121 = vrot.slane %v2071, 1
        %v2122 = vsel %vm1424, %v2116, %v2121
        %v2123 = vrot.slane %v2072, 1
        %v2124 = vsel %vm1424, %v2119, %v2123
        %v2125 = vrot.slane %v2073, 1
        %v2126 = vrot.slane %v2075, 1
        %v2127 = vsel %vm1424, %v2125, %v2126
        %v2128 = vrot.slane %v2074, 1
        %v2129 = vrot.slane %v2076, 1
        %v2130 = vsel %vm1424, %v2128, %v2129
        %v2131 = vrot.slane %v2077, 1
        %v2132 = vsel %vm1424, %v2126, %v2131
        %v2133 = vrot.slane %v2078, 1
        %v2134 = vsel %vm1424, %v2129, %v2133
        %v2135 = vrot.slane %v2079, 1
        %v2136 = vrot.slane %v2081, 1
        %v2137 = vsel %vm1424, %v2135, %v2136
        %v2138 = vrot.slane %v2080, 1
        %v2139 = vrot.slane %v2082, 1
        %v2140 = vsel %vm1424, %v2138, %v2139
        %v2141 = vrot.slane %v2083, 1
        %v2142 = vsel %vm1424, %v2136, %v2141
        %v2143 = vrot.slane %v2084, 1
        %v2144 = vsel %vm1424, %v2139, %v2143
        %v2145 = vrot.slane %v2085, 1
        %v2146 = vrot.slane %v2087, 1
        %v2147 = vsel %vm1424, %v2145, %v2146
        %v2148 = vrot.slane %v2086, 1
        %v2149 = vrot.slane %v2088, 1
        %v2150 = vsel %vm1424, %v2148, %v2149
        %v2151 = vrot.slane %v2089, 1
        %v2152 = vsel %vm1424, %v2146, %v2151
        %v2153 = vrot.slane %v2090, 1
        %v2154 = vsel %vm1424, %v2149, %v2153
        %v2171 = vadd.f32 %v2027, %v2117
        %v2172 = vadd.f32 %v2028, %v2120
        %v2173 = vadd.f32 %v2029, %v2122
        %v2174 = vadd.f32 %v2030, %v2124
        %v2175 = vadd.f32 %v2031, %v2127
        %v2176 = vadd.f32 %v2032, %v2130
        %v2177 = vadd.f32 %v2033, %v2132
        %v2178 = vadd.f32 %v2034, %v2134
        %v2179 = vadd.f32 %v2035, %v2137
        %v2180 = vadd.f32 %v2036, %v2140
        %v2181 = vadd.f32 %v2037, %v2142
        %v2182 = vadd.f32 %v2038, %v2144
        %v2183 = vadd.f32 %v2039, %v2147
        %v2184 = vadd.f32 %v2040, %v2150
        %v2185 = vadd.f32 %v2041, %v2152
        %v2186 = vadd.f32 %v2042, %v2154
        %v2187 = vld [vmem:[%s1986] sm:$0xfc]
        %v2188 = vld [vmem:[%s1986 + $0x8] sm:$0xfc]
        %v2189 = vld [vmem:[%s1986 + $0x20] sm:$0x3]
        %v2190 = vld [vmem:[%s1986 + $0x28] sm:$0x3]
        %v2191 = vld [vmem:[%s1986 + $0x30] sm:$0xfc]
        %v2192 = vld [vmem:[%s1986 + $0x38] sm:$0xfc]
        %v2193 = vld [vmem:[%s1986 + $0x50] sm:$0x3]
        %v2194 = vld [vmem:[%s1986 + $0x58] sm:$0x3]
        %v2195 = vld [vmem:[%s1986 + $0x60] sm:$0xfc]
        %v2196 = vld [vmem:[%s1986 + $0x68] sm:$0xfc]
        %v2197 = vld [vmem:[%s1986 + $0x80] sm:$0x3]
        %v2198 = vld [vmem:[%s1986 + $0x88] sm:$0x3]
        %v2199 = vld [vmem:[%s1986 + $0x90] sm:$0xfc]
        %v2200 = vld [vmem:[%s1986 + $0x98] sm:$0xfc]
        %v2201 = vld [vmem:[%s1986 + $0xb0] sm:$0x3]
        %v2202 = vld [vmem:[%s1986 + $0xb8] sm:$0x3]
        %v2203 = vlaneseq
        %v2204 = vshrl.u32 %v2203, 7
        %v2205 = vsub.s32 0, %v2204
        %v2206 = vrot.slane %v1309, %v2205
        %v2207 = vlaneseq
        %v2208 = vshrl.u32 %v2207, 7
        %v2209 = vsub.s32 0, %v2208
        %v2210 = vrot.slane %v1310, %v2209
        %v2211 = vmul.f32 %v2187, %v2206
        %v2212 = vmul.f32 %v2188, %v2210
        %v2213 = vmul.f32 %v1989, %v2206
        %v2214 = vmul.f32 %v1990, %v2210
        %v2215 = vmul.f32 %v2189, %v2206
        %v2216 = vmul.f32 %v2190, %v2210
        %v2217 = vmul.f32 %v2191, %v2206
        %v2218 = vmul.f32 %v2192, %v2210
        %v2219 = vmul.f32 %v1993, %v2206
        %v2220 = vmul.f32 %v1994, %v2210
        %v2221 = vmul.f32 %v2193, %v2206
        %v2222 = vmul.f32 %v2194, %v2210
        %v2223 = vmul.f32 %v2195, %v2206
        %v2224 = vmul.f32 %v2196, %v2210
        %v2225 = vmul.f32 %v1997, %v2206
        %v2226 = vmul.f32 %v1998, %v2210
        %v2227 = vmul.f32 %v2197, %v2206
        %v2228 = vmul.f32 %v2198, %v2210
        %v2229 = vmul.f32 %v2199, %v2206
        %v2230 = vmul.f32 %v2200, %v2210
        %v2231 = vmul.f32 %v2001, %v2206
        %v2232 = vmul.f32 %v2002, %v2210
        %v2233 = vmul.f32 %v2201, %v2206
        %v2234 = vmul.f32 %v2202, %v2210
        %v2259 = vrot.slane %v2211, 2
        %v2260 = vrot.slane %v2213, 2
        %v2261 = vsel %vm1569, %v2259, %v2260
        %v2262 = vrot.slane %v2212, 2
        %v2263 = vrot.slane %v2214, 2
        %v2264 = vsel %vm1569, %v2262, %v2263
        %v2265 = vrot.slane %v2215, 2
        %v2266 = vsel %vm1569, %v2260, %v2265
        %v2267 = vrot.slane %v2216, 2
        %v2268 = vsel %vm1569, %v2263, %v2267
        %v2269 = vrot.slane %v2217, 2
        %v2270 = vrot.slane %v2219, 2
        %v2271 = vsel %vm1569, %v2269, %v2270
        %v2272 = vrot.slane %v2218, 2
        %v2273 = vrot.slane %v2220, 2
        %v2274 = vsel %vm1569, %v2272, %v2273
        %v2275 = vrot.slane %v2221, 2
        %v2276 = vsel %vm1569, %v2270, %v2275
        %v2277 = vrot.slane %v2222, 2
        %v2278 = vsel %vm1569, %v2273, %v2277
        %v2279 = vrot.slane %v2223, 2
        %v2280 = vrot.slane %v2225, 2
        %v2281 = vsel %vm1569, %v2279, %v2280
        %v2282 = vrot.slane %v2224, 2
        %v2283 = vrot.slane %v2226, 2
        %v2284 = vsel %vm1569, %v2282, %v2283
        %v2285 = vrot.slane %v2227, 2
        %v2286 = vsel %vm1569, %v2280, %v2285
        %v2287 = vrot.slane %v2228, 2
        %v2288 = vsel %vm1569, %v2283, %v2287
        %v2289 = vrot.slane %v2229, 2
        %v2290 = vrot.slane %v2231, 2
        %v2291 = vsel %vm1569, %v2289, %v2290
        %v2292 = vrot.slane %v2230, 2
        %v2293 = vrot.slane %v2232, 2
        %v2294 = vsel %vm1569, %v2292, %v2293
        %v2295 = vrot.slane %v2233, 2
        %v2296 = vsel %vm1569, %v2290, %v2295
        %v2297 = vrot.slane %v2234, 2
        %v2298 = vsel %vm1569, %v2293, %v2297
        %v2315 = vadd.f32 %v2171, %v2261
        %v2316 = vadd.f32 %v2172, %v2264
        %v2317 = vadd.f32 %v2173, %v2266
        %v2318 = vadd.f32 %v2174, %v2268
        %v2319 = vadd.f32 %v2175, %v2271
        %v2320 = vadd.f32 %v2176, %v2274
        %v2321 = vadd.f32 %v2177, %v2276
        %v2322 = vadd.f32 %v2178, %v2278
        %v2323 = vadd.f32 %v2179, %v2281
        %v2324 = vadd.f32 %v2180, %v2284
        %v2325 = vadd.f32 %v2181, %v2286
        %v2326 = vadd.f32 %v2182, %v2288
        %v2327 = vadd.f32 %v2183, %v2291
        %v2328 = vadd.f32 %v2184, %v2294
        %v2329 = vadd.f32 %v2185, %v2296
        %v2330 = vadd.f32 %v2186, %v2298
        %v2332 = vlaneseq
        %v2333 = vshrl.u32 %v2332, 7
        %v2334 = vsub.s32 0, %v2333
        %v2335 = vrot.slane %v1311, %v2334
        %v2336 = vlaneseq
        %v2337 = vshrl.u32 %v2336, 7
        %v2338 = vsub.s32 1, %v2337
        %v2339 = vrot.slane %v1311, %v2338
        %v2342 = vadd.f32 %v2315, %v2335
        %v2343 = vadd.f32 %v2316, %v2339
        %v2344 = vadd.f32 %v2317, %v2335
        %v2345 = vadd.f32 %v2318, %v2339
        %v2346 = vadd.f32 %v2319, %v2335
        %v2347 = vadd.f32 %v2320, %v2339
        %v2348 = vadd.f32 %v2321, %v2335
        %v2349 = vadd.f32 %v2322, %v2339
        %v2350 = vadd.f32 %v2323, %v2335
        %v2351 = vadd.f32 %v2324, %v2339
        %v2352 = vadd.f32 %v2325, %v2335
        %v2353 = vadd.f32 %v2326, %v2339
        %v2354 = vadd.f32 %v2327, %v2335
        %v2355 = vadd.f32 %v2328, %v2339
        %v2356 = vadd.f32 %v2329, %v2335
        %v2357 = vadd.f32 %v2330, %v2339
        %v2358 = vmax.f32 %v2342, 0.0
        %v2359 = vmax.f32 %v2343, 0.0
        %v2360 = vmax.f32 %v2344, 0.0
        %v2361 = vmax.f32 %v2345, 0.0
        %v2362 = vmax.f32 %v2346, 0.0
        %v2363 = vmax.f32 %v2347, 0.0
        %v2364 = vmax.f32 %v2348, 0.0
        %v2365 = vmax.f32 %v2349, 0.0
        %v2366 = vmax.f32 %v2350, 0.0
        %v2367 = vmax.f32 %v2351, 0.0
        %v2368 = vmax.f32 %v2352, 0.0
        %v2369 = vmax.f32 %v2353, 0.0
        %v2370 = vmax.f32 %v2354, 0.0
        %v2371 = vmax.f32 %v2355, 0.0
        %v2372 = vmax.f32 %v2356, 0.0
        %v2373 = vmax.f32 %v2357, 0.0
        %v2374 = vmin.f32 %v2358, 6.0
        %v2375 = vmin.f32 %v2359, 6.0
        %v2376 = vmin.f32 %v2360, 6.0
        %v2377 = vmin.f32 %v2361, 6.0
        %v2378 = vmin.f32 %v2362, 6.0
        %v2379 = vmin.f32 %v2363, 6.0
        %v2380 = vmin.f32 %v2364, 6.0
        %v2381 = vmin.f32 %v2365, 6.0
        %v2382 = vmin.f32 %v2366, 6.0
        %v2383 = vmin.f32 %v2367, 6.0
        %v2384 = vmin.f32 %v2368, 6.0
        %v2385 = vmin.f32 %v2369, 6.0
        %v2386 = vmin.f32 %v2370, 6.0
        %v2387 = vmin.f32 %v2371, 6.0
        %v2388 = vmin.f32 %v2372, 6.0
        %v2389 = vmin.f32 %v2373, 6.0
        %2390 = vst [vmem:[#allocation3] sm:$0xff] %v2374
        %2391 = vst.msk [vmem:[#allocation3 + $0x8] sm:$0xff] %vm838, %v2375
        %2392 = vst [vmem:[#allocation3 + $0x10] sm:$0xff] %v2376
        %2393 = vst.msk [vmem:[#allocation3 + $0x18] sm:$0xff] %vm838, %v2377
        %2394 = vst [vmem:[#allocation3 + $0x20] sm:$0xff] %v2378
        %2395 = vst.msk [vmem:[#allocation3 + $0x28] sm:$0xff] %vm838, %v2379
        %2396 = vst [vmem:[#allocation3 + $0x30] sm:$0xff] %v2380
        %2397 = vst.msk [vmem:[#allocation3 + $0x38] sm:$0xff] %vm838, %v2381
        %2398 = vst [vmem:[#allocation3 + $0x40] sm:$0xff] %v2382
        %2399 = vst.msk [vmem:[#allocation3 + $0x48] sm:$0xff] %vm838, %v2383
        %2400 = vst [vmem:[#allocation3 + $0x50] sm:$0xff] %v2384
        %2401 = vst.msk [vmem:[#allocation3 + $0x58] sm:$0xff] %vm838, %v2385
        %2402 = vst [vmem:[#allocation3 + $0x60] sm:$0xff] %v2386
        %2403 = vst.msk [vmem:[#allocation3 + $0x68] sm:$0xff] %vm838, %v2387
        %2404 = vst [vmem:[#allocation3 + $0x70] sm:$0xff] %v2388
        %2405 = vst.msk [vmem:[#allocation3 + $0x78] sm:$0xff] %vm838, %v2389
        %s2406 = scalar_lea.vmem [#allocation2], 192
        %v2407 = vld [vmem:[%s2406] sm:$0xff]
        %v2408 = vld [vmem:[%s2406 + $0x8] sm:$0xff]
        %v2409 = vld [vmem:[%s2406 + $0x10] sm:$0xff]
        %v2410 = vld [vmem:[%s2406 + $0x18] sm:$0xff]
        %v2411 = vld [vmem:[%s2406 + $0x30] sm:$0xff]
        %v2412 = vld [vmem:[%s2406 + $0x38] sm:$0xff]
        %v2413 = vld [vmem:[%s2406 + $0x40] sm:$0xff]
        %v2414 = vld [vmem:[%s2406 + $0x48] sm:$0xff]
        %v2415 = vld [vmem:[%s2406 + $0x60] sm:$0xff]
        %v2416 = vld [vmem:[%s2406 + $0x68] sm:$0xff]
        %v2417 = vld [vmem:[%s2406 + $0x70] sm:$0xff]
        %v2418 = vld [vmem:[%s2406 + $0x78] sm:$0xff]
        %v2419 = vld [vmem:[%s2406 + $0x90] sm:$0xff]
        %v2420 = vld [vmem:[%s2406 + $0x98] sm:$0xff]
        %v2421 = vld [vmem:[%s2406 + $0xa0] sm:$0xff]
        %v2422 = vld [vmem:[%s2406 + $0xa8] sm:$0xff]
        %v2423 = vmul.f32 %v2407, %v1331
        %v2424 = vmul.f32 %v2408, %v1335
        %v2425 = vmul.f32 %v2409, %v1331
        %v2426 = vmul.f32 %v2410, %v1335
        %v2427 = vmul.f32 %v2411, %v1331
        %v2428 = vmul.f32 %v2412, %v1335
        %v2429 = vmul.f32 %v2413, %v1331
        %v2430 = vmul.f32 %v2414, %v1335
        %v2431 = vmul.f32 %v2415, %v1331
        %v2432 = vmul.f32 %v2416, %v1335
        %v2433 = vmul.f32 %v2417, %v1331
        %v2434 = vmul.f32 %v2418, %v1335
        %v2435 = vmul.f32 %v2419, %v1331
        %v2436 = vmul.f32 %v2420, %v1335
        %v2437 = vmul.f32 %v2421, %v1331
        %v2438 = vmul.f32 %v2422, %v1335
        %v2439 = vld [vmem:[%s2406] sm:$0xfe]
        %v2440 = vld [vmem:[%s2406 + $0x8] sm:$0xfe]
        %v2441 = vld [vmem:[%s2406 + $0x20] sm:$0x1]
        %v2442 = vld [vmem:[%s2406 + $0x28] sm:$0x1]
        %v2443 = vld [vmem:[%s2406 + $0x30] sm:$0xfe]
        %v2444 = vld [vmem:[%s2406 + $0x38] sm:$0xfe]
        %v2445 = vld [vmem:[%s2406 + $0x50] sm:$0x1]
        %v2446 = vld [vmem:[%s2406 + $0x58] sm:$0x1]
        %v2447 = vld [vmem:[%s2406 + $0x60] sm:$0xfe]
        %v2448 = vld [vmem:[%s2406 + $0x68] sm:$0xfe]
        %v2449 = vld [vmem:[%s2406 + $0x80] sm:$0x1]
        %v2450 = vld [vmem:[%s2406 + $0x88] sm:$0x1]
        %v2451 = vld [vmem:[%s2406 + $0x90] sm:$0xfe]
        %v2452 = vld [vmem:[%s2406 + $0x98] sm:$0xfe]
        %v2453 = vld [vmem:[%s2406 + $0xb0] sm:$0x1]
        %v2454 = vld [vmem:[%s2406 + $0xb8] sm:$0x1]
        %v2455 = vmul.f32 %v2439, %v1371
        %v2456 = vmul.f32 %v2440, %v1375
        %v2457 = vmul.f32 %v2409, %v1371
        %v2458 = vmul.f32 %v2410, %v1375
        %v2459 = vmul.f32 %v2441, %v1371
        %v2460 = vmul.f32 %v2442, %v1375
        %v2461 = vmul.f32 %v2443, %v1371
        %v2462 = vmul.f32 %v2444, %v1375
        %v2463 = vmul.f32 %v2413, %v1371
        %v2464 = vmul.f32 %v2414, %v1375
        %v2465 = vmul.f32 %v2445, %v1371
        %v2466 = vmul.f32 %v2446, %v1375
        %v2467 = vmul.f32 %v2447, %v1371
        %v2468 = vmul.f32 %v2448, %v1375
        %v2469 = vmul.f32 %v2417, %v1371
        %v2470 = vmul.f32 %v2418, %v1375
        %v2471 = vmul.f32 %v2449, %v1371
        %v2472 = vmul.f32 %v2450, %v1375
        %v2473 = vmul.f32 %v2451, %v1371
        %v2474 = vmul.f32 %v2452, %v1375
        %v2475 = vmul.f32 %v2421, %v1371
        %v2476 = vmul.f32 %v2422, %v1375
        %v2477 = vmul.f32 %v2453, %v1371
        %v2478 = vmul.f32 %v2454, %v1375
        %v2503 = vrot.slane %v2455, 1
        %v2504 = vrot.slane %v2457, 1
        %v2505 = vsel %vm1424, %v2503, %v2504
        %v2506 = vrot.slane %v2456, 1
        %v2507 = vrot.slane %v2458, 1
        %v2508 = vsel %vm1424, %v2506, %v2507
        %v2509 = vrot.slane %v2459, 1
        %v2510 = vsel %vm1424, %v2504, %v2509
        %v2511 = vrot.slane %v2460, 1
        %v2512 = vsel %vm1424, %v2507, %v2511
        %v2513 = vrot.slane %v2461, 1
        %v2514 = vrot.slane %v2463, 1
        %v2515 = vsel %vm1424, %v2513, %v2514
        %v2516 = vrot.slane %v2462, 1
        %v2517 = vrot.slane %v2464, 1
        %v2518 = vsel %vm1424, %v2516, %v2517
        %v2519 = vrot.slane %v2465, 1
        %v2520 = vsel %vm1424, %v2514, %v2519
        %v2521 = vrot.slane %v2466, 1
        %v2522 = vsel %vm1424, %v2517, %v2521
        %v2523 = vrot.slane %v2467, 1
        %v2524 = vrot.slane %v2469, 1
        %v2525 = vsel %vm1424, %v2523, %v2524
        %v2526 = vrot.slane %v2468, 1
        %v2527 = vrot.slane %v2470, 1
        %v2528 = vsel %vm1424, %v2526, %v2527
        %v2529 = vrot.slane %v2471, 1
        %v2530 = vsel %vm1424, %v2524, %v2529
        %v2531 = vrot.slane %v2472, 1
        %v2532 = vsel %vm1424, %v2527, %v2531
        %v2533 = vrot.slane %v2473, 1
        %v2534 = vrot.slane %v2475, 1
        %v2535 = vsel %vm1424, %v2533, %v2534
        %v2536 = vrot.slane %v2474, 1
        %v2537 = vrot.slane %v2476, 1
        %v2538 = vsel %vm1424, %v2536, %v2537
        %v2539 = vrot.slane %v2477, 1
        %v2540 = vsel %vm1424, %v2534, %v2539
        %v2541 = vrot.slane %v2478, 1
        %v2542 = vsel %vm1424, %v2537, %v2541
        %v2559 = vadd.f32 %v2423, %v2505
        %v2560 = vadd.f32 %v2424, %v2508
        %v2561 = vadd.f32 %v2425, %v2510
        %v2562 = vadd.f32 %v2426, %v2512
        %v2563 = vadd.f32 %v2427, %v2515
        %v2564 = vadd.f32 %v2428, %v2518
        %v2565 = vadd.f32 %v2429, %v2520
        %v2566 = vadd.f32 %v2430, %v2522
        %v2567 = vadd.f32 %v2431, %v2525
        %v2568 = vadd.f32 %v2432, %v2528
        %v2569 = vadd.f32 %v2433, %v2530
        %v2570 = vadd.f32 %v2434, %v2532
        %v2571 = vadd.f32 %v2435, %v2535
        %v2572 = vadd.f32 %v2436, %v2538
        %v2573 = vadd.f32 %v2437, %v2540
        %v2574 = vadd.f32 %v2438, %v2542
        %v2575 = vld [vmem:[%s2406] sm:$0xfc]
        %v2576 = vld [vmem:[%s2406 + $0x8] sm:$0xfc]
        %v2577 = vld [vmem:[%s2406 + $0x20] sm:$0x3]
        %v2578 = vld [vmem:[%s2406 + $0x28] sm:$0x3]
        %v2579 = vld [vmem:[%s2406 + $0x30] sm:$0xfc]
        %v2580 = vld [vmem:[%s2406 + $0x38] sm:$0xfc]
        %v2581 = vld [vmem:[%s2406 + $0x50] sm:$0x3]
        %v2582 = vld [vmem:[%s2406 + $0x58] sm:$0x3]
        %v2583 = vld [vmem:[%s2406 + $0x60] sm:$0xfc]
        %v2584 = vld [vmem:[%s2406 + $0x68] sm:$0xfc]
        %v2585 = vld [vmem:[%s2406 + $0x80] sm:$0x3]
        %v2586 = vld [vmem:[%s2406 + $0x88] sm:$0x3]
        %v2587 = vld [vmem:[%s2406 + $0x90] sm:$0xfc]
        %v2588 = vld [vmem:[%s2406 + $0x98] sm:$0xfc]
        %v2589 = vld [vmem:[%s2406 + $0xb0] sm:$0x3]
        %v2590 = vld [vmem:[%s2406 + $0xb8] sm:$0x3]
        %v2591 = vmul.f32 %v2575, %v1516
        %v2592 = vmul.f32 %v2576, %v1520
        %v2593 = vmul.f32 %v2409, %v1516
        %v2594 = vmul.f32 %v2410, %v1520
        %v2595 = vmul.f32 %v2577, %v1516
        %v2596 = vmul.f32 %v2578, %v1520
        %v2597 = vmul.f32 %v2579, %v1516
        %v2598 = vmul.f32 %v2580, %v1520
        %v2599 = vmul.f32 %v2413, %v1516
        %v2600 = vmul.f32 %v2414, %v1520
        %v2601 = vmul.f32 %v2581, %v1516
        %v2602 = vmul.f32 %v2582, %v1520
        %v2603 = vmul.f32 %v2583, %v1516
        %v2604 = vmul.f32 %v2584, %v1520
        %v2605 = vmul.f32 %v2417, %v1516
        %v2606 = vmul.f32 %v2418, %v1520
        %v2607 = vmul.f32 %v2585, %v1516
        %v2608 = vmul.f32 %v2586, %v1520
        %v2609 = vmul.f32 %v2587, %v1516
        %v2610 = vmul.f32 %v2588, %v1520
        %v2611 = vmul.f32 %v2421, %v1516
        %v2612 = vmul.f32 %v2422, %v1520
        %v2613 = vmul.f32 %v2589, %v1516
        %v2614 = vmul.f32 %v2590, %v1520
        %v2639 = vrot.slane %v2591, 2
        %v2640 = vrot.slane %v2593, 2
        %v2641 = vsel %vm1569, %v2639, %v2640
        %v2642 = vrot.slane %v2592, 2
        %v2643 = vrot.slane %v2594, 2
        %v2644 = vsel %vm1569, %v2642, %v2643
        %v2645 = vrot.slane %v2595, 2
        %v2646 = vsel %vm1569, %v2640, %v2645
        %v2647 = vrot.slane %v2596, 2
        %v2648 = vsel %vm1569, %v2643, %v2647
        %v2649 = vrot.slane %v2597, 2
        %v2650 = vrot.slane %v2599, 2
        %v2651 = vsel %vm1569, %v2649, %v2650
        %v2652 = vrot.slane %v2598, 2
        %v2653 = vrot.slane %v2600, 2
        %v2654 = vsel %vm1569, %v2652, %v2653
        %v2655 = vrot.slane %v2601, 2
        %v2656 = vsel %vm1569, %v2650, %v2655
        %v2657 = vrot.slane %v2602, 2
        %v2658 = vsel %vm1569, %v2653, %v2657
        %v2659 = vrot.slane %v2603, 2
        %v2660 = vrot.slane %v2605, 2
        %v2661 = vsel %vm1569, %v2659, %v2660
        %v2662 = vrot.slane %v2604, 2
        %v2663 = vrot.slane %v2606, 2
        %v2664 = vsel %vm1569, %v2662, %v2663
        %v2665 = vrot.slane %v2607, 2
        %v2666 = vsel %vm1569, %v2660, %v2665
        %v2667 = vrot.slane %v2608, 2
        %v2668 = vsel %vm1569, %v2663, %v2667
        %v2669 = vrot.slane %v2609, 2
        %v2670 = vrot.slane %v2611, 2
        %v2671 = vsel %vm1569, %v2669, %v2670
        %v2672 = vrot.slane %v2610, 2
        %v2673 = vrot.slane %v2612, 2
        %v2674 = vsel %vm1569, %v2672, %v2673
        %v2675 = vrot.slane %v2613, 2
        %v2676 = vsel %vm1569, %v2670, %v2675
        %v2677 = vrot.slane %v2614, 2
        %v2678 = vsel %vm1569, %v2673, %v2677
        %v2695 = vadd.f32 %v2559, %v2641
        %v2696 = vadd.f32 %v2560, %v2644
        %v2697 = vadd.f32 %v2561, %v2646
        %v2698 = vadd.f32 %v2562, %v2648
        %v2699 = vadd.f32 %v2563, %v2651
        %v2700 = vadd.f32 %v2564, %v2654
        %v2701 = vadd.f32 %v2565, %v2656
        %v2702 = vadd.f32 %v2566, %v2658
        %v2703 = vadd.f32 %v2567, %v2661
        %v2704 = vadd.f32 %v2568, %v2664
        %v2705 = vadd.f32 %v2569, %v2666
        %v2706 = vadd.f32 %v2570, %v2668
        %v2707 = vadd.f32 %v2571, %v2671
        %v2708 = vadd.f32 %v2572, %v2674
        %v2709 = vadd.f32 %v2573, %v2676
        %v2710 = vadd.f32 %v2574, %v2678
        %s2711 = scalar_lea.vmem [#allocation2], 240
        %v2712 = vld [vmem:[%s2711] sm:$0xff]
        %v2713 = vld [vmem:[%s2711 + $0x8] sm:$0xff]
        %v2714 = vld [vmem:[%s2711 + $0x10] sm:$0xff]
        %v2715 = vld [vmem:[%s2711 + $0x18] sm:$0xff]
        %v2716 = vld [vmem:[%s2711 + $0x30] sm:$0xff]
        %v2717 = vld [vmem:[%s2711 + $0x38] sm:$0xff]
        %v2718 = vld [vmem:[%s2711 + $0x40] sm:$0xff]
        %v2719 = vld [vmem:[%s2711 + $0x48] sm:$0xff]
        %v2720 = vld [vmem:[%s2711 + $0x60] sm:$0xff]
        %v2721 = vld [vmem:[%s2711 + $0x68] sm:$0xff]
        %v2722 = vld [vmem:[%s2711 + $0x70] sm:$0xff]
        %v2723 = vld [vmem:[%s2711 + $0x78] sm:$0xff]
        %v2724 = vld [vmem:[%s2711 + $0x90] sm:$0xff]
        %v2725 = vld [vmem:[%s2711 + $0x98] sm:$0xff]
        %v2726 = vld [vmem:[%s2711 + $0xa0] sm:$0xff]
        %v2727 = vld [vmem:[%s2711 + $0xa8] sm:$0xff]
        %v2728 = vmul.f32 %v2712, %v1661
        %v2729 = vmul.f32 %v2713, %v1665
        %v2730 = vmul.f32 %v2714, %v1661
        %v2731 = vmul.f32 %v2715, %v1665
        %v2732 = vmul.f32 %v2716, %v1661
        %v2733 = vmul.f32 %v2717, %v1665
        %v2734 = vmul.f32 %v2718, %v1661
        %v2735 = vmul.f32 %v2719, %v1665
        %v2736 = vmul.f32 %v2720, %v1661
        %v2737 = vmul.f32 %v2721, %v1665
        %v2738 = vmul.f32 %v2722, %v1661
        %v2739 = vmul.f32 %v2723, %v1665
        %v2740 = vmul.f32 %v2724, %v1661
        %v2741 = vmul.f32 %v2725, %v1665
        %v2742 = vmul.f32 %v2726, %v1661
        %v2743 = vmul.f32 %v2727, %v1665
        %v2744 = vadd.f32 %v2695, %v2728
        %v2745 = vadd.f32 %v2696, %v2729
        %v2746 = vadd.f32 %v2697, %v2730
        %v2747 = vadd.f32 %v2698, %v2731
        %v2748 = vadd.f32 %v2699, %v2732
        %v2749 = vadd.f32 %v2700, %v2733
        %v2750 = vadd.f32 %v2701, %v2734
        %v2751 = vadd.f32 %v2702, %v2735
        %v2752 = vadd.f32 %v2703, %v2736
        %v2753 = vadd.f32 %v2704, %v2737
        %v2754 = vadd.f32 %v2705, %v2738
        %v2755 = vadd.f32 %v2706, %v2739
        %v2756 = vadd.f32 %v2707, %v2740
        %v2757 = vadd.f32 %v2708, %v2741
        %v2758 = vadd.f32 %v2709, %v2742
        %v2759 = vadd.f32 %v2710, %v2743
        %v2760 = vld [vmem:[%s2711] sm:$0xfe]
        %v2761 = vld [vmem:[%s2711 + $0x8] sm:$0xfe]
        %v2762 = vld [vmem:[%s2711 + $0x20] sm:$0x1]
        %v2763 = vld [vmem:[%s2711 + $0x28] sm:$0x1]
        %v2764 = vld [vmem:[%s2711 + $0x30] sm:$0xfe]
        %v2765 = vld [vmem:[%s2711 + $0x38] sm:$0xfe]
        %v2766 = vld [vmem:[%s2711 + $0x50] sm:$0x1]
        %v2767 = vld [vmem:[%s2711 + $0x58] sm:$0x1]
        %v2768 = vld [vmem:[%s2711 + $0x60] sm:$0xfe]
        %v2769 = vld [vmem:[%s2711 + $0x68] sm:$0xfe]
        %v2770 = vld [vmem:[%s2711 + $0x80] sm:$0x1]
        %v2771 = vld [vmem:[%s2711 + $0x88] sm:$0x1]
        %v2772 = vld [vmem:[%s2711 + $0x90] sm:$0xfe]
        %v2773 = vld [vmem:[%s2711 + $0x98] sm:$0xfe]
        %v2774 = vld [vmem:[%s2711 + $0xb0] sm:$0x1]
        %v2775 = vld [vmem:[%s2711 + $0xb8] sm:$0x1]
        %v2776 = vmul.f32 %v2760, %v1717
        %v2777 = vmul.f32 %v2761, %v1721
        %v2778 = vmul.f32 %v2714, %v1717
        %v2779 = vmul.f32 %v2715, %v1721
        %v2780 = vmul.f32 %v2762, %v1717
        %v2781 = vmul.f32 %v2763, %v1721
        %v2782 = vmul.f32 %v2764, %v1717
        %v2783 = vmul.f32 %v2765, %v1721
        %v2784 = vmul.f32 %v2718, %v1717
        %v2785 = vmul.f32 %v2719, %v1721
        %v2786 = vmul.f32 %v2766, %v1717
        %v2787 = vmul.f32 %v2767, %v1721
        %v2788 = vmul.f32 %v2768, %v1717
        %v2789 = vmul.f32 %v2769, %v1721
        %v2790 = vmul.f32 %v2722, %v1717
        %v2791 = vmul.f32 %v2723, %v1721
        %v2792 = vmul.f32 %v2770, %v1717
        %v2793 = vmul.f32 %v2771, %v1721
        %v2794 = vmul.f32 %v2772, %v1717
        %v2795 = vmul.f32 %v2773, %v1721
        %v2796 = vmul.f32 %v2726, %v1717
        %v2797 = vmul.f32 %v2727, %v1721
        %v2798 = vmul.f32 %v2774, %v1717
        %v2799 = vmul.f32 %v2775, %v1721
        %v2824 = vrot.slane %v2776, 1
        %v2825 = vrot.slane %v2778, 1
        %v2826 = vsel %vm1424, %v2824, %v2825
        %v2827 = vrot.slane %v2777, 1
        %v2828 = vrot.slane %v2779, 1
        %v2829 = vsel %vm1424, %v2827, %v2828
        %v2830 = vrot.slane %v2780, 1
        %v2831 = vsel %vm1424, %v2825, %v2830
        %v2832 = vrot.slane %v2781, 1
        %v2833 = vsel %vm1424, %v2828, %v2832
        %v2834 = vrot.slane %v2782, 1
        %v2835 = vrot.slane %v2784, 1
        %v2836 = vsel %vm1424, %v2834, %v2835
        %v2837 = vrot.slane %v2783, 1
        %v2838 = vrot.slane %v2785, 1
        %v2839 = vsel %vm1424, %v2837, %v2838
        %v2840 = vrot.slane %v2786, 1
        %v2841 = vsel %vm1424, %v2835, %v2840
        %v2842 = vrot.slane %v2787, 1
        %v2843 = vsel %vm1424, %v2838, %v2842
        %v2844 = vrot.slane %v2788, 1
        %v2845 = vrot.slane %v2790, 1
        %v2846 = vsel %vm1424, %v2844, %v2845
        %v2847 = vrot.slane %v2789, 1
        %v2848 = vrot.slane %v2791, 1
        %v2849 = vsel %vm1424, %v2847, %v2848
        %v2850 = vrot.slane %v2792, 1
        %v2851 = vsel %vm1424, %v2845, %v2850
        %v2852 = vrot.slane %v2793, 1
        %v2853 = vsel %vm1424, %v2848, %v2852
        %v2854 = vrot.slane %v2794, 1
        %v2855 = vrot.slane %v2796, 1
        %v2856 = vsel %vm1424, %v2854, %v2855
        %v2857 = vrot.slane %v2795, 1
        %v2858 = vrot.slane %v2797, 1
        %v2859 = vsel %vm1424, %v2857, %v2858
        %v2860 = vrot.slane %v2798, 1
        %v2861 = vsel %vm1424, %v2855, %v2860
        %v2862 = vrot.slane %v2799, 1
        %v2863 = vsel %vm1424, %v2858, %v2862
        %v2880 = vadd.f32 %v2744, %v2826
        %v2881 = vadd.f32 %v2745, %v2829
        %v2882 = vadd.f32 %v2746, %v2831
        %v2883 = vadd.f32 %v2747, %v2833
        %v2884 = vadd.f32 %v2748, %v2836
        %v2885 = vadd.f32 %v2749, %v2839
        %v2886 = vadd.f32 %v2750, %v2841
        %v2887 = vadd.f32 %v2751, %v2843
        %v2888 = vadd.f32 %v2752, %v2846
        %v2889 = vadd.f32 %v2753, %v2849
        %v2890 = vadd.f32 %v2754, %v2851
        %v2891 = vadd.f32 %v2755, %v2853
        %v2892 = vadd.f32 %v2756, %v2856
        %v2893 = vadd.f32 %v2757, %v2859
        %v2894 = vadd.f32 %v2758, %v2861
        %v2895 = vadd.f32 %v2759, %v2863
        %v2896 = vld [vmem:[%s2711] sm:$0xfc]
        %v2897 = vld [vmem:[%s2711 + $0x8] sm:$0xfc]
        %v2898 = vld [vmem:[%s2711 + $0x20] sm:$0x3]
        %v2899 = vld [vmem:[%s2711 + $0x28] sm:$0x3]
        %v2900 = vld [vmem:[%s2711 + $0x30] sm:$0xfc]
        %v2901 = vld [vmem:[%s2711 + $0x38] sm:$0xfc]
        %v2902 = vld [vmem:[%s2711 + $0x50] sm:$0x3]
        %v2903 = vld [vmem:[%s2711 + $0x58] sm:$0x3]
        %v2904 = vld [vmem:[%s2711 + $0x60] sm:$0xfc]
        %v2905 = vld [vmem:[%s2711 + $0x68] sm:$0xfc]
        %v2906 = vld [vmem:[%s2711 + $0x80] sm:$0x3]
        %v2907 = vld [vmem:[%s2711 + $0x88] sm:$0x3]
        %v2908 = vld [vmem:[%s2711 + $0x90] sm:$0xfc]
        %v2909 = vld [vmem:[%s2711 + $0x98] sm:$0xfc]
        %v2910 = vld [vmem:[%s2711 + $0xb0] sm:$0x3]
        %v2911 = vld [vmem:[%s2711 + $0xb8] sm:$0x3]
        %v2912 = vmul.f32 %v2896, %v1861
        %v2913 = vmul.f32 %v2897, %v1865
        %v2914 = vmul.f32 %v2714, %v1861
        %v2915 = vmul.f32 %v2715, %v1865
        %v2916 = vmul.f32 %v2898, %v1861
        %v2917 = vmul.f32 %v2899, %v1865
        %v2918 = vmul.f32 %v2900, %v1861
        %v2919 = vmul.f32 %v2901, %v1865
        %v2920 = vmul.f32 %v2718, %v1861
        %v2921 = vmul.f32 %v2719, %v1865
        %v2922 = vmul.f32 %v2902, %v1861
        %v2923 = vmul.f32 %v2903, %v1865
        %v2924 = vmul.f32 %v2904, %v1861
        %v2925 = vmul.f32 %v2905, %v1865
        %v2926 = vmul.f32 %v2722, %v1861
        %v2927 = vmul.f32 %v2723, %v1865
        %v2928 = vmul.f32 %v2906, %v1861
        %v2929 = vmul.f32 %v2907, %v1865
        %v2930 = vmul.f32 %v2908, %v1861
        %v2931 = vmul.f32 %v2909, %v1865
        %v2932 = vmul.f32 %v2726, %v1861
        %v2933 = vmul.f32 %v2727, %v1865
        %v2934 = vmul.f32 %v2910, %v1861
        %v2935 = vmul.f32 %v2911, %v1865
        %v2960 = vrot.slane %v2912, 2
        %v2961 = vrot.slane %v2914, 2
        %v2962 = vsel %vm1569, %v2960, %v2961
        %v2963 = vrot.slane %v2913, 2
        %v2964 = vrot.slane %v2915, 2
        %v2965 = vsel %vm1569, %v2963, %v2964
        %v2966 = vrot.slane %v2916, 2
        %v2967 = vsel %vm1569, %v2961, %v2966
        %v2968 = vrot.slane %v2917, 2
        %v2969 = vsel %vm1569, %v2964, %v2968
        %v2970 = vrot.slane %v2918, 2
        %v2971 = vrot.slane %v2920, 2
        %v2972 = vsel %vm1569, %v2970, %v2971
        %v2973 = vrot.slane %v2919, 2
        %v2974 = vrot.slane %v2921, 2
        %v2975 = vsel %vm1569, %v2973, %v2974
        %v2976 = vrot.slane %v2922, 2
        %v2977 = vsel %vm1569, %v2971, %v2976
        %v2978 = vrot.slane %v2923, 2
        %v2979 = vsel %vm1569, %v2974, %v2978
        %v2980 = vrot.slane %v2924, 2
        %v2981 = vrot.slane %v2926, 2
        %v2982 = vsel %vm1569, %v2980, %v2981
        %v2983 = vrot.slane %v2925, 2
        %v2984 = vrot.slane %v2927, 2
        %v2985 = vsel %vm1569, %v2983, %v2984
        %v2986 = vrot.slane %v2928, 2
        %v2987 = vsel %vm1569, %v2981, %v2986
        %v2988 = vrot.slane %v2929, 2
        %v2989 = vsel %vm1569, %v2984, %v2988
        %v2990 = vrot.slane %v2930, 2
        %v2991 = vrot.slane %v2932, 2
        %v2992 = vsel %vm1569, %v2990, %v2991
        %v2993 = vrot.slane %v2931, 2
        %v2994 = vrot.slane %v2933, 2
        %v2995 = vsel %vm1569, %v2993, %v2994
        %v2996 = vrot.slane %v2934, 2
        %v2997 = vsel %vm1569, %v2991, %v2996
        %v2998 = vrot.slane %v2935, 2
        %v2999 = vsel %vm1569, %v2994, %v2998
        %v3016 = vadd.f32 %v2880, %v2962
        %v3017 = vadd.f32 %v2881, %v2965
        %v3018 = vadd.f32 %v2882, %v2967
        %v3019 = vadd.f32 %v2883, %v2969
        %v3020 = vadd.f32 %v2884, %v2972
        %v3021 = vadd.f32 %v2885, %v2975
        %v3022 = vadd.f32 %v2886, %v2977
        %v3023 = vadd.f32 %v2887, %v2979
        %v3024 = vadd.f32 %v2888, %v2982
        %v3025 = vadd.f32 %v2889, %v2985
        %v3026 = vadd.f32 %v2890, %v2987
        %v3027 = vadd.f32 %v2891, %v2989
        %v3028 = vadd.f32 %v2892, %v2992
        %v3029 = vadd.f32 %v2893, %v2995
        %v3030 = vadd.f32 %v2894, %v2997
        %v3031 = vadd.f32 %v2895, %v2999
        %s3032 = scalar_lea.vmem [#allocation2], 288
        %v3033 = vld [vmem:[%s3032] sm:$0xff]
        %v3034 = vld [vmem:[%s3032 + $0x8] sm:$0xff]
        %v3035 = vld [vmem:[%s3032 + $0x10] sm:$0xff]
        %v3036 = vld [vmem:[%s3032 + $0x18] sm:$0xff]
        %v3037 = vld [vmem:[%s3032 + $0x30] sm:$0xff]
        %v3038 = vld [vmem:[%s3032 + $0x38] sm:$0xff]
        %v3039 = vld [vmem:[%s3032 + $0x40] sm:$0xff]
        %v3040 = vld [vmem:[%s3032 + $0x48] sm:$0xff]
        %v3041 = vld [vmem:[%s3032 + $0x60] sm:$0xff]
        %v3042 = vld [vmem:[%s3032 + $0x68] sm:$0xff]
        %v3043 = vld [vmem:[%s3032 + $0x70] sm:$0xff]
        %v3044 = vld [vmem:[%s3032 + $0x78] sm:$0xff]
        %v3045 = vld [vmem:[%s3032 + $0x90] sm:$0xff]
        %v3046 = vld [vmem:[%s3032 + $0x98] sm:$0xff]
        %v3047 = vld [vmem:[%s3032 + $0xa0] sm:$0xff]
        %v3048 = vld [vmem:[%s3032 + $0xa8] sm:$0xff]
        %v3049 = vmul.f32 %v3033, %v2006
        %v3050 = vmul.f32 %v3034, %v2010
        %v3051 = vmul.f32 %v3035, %v2006
        %v3052 = vmul.f32 %v3036, %v2010
        %v3053 = vmul.f32 %v3037, %v2006
        %v3054 = vmul.f32 %v3038, %v2010
        %v3055 = vmul.f32 %v3039, %v2006
        %v3056 = vmul.f32 %v3040, %v2010
        %v3057 = vmul.f32 %v3041, %v2006
        %v3058 = vmul.f32 %v3042, %v2010
        %v3059 = vmul.f32 %v3043, %v2006
        %v3060 = vmul.f32 %v3044, %v2010
        %v3061 = vmul.f32 %v3045, %v2006
        %v3062 = vmul.f32 %v3046, %v2010
        %v3063 = vmul.f32 %v3047, %v2006
        %v3064 = vmul.f32 %v3048, %v2010
        %v3065 = vadd.f32 %v3016, %v3049
        %v3066 = vadd.f32 %v3017, %v3050
        %v3067 = vadd.f32 %v3018, %v3051
        %v3068 = vadd.f32 %v3019, %v3052
        %v3069 = vadd.f32 %v3020, %v3053
        %v3070 = vadd.f32 %v3021, %v3054
        %v3071 = vadd.f32 %v3022, %v3055
        %v3072 = vadd.f32 %v3023, %v3056
        %v3073 = vadd.f32 %v3024, %v3057
        %v3074 = vadd.f32 %v3025, %v3058
        %v3075 = vadd.f32 %v3026, %v3059
        %v3076 = vadd.f32 %v3027, %v3060
        %v3077 = vadd.f32 %v3028, %v3061
        %v3078 = vadd.f32 %v3029, %v3062
        %v3079 = vadd.f32 %v3030, %v3063
        %v3080 = vadd.f32 %v3031, %v3064
        %v3081 = vld [vmem:[%s3032] sm:$0xfe]
        %v3082 = vld [vmem:[%s3032 + $0x8] sm:$0xfe]
        %v3083 = vld [vmem:[%s3032 + $0x20] sm:$0x1]
        %v3084 = vld [vmem:[%s3032 + $0x28] sm:$0x1]
        %v3085 = vld [vmem:[%s3032 + $0x30] sm:$0xfe]
        %v3086 = vld [vmem:[%s3032 + $0x38] sm:$0xfe]
        %v3087 = vld [vmem:[%s3032 + $0x50] sm:$0x1]
        %v3088 = vld [vmem:[%s3032 + $0x58] sm:$0x1]
        %v3089 = vld [vmem:[%s3032 + $0x60] sm:$0xfe]
        %v3090 = vld [vmem:[%s3032 + $0x68] sm:$0xfe]
        %v3091 = vld [vmem:[%s3032 + $0x80] sm:$0x1]
        %v3092 = vld [vmem:[%s3032 + $0x88] sm:$0x1]
        %v3093 = vld [vmem:[%s3032 + $0x90] sm:$0xfe]
        %v3094 = vld [vmem:[%s3032 + $0x98] sm:$0xfe]
        %v3095 = vld [vmem:[%s3032 + $0xb0] sm:$0x1]
        %v3096 = vld [vmem:[%s3032 + $0xb8] sm:$0x1]
        %v3097 = vmul.f32 %v3081, %v2062
        %v3098 = vmul.f32 %v3082, %v2066
        %v3099 = vmul.f32 %v3035, %v2062
        %v3100 = vmul.f32 %v3036, %v2066
        %v3101 = vmul.f32 %v3083, %v2062
        %v3102 = vmul.f32 %v3084, %v2066
        %v3103 = vmul.f32 %v3085, %v2062
        %v3104 = vmul.f32 %v3086, %v2066
        %v3105 = vmul.f32 %v3039, %v2062
        %v3106 = vmul.f32 %v3040, %v2066
        %v3107 = vmul.f32 %v3087, %v2062
        %v3108 = vmul.f32 %v3088, %v2066
        %v3109 = vmul.f32 %v3089, %v2062
        %v3110 = vmul.f32 %v3090, %v2066
        %v3111 = vmul.f32 %v3043, %v2062
        %v3112 = vmul.f32 %v3044, %v2066
        %v3113 = vmul.f32 %v3091, %v2062
        %v3114 = vmul.f32 %v3092, %v2066
        %v3115 = vmul.f32 %v3093, %v2062
        %v3116 = vmul.f32 %v3094, %v2066
        %v3117 = vmul.f32 %v3047, %v2062
        %v3118 = vmul.f32 %v3048, %v2066
        %v3119 = vmul.f32 %v3095, %v2062
        %v3120 = vmul.f32 %v3096, %v2066
        %v3145 = vrot.slane %v3097, 1
        %v3146 = vrot.slane %v3099, 1
        %v3147 = vsel %vm1424, %v3145, %v3146
        %v3148 = vrot.slane %v3098, 1
        %v3149 = vrot.slane %v3100, 1
        %v3150 = vsel %vm1424, %v3148, %v3149
        %v3151 = vrot.slane %v3101, 1
        %v3152 = vsel %vm1424, %v3146, %v3151
        %v3153 = vrot.slane %v3102, 1
        %v3154 = vsel %vm1424, %v3149, %v3153
        %v3155 = vrot.slane %v3103, 1
        %v3156 = vrot.slane %v3105, 1
        %v3157 = vsel %vm1424, %v3155, %v3156
        %v3158 = vrot.slane %v3104, 1
        %v3159 = vrot.slane %v3106, 1
        %v3160 = vsel %vm1424, %v3158, %v3159
        %v3161 = vrot.slane %v3107, 1
        %v3162 = vsel %vm1424, %v3156, %v3161
        %v3163 = vrot.slane %v3108, 1
        %v3164 = vsel %vm1424, %v3159, %v3163
        %v3165 = vrot.slane %v3109, 1
        %v3166 = vrot.slane %v3111, 1
        %v3167 = vsel %vm1424, %v3165, %v3166
        %v3168 = vrot.slane %v3110, 1
        %v3169 = vrot.slane %v3112, 1
        %v3170 = vsel %vm1424, %v3168, %v3169
        %v3171 = vrot.slane %v3113, 1
        %v3172 = vsel %vm1424, %v3166, %v3171
        %v3173 = vrot.slane %v3114, 1
        %v3174 = vsel %vm1424, %v3169, %v3173
        %v3175 = vrot.slane %v3115, 1
        %v3176 = vrot.slane %v3117, 1
        %v3177 = vsel %vm1424, %v3175, %v3176
        %v3178 = vrot.slane %v3116, 1
        %v3179 = vrot.slane %v3118, 1
        %v3180 = vsel %vm1424, %v3178, %v3179
        %v3181 = vrot.slane %v3119, 1
        %v3182 = vsel %vm1424, %v3176, %v3181
        %v3183 = vrot.slane %v3120, 1
        %v3184 = vsel %vm1424, %v3179, %v3183
        %v3201 = vadd.f32 %v3065, %v3147
        %v3202 = vadd.f32 %v3066, %v3150
        %v3203 = vadd.f32 %v3067, %v3152
        %v3204 = vadd.f32 %v3068, %v3154
        %v3205 = vadd.f32 %v3069, %v3157
        %v3206 = vadd.f32 %v3070, %v3160
        %v3207 = vadd.f32 %v3071, %v3162
        %v3208 = vadd.f32 %v3072, %v3164
        %v3209 = vadd.f32 %v3073, %v3167
        %v3210 = vadd.f32 %v3074, %v3170
        %v3211 = vadd.f32 %v3075, %v3172
        %v3212 = vadd.f32 %v3076, %v3174
        %v3213 = vadd.f32 %v3077, %v3177
        %v3214 = vadd.f32 %v3078, %v3180
        %v3215 = vadd.f32 %v3079, %v3182
        %v3216 = vadd.f32 %v3080, %v3184
        %v3217 = vld [vmem:[%s3032] sm:$0xfc]
        %v3218 = vld [vmem:[%s3032 + $0x8] sm:$0xfc]
        %v3219 = vld [vmem:[%s3032 + $0x20] sm:$0x3]
        %v3220 = vld [vmem:[%s3032 + $0x28] sm:$0x3]
        %v3221 = vld [vmem:[%s3032 + $0x30] sm:$0xfc]
        %v3222 = vld [vmem:[%s3032 + $0x38] sm:$0xfc]
        %v3223 = vld [vmem:[%s3032 + $0x50] sm:$0x3]
        %v3224 = vld [vmem:[%s3032 + $0x58] sm:$0x3]
        %v3225 = vld [vmem:[%s3032 + $0x60] sm:$0xfc]
        %v3226 = vld [vmem:[%s3032 + $0x68] sm:$0xfc]
        %v3227 = vld [vmem:[%s3032 + $0x80] sm:$0x3]
        %v3228 = vld [vmem:[%s3032 + $0x88] sm:$0x3]
        %v3229 = vld [vmem:[%s3032 + $0x90] sm:$0xfc]
        %v3230 = vld [vmem:[%s3032 + $0x98] sm:$0xfc]
        %v3231 = vld [vmem:[%s3032 + $0xb0] sm:$0x3]
        %v3232 = vld [vmem:[%s3032 + $0xb8] sm:$0x3]
        %v3233 = vmul.f32 %v3217, %v2206
        %v3234 = vmul.f32 %v3218, %v2210
        %v3235 = vmul.f32 %v3035, %v2206
        %v3236 = vmul.f32 %v3036, %v2210
        %v3237 = vmul.f32 %v3219, %v2206
        %v3238 = vmul.f32 %v3220, %v2210
        %v3239 = vmul.f32 %v3221, %v2206
        %v3240 = vmul.f32 %v3222, %v2210
        %v3241 = vmul.f32 %v3039, %v2206
        %v3242 = vmul.f32 %v3040, %v2210
        %v3243 = vmul.f32 %v3223, %v2206
        %v3244 = vmul.f32 %v3224, %v2210
        %v3245 = vmul.f32 %v3225, %v2206
        %v3246 = vmul.f32 %v3226, %v2210
        %v3247 = vmul.f32 %v3043, %v2206
        %v3248 = vmul.f32 %v3044, %v2210
        %v3249 = vmul.f32 %v3227, %v2206
        %v3250 = vmul.f32 %v3228, %v2210
        %v3251 = vmul.f32 %v3229, %v2206
        %v3252 = vmul.f32 %v3230, %v2210
        %v3253 = vmul.f32 %v3047, %v2206
        %v3254 = vmul.f32 %v3048, %v2210
        %v3255 = vmul.f32 %v3231, %v2206
        %v3256 = vmul.f32 %v3232, %v2210
        %v3281 = vrot.slane %v3233, 2
        %v3282 = vrot.slane %v3235, 2
        %v3283 = vsel %vm1569, %v3281, %v3282
        %v3284 = vrot.slane %v3234, 2
        %v3285 = vrot.slane %v3236, 2
        %v3286 = vsel %vm1569, %v3284, %v3285
        %v3287 = vrot.slane %v3237, 2
        %v3288 = vsel %vm1569, %v3282, %v3287
        %v3289 = vrot.slane %v3238, 2
        %v3290 = vsel %vm1569, %v3285, %v3289
        %v3291 = vrot.slane %v3239, 2
        %v3292 = vrot.slane %v3241, 2
        %v3293 = vsel %vm1569, %v3291, %v3292
        %v3294 = vrot.slane %v3240, 2
        %v3295 = vrot.slane %v3242, 2
        %v3296 = vsel %vm1569, %v3294, %v3295
        %v3297 = vrot.slane %v3243, 2
        %v3298 = vsel %vm1569, %v3292, %v3297
        %v3299 = vrot.slane %v3244, 2
        %v3300 = vsel %vm1569, %v3295, %v3299
        %v3301 = vrot.slane %v3245, 2
        %v3302 = vrot.slane %v3247, 2
        %v3303 = vsel %vm1569, %v3301, %v3302
        %v3304 = vrot.slane %v3246, 2
        %v3305 = vrot.slane %v3248, 2
        %v3306 = vsel %vm1569, %v3304, %v3305
        %v3307 = vrot.slane %v3249, 2
        %v3308 = vsel %vm1569, %v3302, %v3307
        %v3309 = vrot.slane %v3250, 2
        %v3310 = vsel %vm1569, %v3305, %v3309
        %v3311 = vrot.slane %v3251, 2
        %v3312 = vrot.slane %v3253, 2
        %v3313 = vsel %vm1569, %v3311, %v3312
        %v3314 = vrot.slane %v3252, 2
        %v3315 = vrot.slane %v3254, 2
        %v3316 = vsel %vm1569, %v3314, %v3315
        %v3317 = vrot.slane %v3255, 2
        %v3318 = vsel %vm1569, %v3312, %v3317
        %v3319 = vrot.slane %v3256, 2
        %v3320 = vsel %vm1569, %v3315, %v3319
        %v3337 = vadd.f32 %v3201, %v3283
        %v3338 = vadd.f32 %v3202, %v3286
        %v3339 = vadd.f32 %v3203, %v3288
        %v3340 = vadd.f32 %v3204, %v3290
        %v3341 = vadd.f32 %v3205, %v3293
        %v3342 = vadd.f32 %v3206, %v3296
        %v3343 = vadd.f32 %v3207, %v3298
        %v3344 = vadd.f32 %v3208, %v3300
        %v3345 = vadd.f32 %v3209, %v3303
        %v3346 = vadd.f32 %v3210, %v3306
        %v3347 = vadd.f32 %v3211, %v3308
        %v3348 = vadd.f32 %v3212, %v3310
        %v3349 = vadd.f32 %v3213, %v3313
        %v3350 = vadd.f32 %v3214, %v3316
        %v3351 = vadd.f32 %v3215, %v3318
        %v3352 = vadd.f32 %v3216, %v3320
        %v3353 = vadd.f32 %v3337, %v2335
        %v3354 = vadd.f32 %v3338, %v2339
        %v3355 = vadd.f32 %v3339, %v2335
        %v3356 = vadd.f32 %v3340, %v2339
        %v3357 = vadd.f32 %v3341, %v2335
        %v3358 = vadd.f32 %v3342, %v2339
        %v3359 = vadd.f32 %v3343, %v2335
        %v3360 = vadd.f32 %v3344, %v2339
        %v3361 = vadd.f32 %v3345, %v2335
        %v3362 = vadd.f32 %v3346, %v2339
        %v3363 = vadd.f32 %v3347, %v2335
        %v3364 = vadd.f32 %v3348, %v2339
        %v3365 = vadd.f32 %v3349, %v2335
        %v3366 = vadd.f32 %v3350, %v2339
        %v3367 = vadd.f32 %v3351, %v2335
        %v3368 = vadd.f32 %v3352, %v2339
        %v3369 = vmax.f32 %v3353, 0.0
        %v3370 = vmax.f32 %v3354, 0.0
        %v3371 = vmax.f32 %v3355, 0.0
        %v3372 = vmax.f32 %v3356, 0.0
        %v3373 = vmax.f32 %v3357, 0.0
        %v3374 = vmax.f32 %v3358, 0.0
        %v3375 = vmax.f32 %v3359, 0.0
        %v3376 = vmax.f32 %v3360, 0.0
        %v3377 = vmax.f32 %v3361, 0.0
        %v3378 = vmax.f32 %v3362, 0.0
        %v3379 = vmax.f32 %v3363, 0.0
        %v3380 = vmax.f32 %v3364, 0.0
        %v3381 = vmax.f32 %v3365, 0.0
        %v3382 = vmax.f32 %v3366, 0.0
        %v3383 = vmax.f32 %v3367, 0.0
        %v3384 = vmax.f32 %v3368, 0.0
        %v3385 = vmin.f32 %v3369, 6.0
        %v3386 = vmin.f32 %v3370, 6.0
        %v3387 = vmin.f32 %v3371, 6.0
        %v3388 = vmin.f32 %v3372, 6.0
        %v3389 = vmin.f32 %v3373, 6.0
        %v3390 = vmin.f32 %v3374, 6.0
        %v3391 = vmin.f32 %v3375, 6.0
        %v3392 = vmin.f32 %v3376, 6.0
        %v3393 = vmin.f32 %v3377, 6.0
        %v3394 = vmin.f32 %v3378, 6.0
        %v3395 = vmin.f32 %v3379, 6.0
        %v3396 = vmin.f32 %v3380, 6.0
        %v3397 = vmin.f32 %v3381, 6.0
        %v3398 = vmin.f32 %v3382, 6.0
        %v3399 = vmin.f32 %v3383, 6.0
        %v3400 = vmin.f32 %v3384, 6.0
        %s3401 = scalar_lea.vmem [#allocation3], 128
        %3402 = vst [vmem:[%s3401] sm:$0xff] %v3385
        %3403 = vst.msk [vmem:[%s3401 + $0x8] sm:$0xff] %vm838, %v3386
        %3404 = vst [vmem:[%s3401 + $0x10] sm:$0xff] %v3387
        %3405 = vst.msk [vmem:[%s3401 + $0x18] sm:$0xff] %vm838, %v3388
        %3406 = vst [vmem:[%s3401 + $0x20] sm:$0xff] %v3389
        %3407 = vst.msk [vmem:[%s3401 + $0x28] sm:$0xff] %vm838, %v3390
        %3408 = vst [vmem:[%s3401 + $0x30] sm:$0xff] %v3391
        %3409 = vst.msk [vmem:[%s3401 + $0x38] sm:$0xff] %vm838, %v3392
        %3410 = vst [vmem:[%s3401 + $0x40] sm:$0xff] %v3393
        %3411 = vst.msk [vmem:[%s3401 + $0x48] sm:$0xff] %vm838, %v3394
        %3412 = vst [vmem:[%s3401 + $0x50] sm:$0xff] %v3395
        %3413 = vst.msk [vmem:[%s3401 + $0x58] sm:$0xff] %vm838, %v3396
        %3414 = vst [vmem:[%s3401 + $0x60] sm:$0xff] %v3397
        %3415 = vst.msk [vmem:[%s3401 + $0x68] sm:$0xff] %vm838, %v3398
        %3416 = vst [vmem:[%s3401 + $0x70] sm:$0xff] %v3399
        %3417 = vst.msk [vmem:[%s3401 + $0x78] sm:$0xff] %vm838, %v3400
        %s3418 = scalar_lea.vmem [#allocation2], 384
        %v3419 = vld [vmem:[%s3418] sm:$0xff]
        %v3420 = vld [vmem:[%s3418 + $0x8] sm:$0xff]
        %v3421 = vld [vmem:[%s3418 + $0x10] sm:$0xff]
        %v3422 = vld [vmem:[%s3418 + $0x18] sm:$0xff]
        %v3423 = vld [vmem:[%s3418 + $0x30] sm:$0xff]
        %v3424 = vld [vmem:[%s3418 + $0x38] sm:$0xff]
        %v3425 = vld [vmem:[%s3418 + $0x40] sm:$0xff]
        %v3426 = vld [vmem:[%s3418 + $0x48] sm:$0xff]
        %v3427 = vld [vmem:[%s3418 + $0x60] sm:$0xff]
        %v3428 = vld [vmem:[%s3418 + $0x68] sm:$0xff]
        %v3429 = vld [vmem:[%s3418 + $0x70] sm:$0xff]
        %v3430 = vld [vmem:[%s3418 + $0x78] sm:$0xff]
        %v3431 = vld [vmem:[%s3418 + $0x90] sm:$0xff]
        %v3432 = vld [vmem:[%s3418 + $0x98] sm:$0xff]
        %v3433 = vld [vmem:[%s3418 + $0xa0] sm:$0xff]
        %v3434 = vld [vmem:[%s3418 + $0xa8] sm:$0xff]
        %v3435 = vmul.f32 %v3419, %v1331
        %v3436 = vmul.f32 %v3420, %v1335
        %v3437 = vmul.f32 %v3421, %v1331
        %v3438 = vmul.f32 %v3422, %v1335
        %v3439 = vmul.f32 %v3423, %v1331
        %v3440 = vmul.f32 %v3424, %v1335
        %v3441 = vmul.f32 %v3425, %v1331
        %v3442 = vmul.f32 %v3426, %v1335
        %v3443 = vmul.f32 %v3427, %v1331
        %v3444 = vmul.f32 %v3428, %v1335
        %v3445 = vmul.f32 %v3429, %v1331
        %v3446 = vmul.f32 %v3430, %v1335
        %v3447 = vmul.f32 %v3431, %v1331
        %v3448 = vmul.f32 %v3432, %v1335
        %v3449 = vmul.f32 %v3433, %v1331
        %v3450 = vmul.f32 %v3434, %v1335
        %v3451 = vld [vmem:[%s3418] sm:$0xfe]
        %v3452 = vld [vmem:[%s3418 + $0x8] sm:$0xfe]
        %v3453 = vld [vmem:[%s3418 + $0x20] sm:$0x1]
        %v3454 = vld [vmem:[%s3418 + $0x28] sm:$0x1]
        %v3455 = vld [vmem:[%s3418 + $0x30] sm:$0xfe]
        %v3456 = vld [vmem:[%s3418 + $0x38] sm:$0xfe]
        %v3457 = vld [vmem:[%s3418 + $0x50] sm:$0x1]
        %v3458 = vld [vmem:[%s3418 + $0x58] sm:$0x1]
        %v3459 = vld [vmem:[%s3418 + $0x60] sm:$0xfe]
        %v3460 = vld [vmem:[%s3418 + $0x68] sm:$0xfe]
        %v3461 = vld [vmem:[%s3418 + $0x80] sm:$0x1]
        %v3462 = vld [vmem:[%s3418 + $0x88] sm:$0x1]
        %v3463 = vld [vmem:[%s3418 + $0x90] sm:$0xfe]
        %v3464 = vld [vmem:[%s3418 + $0x98] sm:$0xfe]
        %v3465 = vld [vmem:[%s3418 + $0xb0] sm:$0x1]
        %v3466 = vld [vmem:[%s3418 + $0xb8] sm:$0x1]
        %v3467 = vmul.f32 %v3451, %v1371
        %v3468 = vmul.f32 %v3452, %v1375
        %v3469 = vmul.f32 %v3421, %v1371
        %v3470 = vmul.f32 %v3422, %v1375
        %v3471 = vmul.f32 %v3453, %v1371
        %v3472 = vmul.f32 %v3454, %v1375
        %v3473 = vmul.f32 %v3455, %v1371
        %v3474 = vmul.f32 %v3456, %v1375
        %v3475 = vmul.f32 %v3425, %v1371
        %v3476 = vmul.f32 %v3426, %v1375
        %v3477 = vmul.f32 %v3457, %v1371
        %v3478 = vmul.f32 %v3458, %v1375
        %v3479 = vmul.f32 %v3459, %v1371
        %v3480 = vmul.f32 %v3460, %v1375
        %v3481 = vmul.f32 %v3429, %v1371
        %v3482 = vmul.f32 %v3430, %v1375
        %v3483 = vmul.f32 %v3461, %v1371
        %v3484 = vmul.f32 %v3462, %v1375
        %v3485 = vmul.f32 %v3463, %v1371
        %v3486 = vmul.f32 %v3464, %v1375
        %v3487 = vmul.f32 %v3433, %v1371
        %v3488 = vmul.f32 %v3434, %v1375
        %v3489 = vmul.f32 %v3465, %v1371
        %v3490 = vmul.f32 %v3466, %v1375
        %v3515 = vrot.slane %v3467, 1
        %v3516 = vrot.slane %v3469, 1
        %v3517 = vsel %vm1424, %v3515, %v3516
        %v3518 = vrot.slane %v3468, 1
        %v3519 = vrot.slane %v3470, 1
        %v3520 = vsel %vm1424, %v3518, %v3519
        %v3521 = vrot.slane %v3471, 1
        %v3522 = vsel %vm1424, %v3516, %v3521
        %v3523 = vrot.slane %v3472, 1
        %v3524 = vsel %vm1424, %v3519, %v3523
        %v3525 = vrot.slane %v3473, 1
        %v3526 = vrot.slane %v3475, 1
        %v3527 = vsel %vm1424, %v3525, %v3526
        %v3528 = vrot.slane %v3474, 1
        %v3529 = vrot.slane %v3476, 1
        %v3530 = vsel %vm1424, %v3528, %v3529
        %v3531 = vrot.slane %v3477, 1
        %v3532 = vsel %vm1424, %v3526, %v3531
        %v3533 = vrot.slane %v3478, 1
        %v3534 = vsel %vm1424, %v3529, %v3533
        %v3535 = vrot.slane %v3479, 1
        %v3536 = vrot.slane %v3481, 1
        %v3537 = vsel %vm1424, %v3535, %v3536
        %v3538 = vrot.slane %v3480, 1
        %v3539 = vrot.slane %v3482, 1
        %v3540 = vsel %vm1424, %v3538, %v3539
        %v3541 = vrot.slane %v3483, 1
        %v3542 = vsel %vm1424, %v3536, %v3541
        %v3543 = vrot.slane %v3484, 1
        %v3544 = vsel %vm1424, %v3539, %v3543
        %v3545 = vrot.slane %v3485, 1
        %v3546 = vrot.slane %v3487, 1
        %v3547 = vsel %vm1424, %v3545, %v3546
        %v3548 = vrot.slane %v3486, 1
        %v3549 = vrot.slane %v3488, 1
        %v3550 = vsel %vm1424, %v3548, %v3549
        %v3551 = vrot.slane %v3489, 1
        %v3552 = vsel %vm1424, %v3546, %v3551
        %v3553 = vrot.slane %v3490, 1
        %v3554 = vsel %vm1424, %v3549, %v3553
        %v3571 = vadd.f32 %v3435, %v3517
        %v3572 = vadd.f32 %v3436, %v3520
        %v3573 = vadd.f32 %v3437, %v3522
        %v3574 = vadd.f32 %v3438, %v3524
        %v3575 = vadd.f32 %v3439, %v3527
        %v3576 = vadd.f32 %v3440, %v3530
        %v3577 = vadd.f32 %v3441, %v3532
        %v3578 = vadd.f32 %v3442, %v3534
        %v3579 = vadd.f32 %v3443, %v3537
        %v3580 = vadd.f32 %v3444, %v3540
        %v3581 = vadd.f32 %v3445, %v3542
        %v3582 = vadd.f32 %v3446, %v3544
        %v3583 = vadd.f32 %v3447, %v3547
        %v3584 = vadd.f32 %v3448, %v3550
        %v3585 = vadd.f32 %v3449, %v3552
        %v3586 = vadd.f32 %v3450, %v3554
        %v3587 = vld [vmem:[%s3418] sm:$0xfc]
        %v3588 = vld [vmem:[%s3418 + $0x8] sm:$0xfc]
        %v3589 = vld [vmem:[%s3418 + $0x20] sm:$0x3]
        %v3590 = vld [vmem:[%s3418 + $0x28] sm:$0x3]
        %v3591 = vld [vmem:[%s3418 + $0x30] sm:$0xfc]
        %v3592 = vld [vmem:[%s3418 + $0x38] sm:$0xfc]
        %v3593 = vld [vmem:[%s3418 + $0x50] sm:$0x3]
        %v3594 = vld [vmem:[%s3418 + $0x58] sm:$0x3]
        %v3595 = vld [vmem:[%s3418 + $0x60] sm:$0xfc]
        %v3596 = vld [vmem:[%s3418 + $0x68] sm:$0xfc]
        %v3597 = vld [vmem:[%s3418 + $0x80] sm:$0x3]
        %v3598 = vld [vmem:[%s3418 + $0x88] sm:$0x3]
        %v3599 = vld [vmem:[%s3418 + $0x90] sm:$0xfc]
        %v3600 = vld [vmem:[%s3418 + $0x98] sm:$0xfc]
        %v3601 = vld [vmem:[%s3418 + $0xb0] sm:$0x3]
        %v3602 = vld [vmem:[%s3418 + $0xb8] sm:$0x3]
        %v3603 = vmul.f32 %v3587, %v1516
        %v3604 = vmul.f32 %v3588, %v1520
        %v3605 = vmul.f32 %v3421, %v1516
        %v3606 = vmul.f32 %v3422, %v1520
        %v3607 = vmul.f32 %v3589, %v1516
        %v3608 = vmul.f32 %v3590, %v1520
        %v3609 = vmul.f32 %v3591, %v1516
        %v3610 = vmul.f32 %v3592, %v1520
        %v3611 = vmul.f32 %v3425, %v1516
        %v3612 = vmul.f32 %v3426, %v1520
        %v3613 = vmul.f32 %v3593, %v1516
        %v3614 = vmul.f32 %v3594, %v1520
        %v3615 = vmul.f32 %v3595, %v1516
        %v3616 = vmul.f32 %v3596, %v1520
        %v3617 = vmul.f32 %v3429, %v1516
        %v3618 = vmul.f32 %v3430, %v1520
        %v3619 = vmul.f32 %v3597, %v1516
        %v3620 = vmul.f32 %v3598, %v1520
        %v3621 = vmul.f32 %v3599, %v1516
        %v3622 = vmul.f32 %v3600, %v1520
        %v3623 = vmul.f32 %v3433, %v1516
        %v3624 = vmul.f32 %v3434, %v1520
        %v3625 = vmul.f32 %v3601, %v1516
        %v3626 = vmul.f32 %v3602, %v1520
        %v3651 = vrot.slane %v3603, 2
        %v3652 = vrot.slane %v3605, 2
        %v3653 = vsel %vm1569, %v3651, %v3652
        %v3654 = vrot.slane %v3604, 2
        %v3655 = vrot.slane %v3606, 2
        %v3656 = vsel %vm1569, %v3654, %v3655
        %v3657 = vrot.slane %v3607, 2
        %v3658 = vsel %vm1569, %v3652, %v3657
        %v3659 = vrot.slane %v3608, 2
        %v3660 = vsel %vm1569, %v3655, %v3659
        %v3661 = vrot.slane %v3609, 2
        %v3662 = vrot.slane %v3611, 2
        %v3663 = vsel %vm1569, %v3661, %v3662
        %v3664 = vrot.slane %v3610, 2
        %v3665 = vrot.slane %v3612, 2
        %v3666 = vsel %vm1569, %v3664, %v3665
        %v3667 = vrot.slane %v3613, 2
        %v3668 = vsel %vm1569, %v3662, %v3667
        %v3669 = vrot.slane %v3614, 2
        %v3670 = vsel %vm1569, %v3665, %v3669
        %v3671 = vrot.slane %v3615, 2
        %v3672 = vrot.slane %v3617, 2
        %v3673 = vsel %vm1569, %v3671, %v3672
        %v3674 = vrot.slane %v3616, 2
        %v3675 = vrot.slane %v3618, 2
        %v3676 = vsel %vm1569, %v3674, %v3675
        %v3677 = vrot.slane %v3619, 2
        %v3678 = vsel %vm1569, %v3672, %v3677
        %v3679 = vrot.slane %v3620, 2
        %v3680 = vsel %vm1569, %v3675, %v3679
        %v3681 = vrot.slane %v3621, 2
        %v3682 = vrot.slane %v3623, 2
        %v3683 = vsel %vm1569, %v3681, %v3682
        %v3684 = vrot.slane %v3622, 2
        %v3685 = vrot.slane %v3624, 2
        %v3686 = vsel %vm1569, %v3684, %v3685
        %v3687 = vrot.slane %v3625, 2
        %v3688 = vsel %vm1569, %v3682, %v3687
        %v3689 = vrot.slane %v3626, 2
        %v3690 = vsel %vm1569, %v3685, %v3689
        %v3707 = vadd.f32 %v3571, %v3653
        %v3708 = vadd.f32 %v3572, %v3656
        %v3709 = vadd.f32 %v3573, %v3658
        %v3710 = vadd.f32 %v3574, %v3660
        %v3711 = vadd.f32 %v3575, %v3663
        %v3712 = vadd.f32 %v3576, %v3666
        %v3713 = vadd.f32 %v3577, %v3668
        %v3714 = vadd.f32 %v3578, %v3670
        %v3715 = vadd.f32 %v3579, %v3673
        %v3716 = vadd.f32 %v3580, %v3676
        %v3717 = vadd.f32 %v3581, %v3678
        %v3718 = vadd.f32 %v3582, %v3680
        %v3719 = vadd.f32 %v3583, %v3683
        %v3720 = vadd.f32 %v3584, %v3686
        %v3721 = vadd.f32 %v3585, %v3688
        %v3722 = vadd.f32 %v3586, %v3690
        %s3723 = scalar_lea.vmem [#allocation2], 432
        %v3724 = vld [vmem:[%s3723] sm:$0xff]
        %v3725 = vld [vmem:[%s3723 + $0x8] sm:$0xff]
        %v3726 = vld [vmem:[%s3723 + $0x10] sm:$0xff]
        %v3727 = vld [vmem:[%s3723 + $0x18] sm:$0xff]
        %v3728 = vld [vmem:[%s3723 + $0x30] sm:$0xff]
        %v3729 = vld [vmem:[%s3723 + $0x38] sm:$0xff]
        %v3730 = vld [vmem:[%s3723 + $0x40] sm:$0xff]
        %v3731 = vld [vmem:[%s3723 + $0x48] sm:$0xff]
        %v3732 = vld [vmem:[%s3723 + $0x60] sm:$0xff]
        %v3733 = vld [vmem:[%s3723 + $0x68] sm:$0xff]
        %v3734 = vld [vmem:[%s3723 + $0x70] sm:$0xff]
        %v3735 = vld [vmem:[%s3723 + $0x78] sm:$0xff]
        %v3736 = vld [vmem:[%s3723 + $0x90] sm:$0xff]
        %v3737 = vld [vmem:[%s3723 + $0x98] sm:$0xff]
        %v3738 = vld [vmem:[%s3723 + $0xa0] sm:$0xff]
        %v3739 = vld [vmem:[%s3723 + $0xa8] sm:$0xff]
        %v3740 = vmul.f32 %v3724, %v1661
        %v3741 = vmul.f32 %v3725, %v1665
        %v3742 = vmul.f32 %v3726, %v1661
        %v3743 = vmul.f32 %v3727, %v1665
        %v3744 = vmul.f32 %v3728, %v1661
        %v3745 = vmul.f32 %v3729, %v1665
        %v3746 = vmul.f32 %v3730, %v1661
        %v3747 = vmul.f32 %v3731, %v1665
        %v3748 = vmul.f32 %v3732, %v1661
        %v3749 = vmul.f32 %v3733, %v1665
        %v3750 = vmul.f32 %v3734, %v1661
        %v3751 = vmul.f32 %v3735, %v1665
        %v3752 = vmul.f32 %v3736, %v1661
        %v3753 = vmul.f32 %v3737, %v1665
        %v3754 = vmul.f32 %v3738, %v1661
        %v3755 = vmul.f32 %v3739, %v1665
        %v3756 = vadd.f32 %v3707, %v3740
        %v3757 = vadd.f32 %v3708, %v3741
        %v3758 = vadd.f32 %v3709, %v3742
        %v3759 = vadd.f32 %v3710, %v3743
        %v3760 = vadd.f32 %v3711, %v3744
        %v3761 = vadd.f32 %v3712, %v3745
        %v3762 = vadd.f32 %v3713, %v3746
        %v3763 = vadd.f32 %v3714, %v3747
        %v3764 = vadd.f32 %v3715, %v3748
        %v3765 = vadd.f32 %v3716, %v3749
        %v3766 = vadd.f32 %v3717, %v3750
        %v3767 = vadd.f32 %v3718, %v3751
        %v3768 = vadd.f32 %v3719, %v3752
        %v3769 = vadd.f32 %v3720, %v3753
        %v3770 = vadd.f32 %v3721, %v3754
        %v3771 = vadd.f32 %v3722, %v3755
        %v3772 = vld [vmem:[%s3723] sm:$0xfe]
        %v3773 = vld [vmem:[%s3723 + $0x8] sm:$0xfe]
        %v3774 = vld [vmem:[%s3723 + $0x20] sm:$0x1]
        %v3775 = vld [vmem:[%s3723 + $0x28] sm:$0x1]
        %v3776 = vld [vmem:[%s3723 + $0x30] sm:$0xfe]
        %v3777 = vld [vmem:[%s3723 + $0x38] sm:$0xfe]
        %v3778 = vld [vmem:[%s3723 + $0x50] sm:$0x1]
        %v3779 = vld [vmem:[%s3723 + $0x58] sm:$0x1]
        %v3780 = vld [vmem:[%s3723 + $0x60] sm:$0xfe]
        %v3781 = vld [vmem:[%s3723 + $0x68] sm:$0xfe]
        %v3782 = vld [vmem:[%s3723 + $0x80] sm:$0x1]
        %v3783 = vld [vmem:[%s3723 + $0x88] sm:$0x1]
        %v3784 = vld [vmem:[%s3723 + $0x90] sm:$0xfe]
        %v3785 = vld [vmem:[%s3723 + $0x98] sm:$0xfe]
        %v3786 = vld [vmem:[%s3723 + $0xb0] sm:$0x1]
        %v3787 = vld [vmem:[%s3723 + $0xb8] sm:$0x1]
        %v3788 = vmul.f32 %v3772, %v1717
        %v3789 = vmul.f32 %v3773, %v1721
        %v3790 = vmul.f32 %v3726, %v1717
        %v3791 = vmul.f32 %v3727, %v1721
        %v3792 = vmul.f32 %v3774, %v1717
        %v3793 = vmul.f32 %v3775, %v1721
        %v3794 = vmul.f32 %v3776, %v1717
        %v3795 = vmul.f32 %v3777, %v1721
        %v3796 = vmul.f32 %v3730, %v1717
        %v3797 = vmul.f32 %v3731, %v1721
        %v3798 = vmul.f32 %v3778, %v1717
        %v3799 = vmul.f32 %v3779, %v1721
        %v3800 = vmul.f32 %v3780, %v1717
        %v3801 = vmul.f32 %v3781, %v1721
        %v3802 = vmul.f32 %v3734, %v1717
        %v3803 = vmul.f32 %v3735, %v1721
        %v3804 = vmul.f32 %v3782, %v1717
        %v3805 = vmul.f32 %v3783, %v1721
        %v3806 = vmul.f32 %v3784, %v1717
        %v3807 = vmul.f32 %v3785, %v1721
        %v3808 = vmul.f32 %v3738, %v1717
        %v3809 = vmul.f32 %v3739, %v1721
        %v3810 = vmul.f32 %v3786, %v1717
        %v3811 = vmul.f32 %v3787, %v1721
        %v3836 = vrot.slane %v3788, 1
        %v3837 = vrot.slane %v3790, 1
        %v3838 = vsel %vm1424, %v3836, %v3837
        %v3839 = vrot.slane %v3789, 1
        %v3840 = vrot.slane %v3791, 1
        %v3841 = vsel %vm1424, %v3839, %v3840
        %v3842 = vrot.slane %v3792, 1
        %v3843 = vsel %vm1424, %v3837, %v3842
        %v3844 = vrot.slane %v3793, 1
        %v3845 = vsel %vm1424, %v3840, %v3844
        %v3846 = vrot.slane %v3794, 1
        %v3847 = vrot.slane %v3796, 1
        %v3848 = vsel %vm1424, %v3846, %v3847
        %v3849 = vrot.slane %v3795, 1
        %v3850 = vrot.slane %v3797, 1
        %v3851 = vsel %vm1424, %v3849, %v3850
        %v3852 = vrot.slane %v3798, 1
        %v3853 = vsel %vm1424, %v3847, %v3852
        %v3854 = vrot.slane %v3799, 1
        %v3855 = vsel %vm1424, %v3850, %v3854
        %v3856 = vrot.slane %v3800, 1
        %v3857 = vrot.slane %v3802, 1
        %v3858 = vsel %vm1424, %v3856, %v3857
        %v3859 = vrot.slane %v3801, 1
        %v3860 = vrot.slane %v3803, 1
        %v3861 = vsel %vm1424, %v3859, %v3860
        %v3862 = vrot.slane %v3804, 1
        %v3863 = vsel %vm1424, %v3857, %v3862
        %v3864 = vrot.slane %v3805, 1
        %v3865 = vsel %vm1424, %v3860, %v3864
        %v3866 = vrot.slane %v3806, 1
        %v3867 = vrot.slane %v3808, 1
        %v3868 = vsel %vm1424, %v3866, %v3867
        %v3869 = vrot.slane %v3807, 1
        %v3870 = vrot.slane %v3809, 1
        %v3871 = vsel %vm1424, %v3869, %v3870
        %v3872 = vrot.slane %v3810, 1
        %v3873 = vsel %vm1424, %v3867, %v3872
        %v3874 = vrot.slane %v3811, 1
        %v3875 = vsel %vm1424, %v3870, %v3874
        %v3892 = vadd.f32 %v3756, %v3838
        %v3893 = vadd.f32 %v3757, %v3841
        %v3894 = vadd.f32 %v3758, %v3843
        %v3895 = vadd.f32 %v3759, %v3845
        %v3896 = vadd.f32 %v3760, %v3848
        %v3897 = vadd.f32 %v3761, %v3851
        %v3898 = vadd.f32 %v3762, %v3853
        %v3899 = vadd.f32 %v3763, %v3855
        %v3900 = vadd.f32 %v3764, %v3858
        %v3901 = vadd.f32 %v3765, %v3861
        %v3902 = vadd.f32 %v3766, %v3863
        %v3903 = vadd.f32 %v3767, %v3865
        %v3904 = vadd.f32 %v3768, %v3868
        %v3905 = vadd.f32 %v3769, %v3871
        %v3906 = vadd.f32 %v3770, %v3873
        %v3907 = vadd.f32 %v3771, %v3875
        %v3908 = vld [vmem:[%s3723] sm:$0xfc]
        %v3909 = vld [vmem:[%s3723 + $0x8] sm:$0xfc]
        %v3910 = vld [vmem:[%s3723 + $0x20] sm:$0x3]
        %v3911 = vld [vmem:[%s3723 + $0x28] sm:$0x3]
        %v3912 = vld [vmem:[%s3723 + $0x30] sm:$0xfc]
        %v3913 = vld [vmem:[%s3723 + $0x38] sm:$0xfc]
        %v3914 = vld [vmem:[%s3723 + $0x50] sm:$0x3]
        %v3915 = vld [vmem:[%s3723 + $0x58] sm:$0x3]
        %v3916 = vld [vmem:[%s3723 + $0x60] sm:$0xfc]
        %v3917 = vld [vmem:[%s3723 + $0x68] sm:$0xfc]
        %v3918 = vld [vmem:[%s3723 + $0x80] sm:$0x3]
        %v3919 = vld [vmem:[%s3723 + $0x88] sm:$0x3]
        %v3920 = vld [vmem:[%s3723 + $0x90] sm:$0xfc]
        %v3921 = vld [vmem:[%s3723 + $0x98] sm:$0xfc]
        %v3922 = vld [vmem:[%s3723 + $0xb0] sm:$0x3]
        %v3923 = vld [vmem:[%s3723 + $0xb8] sm:$0x3]
        %v3924 = vmul.f32 %v3908, %v1861
        %v3925 = vmul.f32 %v3909, %v1865
        %v3926 = vmul.f32 %v3726, %v1861
        %v3927 = vmul.f32 %v3727, %v1865
        %v3928 = vmul.f32 %v3910, %v1861
        %v3929 = vmul.f32 %v3911, %v1865
        %v3930 = vmul.f32 %v3912, %v1861
        %v3931 = vmul.f32 %v3913, %v1865
        %v3932 = vmul.f32 %v3730, %v1861
        %v3933 = vmul.f32 %v3731, %v1865
        %v3934 = vmul.f32 %v3914, %v1861
        %v3935 = vmul.f32 %v3915, %v1865
        %v3936 = vmul.f32 %v3916, %v1861
        %v3937 = vmul.f32 %v3917, %v1865
        %v3938 = vmul.f32 %v3734, %v1861
        %v3939 = vmul.f32 %v3735, %v1865
        %v3940 = vmul.f32 %v3918, %v1861
        %v3941 = vmul.f32 %v3919, %v1865
        %v3942 = vmul.f32 %v3920, %v1861
        %v3943 = vmul.f32 %v3921, %v1865
        %v3944 = vmul.f32 %v3738, %v1861
        %v3945 = vmul.f32 %v3739, %v1865
        %v3946 = vmul.f32 %v3922, %v1861
        %v3947 = vmul.f32 %v3923, %v1865
        %v3972 = vrot.slane %v3924, 2
        %v3973 = vrot.slane %v3926, 2
        %v3974 = vsel %vm1569, %v3972, %v3973
        %v3975 = vrot.slane %v3925, 2
        %v3976 = vrot.slane %v3927, 2
        %v3977 = vsel %vm1569, %v3975, %v3976
        %v3978 = vrot.slane %v3928, 2
        %v3979 = vsel %vm1569, %v3973, %v3978
        %v3980 = vrot.slane %v3929, 2
        %v3981 = vsel %vm1569, %v3976, %v3980
        %v3982 = vrot.slane %v3930, 2
        %v3983 = vrot.slane %v3932, 2
        %v3984 = vsel %vm1569, %v3982, %v3983
        %v3985 = vrot.slane %v3931, 2
        %v3986 = vrot.slane %v3933, 2
        %v3987 = vsel %vm1569, %v3985, %v3986
        %v3988 = vrot.slane %v3934, 2
        %v3989 = vsel %vm1569, %v3983, %v3988
        %v3990 = vrot.slane %v3935, 2
        %v3991 = vsel %vm1569, %v3986, %v3990
        %v3992 = vrot.slane %v3936, 2
        %v3993 = vrot.slane %v3938, 2
        %v3994 = vsel %vm1569, %v3992, %v3993
        %v3995 = vrot.slane %v3937, 2
        %v3996 = vrot.slane %v3939, 2
        %v3997 = vsel %vm1569, %v3995, %v3996
        %v3998 = vrot.slane %v3940, 2
        %v3999 = vsel %vm1569, %v3993, %v3998
        %v4000 = vrot.slane %v3941, 2
        %v4001 = vsel %vm1569, %v3996, %v4000
        %v4002 = vrot.slane %v3942, 2
        %v4003 = vrot.slane %v3944, 2
        %v4004 = vsel %vm1569, %v4002, %v4003
        %v4005 = vrot.slane %v3943, 2
        %v4006 = vrot.slane %v3945, 2
        %v4007 = vsel %vm1569, %v4005, %v4006
        %v4008 = vrot.slane %v3946, 2
        %v4009 = vsel %vm1569, %v4003, %v4008
        %v4010 = vrot.slane %v3947, 2
        %v4011 = vsel %vm1569, %v4006, %v4010
        %v4028 = vadd.f32 %v3892, %v3974
        %v4029 = vadd.f32 %v3893, %v3977
        %v4030 = vadd.f32 %v3894, %v3979
        %v4031 = vadd.f32 %v3895, %v3981
        %v4032 = vadd.f32 %v3896, %v3984
        %v4033 = vadd.f32 %v3897, %v3987
        %v4034 = vadd.f32 %v3898, %v3989
        %v4035 = vadd.f32 %v3899, %v3991
        %v4036 = vadd.f32 %v3900, %v3994
        %v4037 = vadd.f32 %v3901, %v3997
        %v4038 = vadd.f32 %v3902, %v3999
        %v4039 = vadd.f32 %v3903, %v4001
        %v4040 = vadd.f32 %v3904, %v4004
        %v4041 = vadd.f32 %v3905, %v4007
        %v4042 = vadd.f32 %v3906, %v4009
        %v4043 = vadd.f32 %v3907, %v4011
        %s4044 = scalar_lea.vmem [#allocation2], 480
        %v4045 = vld [vmem:[%s4044] sm:$0xff]
        %v4046 = vld [vmem:[%s4044 + $0x8] sm:$0xff]
        %v4047 = vld [vmem:[%s4044 + $0x10] sm:$0xff]
        %v4048 = vld [vmem:[%s4044 + $0x18] sm:$0xff]
        %v4049 = vld [vmem:[%s4044 + $0x30] sm:$0xff]
        %v4050 = vld [vmem:[%s4044 + $0x38] sm:$0xff]
        %v4051 = vld [vmem:[%s4044 + $0x40] sm:$0xff]
        %v4052 = vld [vmem:[%s4044 + $0x48] sm:$0xff]
        %v4053 = vld [vmem:[%s4044 + $0x60] sm:$0xff]
        %v4054 = vld [vmem:[%s4044 + $0x68] sm:$0xff]
        %v4055 = vld [vmem:[%s4044 + $0x70] sm:$0xff]
        %v4056 = vld [vmem:[%s4044 + $0x78] sm:$0xff]
        %v4057 = vld [vmem:[%s4044 + $0x90] sm:$0xff]
        %v4058 = vld [vmem:[%s4044 + $0x98] sm:$0xff]
        %v4059 = vld [vmem:[%s4044 + $0xa0] sm:$0xff]
        %v4060 = vld [vmem:[%s4044 + $0xa8] sm:$0xff]
        %v4061 = vmul.f32 %v4045, %v2006
        %v4062 = vmul.f32 %v4046, %v2010
        %v4063 = vmul.f32 %v4047, %v2006
        %v4064 = vmul.f32 %v4048, %v2010
        %v4065 = vmul.f32 %v4049, %v2006
        %v4066 = vmul.f32 %v4050, %v2010
        %v4067 = vmul.f32 %v4051, %v2006
        %v4068 = vmul.f32 %v4052, %v2010
        %v4069 = vmul.f32 %v4053, %v2006
        %v4070 = vmul.f32 %v4054, %v2010
        %v4071 = vmul.f32 %v4055, %v2006
        %v4072 = vmul.f32 %v4056, %v2010
        %v4073 = vmul.f32 %v4057, %v2006
        %v4074 = vmul.f32 %v4058, %v2010
        %v4075 = vmul.f32 %v4059, %v2006
        %v4076 = vmul.f32 %v4060, %v2010
        %v4077 = vadd.f32 %v4028, %v4061
        %v4078 = vadd.f32 %v4029, %v4062
        %v4079 = vadd.f32 %v4030, %v4063
        %v4080 = vadd.f32 %v4031, %v4064
        %v4081 = vadd.f32 %v4032, %v4065
        %v4082 = vadd.f32 %v4033, %v4066
        %v4083 = vadd.f32 %v4034, %v4067
        %v4084 = vadd.f32 %v4035, %v4068
        %v4085 = vadd.f32 %v4036, %v4069
        %v4086 = vadd.f32 %v4037, %v4070
        %v4087 = vadd.f32 %v4038, %v4071
        %v4088 = vadd.f32 %v4039, %v4072
        %v4089 = vadd.f32 %v4040, %v4073
        %v4090 = vadd.f32 %v4041, %v4074
        %v4091 = vadd.f32 %v4042, %v4075
        %v4092 = vadd.f32 %v4043, %v4076
        %v4093 = vld [vmem:[%s4044] sm:$0xfe]
        %v4094 = vld [vmem:[%s4044 + $0x8] sm:$0xfe]
        %v4095 = vld [vmem:[%s4044 + $0x20] sm:$0x1]
        %v4096 = vld [vmem:[%s4044 + $0x28] sm:$0x1]
        %v4097 = vld [vmem:[%s4044 + $0x30] sm:$0xfe]
        %v4098 = vld [vmem:[%s4044 + $0x38] sm:$0xfe]
        %v4099 = vld [vmem:[%s4044 + $0x50] sm:$0x1]
        %v4100 = vld [vmem:[%s4044 + $0x58] sm:$0x1]
        %v4101 = vld [vmem:[%s4044 + $0x60] sm:$0xfe]
        %v4102 = vld [vmem:[%s4044 + $0x68] sm:$0xfe]
        %v4103 = vld [vmem:[%s4044 + $0x80] sm:$0x1]
        %v4104 = vld [vmem:[%s4044 + $0x88] sm:$0x1]
        %v4105 = vld [vmem:[%s4044 + $0x90] sm:$0xfe]
        %v4106 = vld [vmem:[%s4044 + $0x98] sm:$0xfe]
        %v4107 = vld [vmem:[%s4044 + $0xb0] sm:$0x1]
        %v4108 = vld [vmem:[%s4044 + $0xb8] sm:$0x1]
        %v4109 = vmul.f32 %v4093, %v2062
        %v4110 = vmul.f32 %v4094, %v2066
        %v4111 = vmul.f32 %v4047, %v2062
        %v4112 = vmul.f32 %v4048, %v2066
        %v4113 = vmul.f32 %v4095, %v2062
        %v4114 = vmul.f32 %v4096, %v2066
        %v4115 = vmul.f32 %v4097, %v2062
        %v4116 = vmul.f32 %v4098, %v2066
        %v4117 = vmul.f32 %v4051, %v2062
        %v4118 = vmul.f32 %v4052, %v2066
        %v4119 = vmul.f32 %v4099, %v2062
        %v4120 = vmul.f32 %v4100, %v2066
        %v4121 = vmul.f32 %v4101, %v2062
        %v4122 = vmul.f32 %v4102, %v2066
        %v4123 = vmul.f32 %v4055, %v2062
        %v4124 = vmul.f32 %v4056, %v2066
        %v4125 = vmul.f32 %v4103, %v2062
        %v4126 = vmul.f32 %v4104, %v2066
        %v4127 = vmul.f32 %v4105, %v2062
        %v4128 = vmul.f32 %v4106, %v2066
        %v4129 = vmul.f32 %v4059, %v2062
        %v4130 = vmul.f32 %v4060, %v2066
        %v4131 = vmul.f32 %v4107, %v2062
        %v4132 = vmul.f32 %v4108, %v2066
        %v4157 = vrot.slane %v4109, 1
        %v4158 = vrot.slane %v4111, 1
        %v4159 = vsel %vm1424, %v4157, %v4158
        %v4160 = vrot.slane %v4110, 1
        %v4161 = vrot.slane %v4112, 1
        %v4162 = vsel %vm1424, %v4160, %v4161
        %v4163 = vrot.slane %v4113, 1
        %v4164 = vsel %vm1424, %v4158, %v4163
        %v4165 = vrot.slane %v4114, 1
        %v4166 = vsel %vm1424, %v4161, %v4165
        %v4167 = vrot.slane %v4115, 1
        %v4168 = vrot.slane %v4117, 1
        %v4169 = vsel %vm1424, %v4167, %v4168
        %v4170 = vrot.slane %v4116, 1
        %v4171 = vrot.slane %v4118, 1
        %v4172 = vsel %vm1424, %v4170, %v4171
        %v4173 = vrot.slane %v4119, 1
        %v4174 = vsel %vm1424, %v4168, %v4173
        %v4175 = vrot.slane %v4120, 1
        %v4176 = vsel %vm1424, %v4171, %v4175
        %v4177 = vrot.slane %v4121, 1
        %v4178 = vrot.slane %v4123, 1
        %v4179 = vsel %vm1424, %v4177, %v4178
        %v4180 = vrot.slane %v4122, 1
        %v4181 = vrot.slane %v4124, 1
        %v4182 = vsel %vm1424, %v4180, %v4181
        %v4183 = vrot.slane %v4125, 1
        %v4184 = vsel %vm1424, %v4178, %v4183
        %v4185 = vrot.slane %v4126, 1
        %v4186 = vsel %vm1424, %v4181, %v4185
        %v4187 = vrot.slane %v4127, 1
        %v4188 = vrot.slane %v4129, 1
        %v4189 = vsel %vm1424, %v4187, %v4188
        %v4190 = vrot.slane %v4128, 1
        %v4191 = vrot.slane %v4130, 1
        %v4192 = vsel %vm1424, %v4190, %v4191
        %v4193 = vrot.slane %v4131, 1
        %v4194 = vsel %vm1424, %v4188, %v4193
        %v4195 = vrot.slane %v4132, 1
        %v4196 = vsel %vm1424, %v4191, %v4195
        %v4213 = vadd.f32 %v4077, %v4159
        %v4214 = vadd.f32 %v4078, %v4162
        %v4215 = vadd.f32 %v4079, %v4164
        %v4216 = vadd.f32 %v4080, %v4166
        %v4217 = vadd.f32 %v4081, %v4169
        %v4218 = vadd.f32 %v4082, %v4172
        %v4219 = vadd.f32 %v4083, %v4174
        %v4220 = vadd.f32 %v4084, %v4176
        %v4221 = vadd.f32 %v4085, %v4179
        %v4222 = vadd.f32 %v4086, %v4182
        %v4223 = vadd.f32 %v4087, %v4184
        %v4224 = vadd.f32 %v4088, %v4186
        %v4225 = vadd.f32 %v4089, %v4189
        %v4226 = vadd.f32 %v4090, %v4192
        %v4227 = vadd.f32 %v4091, %v4194
        %v4228 = vadd.f32 %v4092, %v4196
        %v4229 = vld [vmem:[%s4044] sm:$0xfc]
        %v4230 = vld [vmem:[%s4044 + $0x8] sm:$0xfc]
        %v4231 = vld [vmem:[%s4044 + $0x20] sm:$0x3]
        %v4232 = vld [vmem:[%s4044 + $0x28] sm:$0x3]
        %v4233 = vld [vmem:[%s4044 + $0x30] sm:$0xfc]
        %v4234 = vld [vmem:[%s4044 + $0x38] sm:$0xfc]
        %v4235 = vld [vmem:[%s4044 + $0x50] sm:$0x3]
        %v4236 = vld [vmem:[%s4044 + $0x58] sm:$0x3]
        %v4237 = vld [vmem:[%s4044 + $0x60] sm:$0xfc]
        %v4238 = vld [vmem:[%s4044 + $0x68] sm:$0xfc]
        %v4239 = vld [vmem:[%s4044 + $0x80] sm:$0x3]
        %v4240 = vld [vmem:[%s4044 + $0x88] sm:$0x3]
        %v4241 = vld [vmem:[%s4044 + $0x90] sm:$0xfc]
        %v4242 = vld [vmem:[%s4044 + $0x98] sm:$0xfc]
        %v4243 = vld [vmem:[%s4044 + $0xb0] sm:$0x3]
        %v4244 = vld [vmem:[%s4044 + $0xb8] sm:$0x3]
        %v4245 = vmul.f32 %v4229, %v2206
        %v4246 = vmul.f32 %v4230, %v2210
        %v4247 = vmul.f32 %v4047, %v2206
        %v4248 = vmul.f32 %v4048, %v2210
        %v4249 = vmul.f32 %v4231, %v2206
        %v4250 = vmul.f32 %v4232, %v2210
        %v4251 = vmul.f32 %v4233, %v2206
        %v4252 = vmul.f32 %v4234, %v2210
        %v4253 = vmul.f32 %v4051, %v2206
        %v4254 = vmul.f32 %v4052, %v2210
        %v4255 = vmul.f32 %v4235, %v2206
        %v4256 = vmul.f32 %v4236, %v2210
        %v4257 = vmul.f32 %v4237, %v2206
        %v4258 = vmul.f32 %v4238, %v2210
        %v4259 = vmul.f32 %v4055, %v2206
        %v4260 = vmul.f32 %v4056, %v2210
        %v4261 = vmul.f32 %v4239, %v2206
        %v4262 = vmul.f32 %v4240, %v2210
        %v4263 = vmul.f32 %v4241, %v2206
        %v4264 = vmul.f32 %v4242, %v2210
        %v4265 = vmul.f32 %v4059, %v2206
        %v4266 = vmul.f32 %v4060, %v2210
        %v4267 = vmul.f32 %v4243, %v2206
        %v4268 = vmul.f32 %v4244, %v2210
        %v4293 = vrot.slane %v4245, 2
        %v4294 = vrot.slane %v4247, 2
        %v4295 = vsel %vm1569, %v4293, %v4294
        %v4296 = vrot.slane %v4246, 2
        %v4297 = vrot.slane %v4248, 2
        %v4298 = vsel %vm1569, %v4296, %v4297
        %v4299 = vrot.slane %v4249, 2
        %v4300 = vsel %vm1569, %v4294, %v4299
        %v4301 = vrot.slane %v4250, 2
        %v4302 = vsel %vm1569, %v4297, %v4301
        %v4303 = vrot.slane %v4251, 2
        %v4304 = vrot.slane %v4253, 2
        %v4305 = vsel %vm1569, %v4303, %v4304
        %v4306 = vrot.slane %v4252, 2
        %v4307 = vrot.slane %v4254, 2
        %v4308 = vsel %vm1569, %v4306, %v4307
        %v4309 = vrot.slane %v4255, 2
        %v4310 = vsel %vm1569, %v4304, %v4309
        %v4311 = vrot.slane %v4256, 2
        %v4312 = vsel %vm1569, %v4307, %v4311
        %v4313 = vrot.slane %v4257, 2
        %v4314 = vrot.slane %v4259, 2
        %v4315 = vsel %vm1569, %v4313, %v4314
        %v4316 = vrot.slane %v4258, 2
        %v4317 = vrot.slane %v4260, 2
        %v4318 = vsel %vm1569, %v4316, %v4317
        %v4319 = vrot.slane %v4261, 2
        %v4320 = vsel %vm1569, %v4314, %v4319
        %v4321 = vrot.slane %v4262, 2
        %v4322 = vsel %vm1569, %v4317, %v4321
        %v4323 = vrot.slane %v4263, 2
        %v4324 = vrot.slane %v4265, 2
        %v4325 = vsel %vm1569, %v4323, %v4324
        %v4326 = vrot.slane %v4264, 2
        %v4327 = vrot.slane %v4266, 2
        %v4328 = vsel %vm1569, %v4326, %v4327
        %v4329 = vrot.slane %v4267, 2
        %v4330 = vsel %vm1569, %v4324, %v4329
        %v4331 = vrot.slane %v4268, 2
        %v4332 = vsel %vm1569, %v4327, %v4331
        %v4349 = vadd.f32 %v4213, %v4295
        %v4350 = vadd.f32 %v4214, %v4298
        %v4351 = vadd.f32 %v4215, %v4300
        %v4352 = vadd.f32 %v4216, %v4302
        %v4353 = vadd.f32 %v4217, %v4305
        %v4354 = vadd.f32 %v4218, %v4308
        %v4355 = vadd.f32 %v4219, %v4310
        %v4356 = vadd.f32 %v4220, %v4312
        %v4357 = vadd.f32 %v4221, %v4315
        %v4358 = vadd.f32 %v4222, %v4318
        %v4359 = vadd.f32 %v4223, %v4320
        %v4360 = vadd.f32 %v4224, %v4322
        %v4361 = vadd.f32 %v4225, %v4325
        %v4362 = vadd.f32 %v4226, %v4328
        %v4363 = vadd.f32 %v4227, %v4330
        %v4364 = vadd.f32 %v4228, %v4332
        %v4365 = vadd.f32 %v4349, %v2335
        %v4366 = vadd.f32 %v4350, %v2339
        %v4367 = vadd.f32 %v4351, %v2335
        %v4368 = vadd.f32 %v4352, %v2339
        %v4369 = vadd.f32 %v4353, %v2335
        %v4370 = vadd.f32 %v4354, %v2339
        %v4371 = vadd.f32 %v4355, %v2335
        %v4372 = vadd.f32 %v4356, %v2339
        %v4373 = vadd.f32 %v4357, %v2335
        %v4374 = vadd.f32 %v4358, %v2339
        %v4375 = vadd.f32 %v4359, %v2335
        %v4376 = vadd.f32 %v4360, %v2339
        %v4377 = vadd.f32 %v4361, %v2335
        %v4378 = vadd.f32 %v4362, %v2339
        %v4379 = vadd.f32 %v4363, %v2335
        %v4380 = vadd.f32 %v4364, %v2339
        %v4381 = vmax.f32 %v4365, 0.0
        %v4382 = vmax.f32 %v4366, 0.0
        %v4383 = vmax.f32 %v4367, 0.0
        %v4384 = vmax.f32 %v4368, 0.0
        %v4385 = vmax.f32 %v4369, 0.0
        %v4386 = vmax.f32 %v4370, 0.0
        %v4387 = vmax.f32 %v4371, 0.0
        %v4388 = vmax.f32 %v4372, 0.0
        %v4389 = vmax.f32 %v4373, 0.0
        %v4390 = vmax.f32 %v4374, 0.0
        %v4391 = vmax.f32 %v4375, 0.0
        %v4392 = vmax.f32 %v4376, 0.0
        %v4393 = vmax.f32 %v4377, 0.0
        %v4394 = vmax.f32 %v4378, 0.0
        %v4395 = vmax.f32 %v4379, 0.0
        %v4396 = vmax.f32 %v4380, 0.0
        %v4397 = vmin.f32 %v4381, 6.0
        %v4398 = vmin.f32 %v4382, 6.0
        %v4399 = vmin.f32 %v4383, 6.0
        %v4400 = vmin.f32 %v4384, 6.0
        %v4401 = vmin.f32 %v4385, 6.0
        %v4402 = vmin.f32 %v4386, 6.0
        %v4403 = vmin.f32 %v4387, 6.0
        %v4404 = vmin.f32 %v4388, 6.0
        %v4405 = vmin.f32 %v4389, 6.0
        %v4406 = vmin.f32 %v4390, 6.0
        %v4407 = vmin.f32 %v4391, 6.0
        %v4408 = vmin.f32 %v4392, 6.0
        %v4409 = vmin.f32 %v4393, 6.0
        %v4410 = vmin.f32 %v4394, 6.0
        %v4411 = vmin.f32 %v4395, 6.0
        %v4412 = vmin.f32 %v4396, 6.0
        %s4413 = scalar_lea.vmem [#allocation3], 256
        %4414 = vst [vmem:[%s4413] sm:$0xff] %v4397
        %4415 = vst.msk [vmem:[%s4413 + $0x8] sm:$0xff] %vm838, %v4398
        %4416 = vst [vmem:[%s4413 + $0x10] sm:$0xff] %v4399
        %4417 = vst.msk [vmem:[%s4413 + $0x18] sm:$0xff] %vm838, %v4400
        %4418 = vst [vmem:[%s4413 + $0x20] sm:$0xff] %v4401
        %4419 = vst.msk [vmem:[%s4413 + $0x28] sm:$0xff] %vm838, %v4402
        %4420 = vst [vmem:[%s4413 + $0x30] sm:$0xff] %v4403
        %4421 = vst.msk [vmem:[%s4413 + $0x38] sm:$0xff] %vm838, %v4404
        %4422 = vst [vmem:[%s4413 + $0x40] sm:$0xff] %v4405
        %4423 = vst.msk [vmem:[%s4413 + $0x48] sm:$0xff] %vm838, %v4406
        %4424 = vst [vmem:[%s4413 + $0x50] sm:$0xff] %v4407
        %4425 = vst.msk [vmem:[%s4413 + $0x58] sm:$0xff] %vm838, %v4408
        %4426 = vst [vmem:[%s4413 + $0x60] sm:$0xff] %v4409
        %4427 = vst.msk [vmem:[%s4413 + $0x68] sm:$0xff] %vm838, %v4410
        %4428 = vst [vmem:[%s4413 + $0x70] sm:$0xff] %v4411
        %4429 = vst.msk [vmem:[%s4413 + $0x78] sm:$0xff] %vm838, %v4412
        %s4430 = scalar_lea.vmem [#allocation2], 576
        %v4431 = vld [vmem:[%s4430] sm:$0xff]
        %v4432 = vld [vmem:[%s4430 + $0x8] sm:$0xff]
        %v4433 = vld [vmem:[%s4430 + $0x10] sm:$0xff]
        %v4434 = vld [vmem:[%s4430 + $0x18] sm:$0xff]
        %v4435 = vld [vmem:[%s4430 + $0x30] sm:$0xff]
        %v4436 = vld [vmem:[%s4430 + $0x38] sm:$0xff]
        %v4437 = vld [vmem:[%s4430 + $0x40] sm:$0xff]
        %v4438 = vld [vmem:[%s4430 + $0x48] sm:$0xff]
        %v4439 = vld [vmem:[%s4430 + $0x60] sm:$0xff]
        %v4440 = vld [vmem:[%s4430 + $0x68] sm:$0xff]
        %v4441 = vld [vmem:[%s4430 + $0x70] sm:$0xff]
        %v4442 = vld [vmem:[%s4430 + $0x78] sm:$0xff]
        %v4443 = vld [vmem:[%s4430 + $0x90] sm:$0xff]
        %v4444 = vld [vmem:[%s4430 + $0x98] sm:$0xff]
        %v4445 = vld [vmem:[%s4430 + $0xa0] sm:$0xff]
        %v4446 = vld [vmem:[%s4430 + $0xa8] sm:$0xff]
        %v4447 = vmul.f32 %v4431, %v1331
        %v4448 = vmul.f32 %v4432, %v1335
        %v4449 = vmul.f32 %v4433, %v1331
        %v4450 = vmul.f32 %v4434, %v1335
        %v4451 = vmul.f32 %v4435, %v1331
        %v4452 = vmul.f32 %v4436, %v1335
        %v4453 = vmul.f32 %v4437, %v1331
        %v4454 = vmul.f32 %v4438, %v1335
        %v4455 = vmul.f32 %v4439, %v1331
        %v4456 = vmul.f32 %v4440, %v1335
        %v4457 = vmul.f32 %v4441, %v1331
        %v4458 = vmul.f32 %v4442, %v1335
        %v4459 = vmul.f32 %v4443, %v1331
        %v4460 = vmul.f32 %v4444, %v1335
        %v4461 = vmul.f32 %v4445, %v1331
        %v4462 = vmul.f32 %v4446, %v1335
        %v4463 = vld [vmem:[%s4430] sm:$0xfe]
        %v4464 = vld [vmem:[%s4430 + $0x8] sm:$0xfe]
        %v4465 = vld [vmem:[%s4430 + $0x20] sm:$0x1]
        %v4466 = vld [vmem:[%s4430 + $0x28] sm:$0x1]
        %v4467 = vld [vmem:[%s4430 + $0x30] sm:$0xfe]
        %v4468 = vld [vmem:[%s4430 + $0x38] sm:$0xfe]
        %v4469 = vld [vmem:[%s4430 + $0x50] sm:$0x1]
        %v4470 = vld [vmem:[%s4430 + $0x58] sm:$0x1]
        %v4471 = vld [vmem:[%s4430 + $0x60] sm:$0xfe]
        %v4472 = vld [vmem:[%s4430 + $0x68] sm:$0xfe]
        %v4473 = vld [vmem:[%s4430 + $0x80] sm:$0x1]
        %v4474 = vld [vmem:[%s4430 + $0x88] sm:$0x1]
        %v4475 = vld [vmem:[%s4430 + $0x90] sm:$0xfe]
        %v4476 = vld [vmem:[%s4430 + $0x98] sm:$0xfe]
        %v4477 = vld [vmem:[%s4430 + $0xb0] sm:$0x1]
        %v4478 = vld [vmem:[%s4430 + $0xb8] sm:$0x1]
        %v4479 = vmul.f32 %v4463, %v1371
        %v4480 = vmul.f32 %v4464, %v1375
        %v4481 = vmul.f32 %v4433, %v1371
        %v4482 = vmul.f32 %v4434, %v1375
        %v4483 = vmul.f32 %v4465, %v1371
        %v4484 = vmul.f32 %v4466, %v1375
        %v4485 = vmul.f32 %v4467, %v1371
        %v4486 = vmul.f32 %v4468, %v1375
        %v4487 = vmul.f32 %v4437, %v1371
        %v4488 = vmul.f32 %v4438, %v1375
        %v4489 = vmul.f32 %v4469, %v1371
        %v4490 = vmul.f32 %v4470, %v1375
        %v4491 = vmul.f32 %v4471, %v1371
        %v4492 = vmul.f32 %v4472, %v1375
        %v4493 = vmul.f32 %v4441, %v1371
        %v4494 = vmul.f32 %v4442, %v1375
        %v4495 = vmul.f32 %v4473, %v1371
        %v4496 = vmul.f32 %v4474, %v1375
        %v4497 = vmul.f32 %v4475, %v1371
        %v4498 = vmul.f32 %v4476, %v1375
        %v4499 = vmul.f32 %v4445, %v1371
        %v4500 = vmul.f32 %v4446, %v1375
        %v4501 = vmul.f32 %v4477, %v1371
        %v4502 = vmul.f32 %v4478, %v1375
        %v4527 = vrot.slane %v4479, 1
        %v4528 = vrot.slane %v4481, 1
        %v4529 = vsel %vm1424, %v4527, %v4528
        %v4530 = vrot.slane %v4480, 1
        %v4531 = vrot.slane %v4482, 1
        %v4532 = vsel %vm1424, %v4530, %v4531
        %v4533 = vrot.slane %v4483, 1
        %v4534 = vsel %vm1424, %v4528, %v4533
        %v4535 = vrot.slane %v4484, 1
        %v4536 = vsel %vm1424, %v4531, %v4535
        %v4537 = vrot.slane %v4485, 1
        %v4538 = vrot.slane %v4487, 1
        %v4539 = vsel %vm1424, %v4537, %v4538
        %v4540 = vrot.slane %v4486, 1
        %v4541 = vrot.slane %v4488, 1
        %v4542 = vsel %vm1424, %v4540, %v4541
        %v4543 = vrot.slane %v4489, 1
        %v4544 = vsel %vm1424, %v4538, %v4543
        %v4545 = vrot.slane %v4490, 1
        %v4546 = vsel %vm1424, %v4541, %v4545
        %v4547 = vrot.slane %v4491, 1
        %v4548 = vrot.slane %v4493, 1
        %v4549 = vsel %vm1424, %v4547, %v4548
        %v4550 = vrot.slane %v4492, 1
        %v4551 = vrot.slane %v4494, 1
        %v4552 = vsel %vm1424, %v4550, %v4551
        %v4553 = vrot.slane %v4495, 1
        %v4554 = vsel %vm1424, %v4548, %v4553
        %v4555 = vrot.slane %v4496, 1
        %v4556 = vsel %vm1424, %v4551, %v4555
        %v4557 = vrot.slane %v4497, 1
        %v4558 = vrot.slane %v4499, 1
        %v4559 = vsel %vm1424, %v4557, %v4558
        %v4560 = vrot.slane %v4498, 1
        %v4561 = vrot.slane %v4500, 1
        %v4562 = vsel %vm1424, %v4560, %v4561
        %v4563 = vrot.slane %v4501, 1
        %v4564 = vsel %vm1424, %v4558, %v4563
        %v4565 = vrot.slane %v4502, 1
        %v4566 = vsel %vm1424, %v4561, %v4565
        %v4583 = vadd.f32 %v4447, %v4529
        %v4584 = vadd.f32 %v4448, %v4532
        %v4585 = vadd.f32 %v4449, %v4534
        %v4586 = vadd.f32 %v4450, %v4536
        %v4587 = vadd.f32 %v4451, %v4539
        %v4588 = vadd.f32 %v4452, %v4542
        %v4589 = vadd.f32 %v4453, %v4544
        %v4590 = vadd.f32 %v4454, %v4546
        %v4591 = vadd.f32 %v4455, %v4549
        %v4592 = vadd.f32 %v4456, %v4552
        %v4593 = vadd.f32 %v4457, %v4554
        %v4594 = vadd.f32 %v4458, %v4556
        %v4595 = vadd.f32 %v4459, %v4559
        %v4596 = vadd.f32 %v4460, %v4562
        %v4597 = vadd.f32 %v4461, %v4564
        %v4598 = vadd.f32 %v4462, %v4566
        %v4599 = vld [vmem:[%s4430] sm:$0xfc]
        %v4600 = vld [vmem:[%s4430 + $0x8] sm:$0xfc]
        %v4601 = vld [vmem:[%s4430 + $0x20] sm:$0x3]
        %v4602 = vld [vmem:[%s4430 + $0x28] sm:$0x3]
        %v4603 = vld [vmem:[%s4430 + $0x30] sm:$0xfc]
        %v4604 = vld [vmem:[%s4430 + $0x38] sm:$0xfc]
        %v4605 = vld [vmem:[%s4430 + $0x50] sm:$0x3]
        %v4606 = vld [vmem:[%s4430 + $0x58] sm:$0x3]
        %v4607 = vld [vmem:[%s4430 + $0x60] sm:$0xfc]
        %v4608 = vld [vmem:[%s4430 + $0x68] sm:$0xfc]
        %v4609 = vld [vmem:[%s4430 + $0x80] sm:$0x3]
        %v4610 = vld [vmem:[%s4430 + $0x88] sm:$0x3]
        %v4611 = vld [vmem:[%s4430 + $0x90] sm:$0xfc]
        %v4612 = vld [vmem:[%s4430 + $0x98] sm:$0xfc]
        %v4613 = vld [vmem:[%s4430 + $0xb0] sm:$0x3]
        %v4614 = vld [vmem:[%s4430 + $0xb8] sm:$0x3]
        %v4615 = vmul.f32 %v4599, %v1516
        %v4616 = vmul.f32 %v4600, %v1520
        %v4617 = vmul.f32 %v4433, %v1516
        %v4618 = vmul.f32 %v4434, %v1520
        %v4619 = vmul.f32 %v4601, %v1516
        %v4620 = vmul.f32 %v4602, %v1520
        %v4621 = vmul.f32 %v4603, %v1516
        %v4622 = vmul.f32 %v4604, %v1520
        %v4623 = vmul.f32 %v4437, %v1516
        %v4624 = vmul.f32 %v4438, %v1520
        %v4625 = vmul.f32 %v4605, %v1516
        %v4626 = vmul.f32 %v4606, %v1520
        %v4627 = vmul.f32 %v4607, %v1516
        %v4628 = vmul.f32 %v4608, %v1520
        %v4629 = vmul.f32 %v4441, %v1516
        %v4630 = vmul.f32 %v4442, %v1520
        %v4631 = vmul.f32 %v4609, %v1516
        %v4632 = vmul.f32 %v4610, %v1520
        %v4633 = vmul.f32 %v4611, %v1516
        %v4634 = vmul.f32 %v4612, %v1520
        %v4635 = vmul.f32 %v4445, %v1516
        %v4636 = vmul.f32 %v4446, %v1520
        %v4637 = vmul.f32 %v4613, %v1516
        %v4638 = vmul.f32 %v4614, %v1520
        %v4663 = vrot.slane %v4615, 2
        %v4664 = vrot.slane %v4617, 2
        %v4665 = vsel %vm1569, %v4663, %v4664
        %v4666 = vrot.slane %v4616, 2
        %v4667 = vrot.slane %v4618, 2
        %v4668 = vsel %vm1569, %v4666, %v4667
        %v4669 = vrot.slane %v4619, 2
        %v4670 = vsel %vm1569, %v4664, %v4669
        %v4671 = vrot.slane %v4620, 2
        %v4672 = vsel %vm1569, %v4667, %v4671
        %v4673 = vrot.slane %v4621, 2
        %v4674 = vrot.slane %v4623, 2
        %v4675 = vsel %vm1569, %v4673, %v4674
        %v4676 = vrot.slane %v4622, 2
        %v4677 = vrot.slane %v4624, 2
        %v4678 = vsel %vm1569, %v4676, %v4677
        %v4679 = vrot.slane %v4625, 2
        %v4680 = vsel %vm1569, %v4674, %v4679
        %v4681 = vrot.slane %v4626, 2
        %v4682 = vsel %vm1569, %v4677, %v4681
        %v4683 = vrot.slane %v4627, 2
        %v4684 = vrot.slane %v4629, 2
        %v4685 = vsel %vm1569, %v4683, %v4684
        %v4686 = vrot.slane %v4628, 2
        %v4687 = vrot.slane %v4630, 2
        %v4688 = vsel %vm1569, %v4686, %v4687
        %v4689 = vrot.slane %v4631, 2
        %v4690 = vsel %vm1569, %v4684, %v4689
        %v4691 = vrot.slane %v4632, 2
        %v4692 = vsel %vm1569, %v4687, %v4691
        %v4693 = vrot.slane %v4633, 2
        %v4694 = vrot.slane %v4635, 2
        %v4695 = vsel %vm1569, %v4693, %v4694
        %v4696 = vrot.slane %v4634, 2
        %v4697 = vrot.slane %v4636, 2
        %v4698 = vsel %vm1569, %v4696, %v4697
        %v4699 = vrot.slane %v4637, 2
        %v4700 = vsel %vm1569, %v4694, %v4699
        %v4701 = vrot.slane %v4638, 2
        %v4702 = vsel %vm1569, %v4697, %v4701
        %v4719 = vadd.f32 %v4583, %v4665
        %v4720 = vadd.f32 %v4584, %v4668
        %v4721 = vadd.f32 %v4585, %v4670
        %v4722 = vadd.f32 %v4586, %v4672
        %v4723 = vadd.f32 %v4587, %v4675
        %v4724 = vadd.f32 %v4588, %v4678
        %v4725 = vadd.f32 %v4589, %v4680
        %v4726 = vadd.f32 %v4590, %v4682
        %v4727 = vadd.f32 %v4591, %v4685
        %v4728 = vadd.f32 %v4592, %v4688
        %v4729 = vadd.f32 %v4593, %v4690
        %v4730 = vadd.f32 %v4594, %v4692
        %v4731 = vadd.f32 %v4595, %v4695
        %v4732 = vadd.f32 %v4596, %v4698
        %v4733 = vadd.f32 %v4597, %v4700
        %v4734 = vadd.f32 %v4598, %v4702
        %s4735 = scalar_lea.vmem [#allocation2], 624
        %v4736 = vld [vmem:[%s4735] sm:$0xff]
        %v4737 = vld [vmem:[%s4735 + $0x8] sm:$0xff]
        %v4738 = vld [vmem:[%s4735 + $0x10] sm:$0xff]
        %v4739 = vld [vmem:[%s4735 + $0x18] sm:$0xff]
        %v4740 = vld [vmem:[%s4735 + $0x30] sm:$0xff]
        %v4741 = vld [vmem:[%s4735 + $0x38] sm:$0xff]
        %v4742 = vld [vmem:[%s4735 + $0x40] sm:$0xff]
        %v4743 = vld [vmem:[%s4735 + $0x48] sm:$0xff]
        %v4744 = vld [vmem:[%s4735 + $0x60] sm:$0xff]
        %v4745 = vld [vmem:[%s4735 + $0x68] sm:$0xff]
        %v4746 = vld [vmem:[%s4735 + $0x70] sm:$0xff]
        %v4747 = vld [vmem:[%s4735 + $0x78] sm:$0xff]
        %v4748 = vld [vmem:[%s4735 + $0x90] sm:$0xff]
        %v4749 = vld [vmem:[%s4735 + $0x98] sm:$0xff]
        %v4750 = vld [vmem:[%s4735 + $0xa0] sm:$0xff]
        %v4751 = vld [vmem:[%s4735 + $0xa8] sm:$0xff]
        %v4752 = vmul.f32 %v4736, %v1661
        %v4753 = vmul.f32 %v4737, %v1665
        %v4754 = vmul.f32 %v4738, %v1661
        %v4755 = vmul.f32 %v4739, %v1665
        %v4756 = vmul.f32 %v4740, %v1661
        %v4757 = vmul.f32 %v4741, %v1665
        %v4758 = vmul.f32 %v4742, %v1661
        %v4759 = vmul.f32 %v4743, %v1665
        %v4760 = vmul.f32 %v4744, %v1661
        %v4761 = vmul.f32 %v4745, %v1665
        %v4762 = vmul.f32 %v4746, %v1661
        %v4763 = vmul.f32 %v4747, %v1665
        %v4764 = vmul.f32 %v4748, %v1661
        %v4765 = vmul.f32 %v4749, %v1665
        %v4766 = vmul.f32 %v4750, %v1661
        %v4767 = vmul.f32 %v4751, %v1665
        %v4768 = vadd.f32 %v4719, %v4752
        %v4769 = vadd.f32 %v4720, %v4753
        %v4770 = vadd.f32 %v4721, %v4754
        %v4771 = vadd.f32 %v4722, %v4755
        %v4772 = vadd.f32 %v4723, %v4756
        %v4773 = vadd.f32 %v4724, %v4757
        %v4774 = vadd.f32 %v4725, %v4758
        %v4775 = vadd.f32 %v4726, %v4759
        %v4776 = vadd.f32 %v4727, %v4760
        %v4777 = vadd.f32 %v4728, %v4761
        %v4778 = vadd.f32 %v4729, %v4762
        %v4779 = vadd.f32 %v4730, %v4763
        %v4780 = vadd.f32 %v4731, %v4764
        %v4781 = vadd.f32 %v4732, %v4765
        %v4782 = vadd.f32 %v4733, %v4766
        %v4783 = vadd.f32 %v4734, %v4767
        %v4784 = vld [vmem:[%s4735] sm:$0xfe]
        %v4785 = vld [vmem:[%s4735 + $0x8] sm:$0xfe]
        %v4786 = vld [vmem:[%s4735 + $0x20] sm:$0x1]
        %v4787 = vld [vmem:[%s4735 + $0x28] sm:$0x1]
        %v4788 = vld [vmem:[%s4735 + $0x30] sm:$0xfe]
        %v4789 = vld [vmem:[%s4735 + $0x38] sm:$0xfe]
        %v4790 = vld [vmem:[%s4735 + $0x50] sm:$0x1]
        %v4791 = vld [vmem:[%s4735 + $0x58] sm:$0x1]
        %v4792 = vld [vmem:[%s4735 + $0x60] sm:$0xfe]
        %v4793 = vld [vmem:[%s4735 + $0x68] sm:$0xfe]
        %v4794 = vld [vmem:[%s4735 + $0x80] sm:$0x1]
        %v4795 = vld [vmem:[%s4735 + $0x88] sm:$0x1]
        %v4796 = vld [vmem:[%s4735 + $0x90] sm:$0xfe]
        %v4797 = vld [vmem:[%s4735 + $0x98] sm:$0xfe]
        %v4798 = vld [vmem:[%s4735 + $0xb0] sm:$0x1]
        %v4799 = vld [vmem:[%s4735 + $0xb8] sm:$0x1]
        %v4800 = vmul.f32 %v4784, %v1717
        %v4801 = vmul.f32 %v4785, %v1721
        %v4802 = vmul.f32 %v4738, %v1717
        %v4803 = vmul.f32 %v4739, %v1721
        %v4804 = vmul.f32 %v4786, %v1717
        %v4805 = vmul.f32 %v4787, %v1721
        %v4806 = vmul.f32 %v4788, %v1717
        %v4807 = vmul.f32 %v4789, %v1721
        %v4808 = vmul.f32 %v4742, %v1717
        %v4809 = vmul.f32 %v4743, %v1721
        %v4810 = vmul.f32 %v4790, %v1717
        %v4811 = vmul.f32 %v4791, %v1721
        %v4812 = vmul.f32 %v4792, %v1717
        %v4813 = vmul.f32 %v4793, %v1721
        %v4814 = vmul.f32 %v4746, %v1717
        %v4815 = vmul.f32 %v4747, %v1721
        %v4816 = vmul.f32 %v4794, %v1717
        %v4817 = vmul.f32 %v4795, %v1721
        %v4818 = vmul.f32 %v4796, %v1717
        %v4819 = vmul.f32 %v4797, %v1721
        %v4820 = vmul.f32 %v4750, %v1717
        %v4821 = vmul.f32 %v4751, %v1721
        %v4822 = vmul.f32 %v4798, %v1717
        %v4823 = vmul.f32 %v4799, %v1721
        %v4848 = vrot.slane %v4800, 1
        %v4849 = vrot.slane %v4802, 1
        %v4850 = vsel %vm1424, %v4848, %v4849
        %v4851 = vrot.slane %v4801, 1
        %v4852 = vrot.slane %v4803, 1
        %v4853 = vsel %vm1424, %v4851, %v4852
        %v4854 = vrot.slane %v4804, 1
        %v4855 = vsel %vm1424, %v4849, %v4854
        %v4856 = vrot.slane %v4805, 1
        %v4857 = vsel %vm1424, %v4852, %v4856
        %v4858 = vrot.slane %v4806, 1
        %v4859 = vrot.slane %v4808, 1
        %v4860 = vsel %vm1424, %v4858, %v4859
        %v4861 = vrot.slane %v4807, 1
        %v4862 = vrot.slane %v4809, 1
        %v4863 = vsel %vm1424, %v4861, %v4862
        %v4864 = vrot.slane %v4810, 1
        %v4865 = vsel %vm1424, %v4859, %v4864
        %v4866 = vrot.slane %v4811, 1
        %v4867 = vsel %vm1424, %v4862, %v4866
        %v4868 = vrot.slane %v4812, 1
        %v4869 = vrot.slane %v4814, 1
        %v4870 = vsel %vm1424, %v4868, %v4869
        %v4871 = vrot.slane %v4813, 1
        %v4872 = vrot.slane %v4815, 1
        %v4873 = vsel %vm1424, %v4871, %v4872
        %v4874 = vrot.slane %v4816, 1
        %v4875 = vsel %vm1424, %v4869, %v4874
        %v4876 = vrot.slane %v4817, 1
        %v4877 = vsel %vm1424, %v4872, %v4876
        %v4878 = vrot.slane %v4818, 1
        %v4879 = vrot.slane %v4820, 1
        %v4880 = vsel %vm1424, %v4878, %v4879
        %v4881 = vrot.slane %v4819, 1
        %v4882 = vrot.slane %v4821, 1
        %v4883 = vsel %vm1424, %v4881, %v4882
        %v4884 = vrot.slane %v4822, 1
        %v4885 = vsel %vm1424, %v4879, %v4884
        %v4886 = vrot.slane %v4823, 1
        %v4887 = vsel %vm1424, %v4882, %v4886
        %v4904 = vadd.f32 %v4768, %v4850
        %v4905 = vadd.f32 %v4769, %v4853
        %v4906 = vadd.f32 %v4770, %v4855
        %v4907 = vadd.f32 %v4771, %v4857
        %v4908 = vadd.f32 %v4772, %v4860
        %v4909 = vadd.f32 %v4773, %v4863
        %v4910 = vadd.f32 %v4774, %v4865
        %v4911 = vadd.f32 %v4775, %v4867
        %v4912 = vadd.f32 %v4776, %v4870
        %v4913 = vadd.f32 %v4777, %v4873
        %v4914 = vadd.f32 %v4778, %v4875
        %v4915 = vadd.f32 %v4779, %v4877
        %v4916 = vadd.f32 %v4780, %v4880
        %v4917 = vadd.f32 %v4781, %v4883
        %v4918 = vadd.f32 %v4782, %v4885
        %v4919 = vadd.f32 %v4783, %v4887
        %v4920 = vld [vmem:[%s4735] sm:$0xfc]
        %v4921 = vld [vmem:[%s4735 + $0x8] sm:$0xfc]
        %v4922 = vld [vmem:[%s4735 + $0x20] sm:$0x3]
        %v4923 = vld [vmem:[%s4735 + $0x28] sm:$0x3]
        %v4924 = vld [vmem:[%s4735 + $0x30] sm:$0xfc]
        %v4925 = vld [vmem:[%s4735 + $0x38] sm:$0xfc]
        %v4926 = vld [vmem:[%s4735 + $0x50] sm:$0x3]
        %v4927 = vld [vmem:[%s4735 + $0x58] sm:$0x3]
        %v4928 = vld [vmem:[%s4735 + $0x60] sm:$0xfc]
        %v4929 = vld [vmem:[%s4735 + $0x68] sm:$0xfc]
        %v4930 = vld [vmem:[%s4735 + $0x80] sm:$0x3]
        %v4931 = vld [vmem:[%s4735 + $0x88] sm:$0x3]
        %v4932 = vld [vmem:[%s4735 + $0x90] sm:$0xfc]
        %v4933 = vld [vmem:[%s4735 + $0x98] sm:$0xfc]
        %v4934 = vld [vmem:[%s4735 + $0xb0] sm:$0x3]
        %v4935 = vld [vmem:[%s4735 + $0xb8] sm:$0x3]
        %v4936 = vmul.f32 %v4920, %v1861
        %v4937 = vmul.f32 %v4921, %v1865
        %v4938 = vmul.f32 %v4738, %v1861
        %v4939 = vmul.f32 %v4739, %v1865
        %v4940 = vmul.f32 %v4922, %v1861
        %v4941 = vmul.f32 %v4923, %v1865
        %v4942 = vmul.f32 %v4924, %v1861
        %v4943 = vmul.f32 %v4925, %v1865
        %v4944 = vmul.f32 %v4742, %v1861
        %v4945 = vmul.f32 %v4743, %v1865
        %v4946 = vmul.f32 %v4926, %v1861
        %v4947 = vmul.f32 %v4927, %v1865
        %v4948 = vmul.f32 %v4928, %v1861
        %v4949 = vmul.f32 %v4929, %v1865
        %v4950 = vmul.f32 %v4746, %v1861
        %v4951 = vmul.f32 %v4747, %v1865
        %v4952 = vmul.f32 %v4930, %v1861
        %v4953 = vmul.f32 %v4931, %v1865
        %v4954 = vmul.f32 %v4932, %v1861
        %v4955 = vmul.f32 %v4933, %v1865
        %v4956 = vmul.f32 %v4750, %v1861
        %v4957 = vmul.f32 %v4751, %v1865
        %v4958 = vmul.f32 %v4934, %v1861
        %v4959 = vmul.f32 %v4935, %v1865
        %v4984 = vrot.slane %v4936, 2
        %v4985 = vrot.slane %v4938, 2
        %v4986 = vsel %vm1569, %v4984, %v4985
        %v4987 = vrot.slane %v4937, 2
        %v4988 = vrot.slane %v4939, 2
        %v4989 = vsel %vm1569, %v4987, %v4988
        %v4990 = vrot.slane %v4940, 2
        %v4991 = vsel %vm1569, %v4985, %v4990
        %v4992 = vrot.slane %v4941, 2
        %v4993 = vsel %vm1569, %v4988, %v4992
        %v4994 = vrot.slane %v4942, 2
        %v4995 = vrot.slane %v4944, 2
        %v4996 = vsel %vm1569, %v4994, %v4995
        %v4997 = vrot.slane %v4943, 2
        %v4998 = vrot.slane %v4945, 2
        %v4999 = vsel %vm1569, %v4997, %v4998
        %v5000 = vrot.slane %v4946, 2
        %v5001 = vsel %vm1569, %v4995, %v5000
        %v5002 = vrot.slane %v4947, 2
        %v5003 = vsel %vm1569, %v4998, %v5002
        %v5004 = vrot.slane %v4948, 2
        %v5005 = vrot.slane %v4950, 2
        %v5006 = vsel %vm1569, %v5004, %v5005
        %v5007 = vrot.slane %v4949, 2
        %v5008 = vrot.slane %v4951, 2
        %v5009 = vsel %vm1569, %v5007, %v5008
        %v5010 = vrot.slane %v4952, 2
        %v5011 = vsel %vm1569, %v5005, %v5010
        %v5012 = vrot.slane %v4953, 2
        %v5013 = vsel %vm1569, %v5008, %v5012
        %v5014 = vrot.slane %v4954, 2
        %v5015 = vrot.slane %v4956, 2
        %v5016 = vsel %vm1569, %v5014, %v5015
        %v5017 = vrot.slane %v4955, 2
        %v5018 = vrot.slane %v4957, 2
        %v5019 = vsel %vm1569, %v5017, %v5018
        %v5020 = vrot.slane %v4958, 2
        %v5021 = vsel %vm1569, %v5015, %v5020
        %v5022 = vrot.slane %v4959, 2
        %v5023 = vsel %vm1569, %v5018, %v5022
        %v5040 = vadd.f32 %v4904, %v4986
        %v5041 = vadd.f32 %v4905, %v4989
        %v5042 = vadd.f32 %v4906, %v4991
        %v5043 = vadd.f32 %v4907, %v4993
        %v5044 = vadd.f32 %v4908, %v4996
        %v5045 = vadd.f32 %v4909, %v4999
        %v5046 = vadd.f32 %v4910, %v5001
        %v5047 = vadd.f32 %v4911, %v5003
        %v5048 = vadd.f32 %v4912, %v5006
        %v5049 = vadd.f32 %v4913, %v5009
        %v5050 = vadd.f32 %v4914, %v5011
        %v5051 = vadd.f32 %v4915, %v5013
        %v5052 = vadd.f32 %v4916, %v5016
        %v5053 = vadd.f32 %v4917, %v5019
        %v5054 = vadd.f32 %v4918, %v5021
        %v5055 = vadd.f32 %v4919, %v5023
        %s5056 = scalar_lea.vmem [#allocation2], 672
        %v5057 = vld [vmem:[%s5056] sm:$0xff]
        %v5058 = vld [vmem:[%s5056 + $0x8] sm:$0xff]
        %v5059 = vld [vmem:[%s5056 + $0x10] sm:$0xff]
        %v5060 = vld [vmem:[%s5056 + $0x18] sm:$0xff]
        %v5061 = vld [vmem:[%s5056 + $0x30] sm:$0xff]
        %v5062 = vld [vmem:[%s5056 + $0x38] sm:$0xff]
        %v5063 = vld [vmem:[%s5056 + $0x40] sm:$0xff]
        %v5064 = vld [vmem:[%s5056 + $0x48] sm:$0xff]
        %v5065 = vld [vmem:[%s5056 + $0x60] sm:$0xff]
        %v5066 = vld [vmem:[%s5056 + $0x68] sm:$0xff]
        %v5067 = vld [vmem:[%s5056 + $0x70] sm:$0xff]
        %v5068 = vld [vmem:[%s5056 + $0x78] sm:$0xff]
        %v5069 = vld [vmem:[%s5056 + $0x90] sm:$0xff]
        %v5070 = vld [vmem:[%s5056 + $0x98] sm:$0xff]
        %v5071 = vld [vmem:[%s5056 + $0xa0] sm:$0xff]
        %v5072 = vld [vmem:[%s5056 + $0xa8] sm:$0xff]
        %v5073 = vmul.f32 %v5057, %v2006
        %v5074 = vmul.f32 %v5058, %v2010
        %v5075 = vmul.f32 %v5059, %v2006
        %v5076 = vmul.f32 %v5060, %v2010
        %v5077 = vmul.f32 %v5061, %v2006
        %v5078 = vmul.f32 %v5062, %v2010
        %v5079 = vmul.f32 %v5063, %v2006
        %v5080 = vmul.f32 %v5064, %v2010
        %v5081 = vmul.f32 %v5065, %v2006
        %v5082 = vmul.f32 %v5066, %v2010
        %v5083 = vmul.f32 %v5067, %v2006
        %v5084 = vmul.f32 %v5068, %v2010
        %v5085 = vmul.f32 %v5069, %v2006
        %v5086 = vmul.f32 %v5070, %v2010
        %v5087 = vmul.f32 %v5071, %v2006
        %v5088 = vmul.f32 %v5072, %v2010
        %v5089 = vadd.f32 %v5040, %v5073
        %v5090 = vadd.f32 %v5041, %v5074
        %v5091 = vadd.f32 %v5042, %v5075
        %v5092 = vadd.f32 %v5043, %v5076
        %v5093 = vadd.f32 %v5044, %v5077
        %v5094 = vadd.f32 %v5045, %v5078
        %v5095 = vadd.f32 %v5046, %v5079
        %v5096 = vadd.f32 %v5047, %v5080
        %v5097 = vadd.f32 %v5048, %v5081
        %v5098 = vadd.f32 %v5049, %v5082
        %v5099 = vadd.f32 %v5050, %v5083
        %v5100 = vadd.f32 %v5051, %v5084
        %v5101 = vadd.f32 %v5052, %v5085
        %v5102 = vadd.f32 %v5053, %v5086
        %v5103 = vadd.f32 %v5054, %v5087
        %v5104 = vadd.f32 %v5055, %v5088
        %v5105 = vld [vmem:[%s5056] sm:$0xfe]
        %v5106 = vld [vmem:[%s5056 + $0x8] sm:$0xfe]
        %v5107 = vld [vmem:[%s5056 + $0x20] sm:$0x1]
        %v5108 = vld [vmem:[%s5056 + $0x28] sm:$0x1]
        %v5109 = vld [vmem:[%s5056 + $0x30] sm:$0xfe]
        %v5110 = vld [vmem:[%s5056 + $0x38] sm:$0xfe]
        %v5111 = vld [vmem:[%s5056 + $0x50] sm:$0x1]
        %v5112 = vld [vmem:[%s5056 + $0x58] sm:$0x1]
        %v5113 = vld [vmem:[%s5056 + $0x60] sm:$0xfe]
        %v5114 = vld [vmem:[%s5056 + $0x68] sm:$0xfe]
        %v5115 = vld [vmem:[%s5056 + $0x80] sm:$0x1]
        %v5116 = vld [vmem:[%s5056 + $0x88] sm:$0x1]
        %v5117 = vld [vmem:[%s5056 + $0x90] sm:$0xfe]
        %v5118 = vld [vmem:[%s5056 + $0x98] sm:$0xfe]
        %v5119 = vld [vmem:[%s5056 + $0xb0] sm:$0x1]
        %v5120 = vld [vmem:[%s5056 + $0xb8] sm:$0x1]
        %v5121 = vmul.f32 %v5105, %v2062
        %v5122 = vmul.f32 %v5106, %v2066
        %v5123 = vmul.f32 %v5059, %v2062
        %v5124 = vmul.f32 %v5060, %v2066
        %v5125 = vmul.f32 %v5107, %v2062
        %v5126 = vmul.f32 %v5108, %v2066
        %v5127 = vmul.f32 %v5109, %v2062
        %v5128 = vmul.f32 %v5110, %v2066
        %v5129 = vmul.f32 %v5063, %v2062
        %v5130 = vmul.f32 %v5064, %v2066
        %v5131 = vmul.f32 %v5111, %v2062
        %v5132 = vmul.f32 %v5112, %v2066
        %v5133 = vmul.f32 %v5113, %v2062
        %v5134 = vmul.f32 %v5114, %v2066
        %v5135 = vmul.f32 %v5067, %v2062
        %v5136 = vmul.f32 %v5068, %v2066
        %v5137 = vmul.f32 %v5115, %v2062
        %v5138 = vmul.f32 %v5116, %v2066
        %v5139 = vmul.f32 %v5117, %v2062
        %v5140 = vmul.f32 %v5118, %v2066
        %v5141 = vmul.f32 %v5071, %v2062
        %v5142 = vmul.f32 %v5072, %v2066
        %v5143 = vmul.f32 %v5119, %v2062
        %v5144 = vmul.f32 %v5120, %v2066
        %v5169 = vrot.slane %v5121, 1
        %v5170 = vrot.slane %v5123, 1
        %v5171 = vsel %vm1424, %v5169, %v5170
        %v5172 = vrot.slane %v5122, 1
        %v5173 = vrot.slane %v5124, 1
        %v5174 = vsel %vm1424, %v5172, %v5173
        %v5175 = vrot.slane %v5125, 1
        %v5176 = vsel %vm1424, %v5170, %v5175
        %v5177 = vrot.slane %v5126, 1
        %v5178 = vsel %vm1424, %v5173, %v5177
        %v5179 = vrot.slane %v5127, 1
        %v5180 = vrot.slane %v5129, 1
        %v5181 = vsel %vm1424, %v5179, %v5180
        %v5182 = vrot.slane %v5128, 1
        %v5183 = vrot.slane %v5130, 1
        %v5184 = vsel %vm1424, %v5182, %v5183
        %v5185 = vrot.slane %v5131, 1
        %v5186 = vsel %vm1424, %v5180, %v5185
        %v5187 = vrot.slane %v5132, 1
        %v5188 = vsel %vm1424, %v5183, %v5187
        %v5189 = vrot.slane %v5133, 1
        %v5190 = vrot.slane %v5135, 1
        %v5191 = vsel %vm1424, %v5189, %v5190
        %v5192 = vrot.slane %v5134, 1
        %v5193 = vrot.slane %v5136, 1
        %v5194 = vsel %vm1424, %v5192, %v5193
        %v5195 = vrot.slane %v5137, 1
        %v5196 = vsel %vm1424, %v5190, %v5195
        %v5197 = vrot.slane %v5138, 1
        %v5198 = vsel %vm1424, %v5193, %v5197
        %v5199 = vrot.slane %v5139, 1
        %v5200 = vrot.slane %v5141, 1
        %v5201 = vsel %vm1424, %v5199, %v5200
        %v5202 = vrot.slane %v5140, 1
        %v5203 = vrot.slane %v5142, 1
        %v5204 = vsel %vm1424, %v5202, %v5203
        %v5205 = vrot.slane %v5143, 1
        %v5206 = vsel %vm1424, %v5200, %v5205
        %v5207 = vrot.slane %v5144, 1
        %v5208 = vsel %vm1424, %v5203, %v5207
        %v5225 = vadd.f32 %v5089, %v5171
        %v5226 = vadd.f32 %v5090, %v5174
        %v5227 = vadd.f32 %v5091, %v5176
        %v5228 = vadd.f32 %v5092, %v5178
        %v5229 = vadd.f32 %v5093, %v5181
        %v5230 = vadd.f32 %v5094, %v5184
        %v5231 = vadd.f32 %v5095, %v5186
        %v5232 = vadd.f32 %v5096, %v5188
        %v5233 = vadd.f32 %v5097, %v5191
        %v5234 = vadd.f32 %v5098, %v5194
        %v5235 = vadd.f32 %v5099, %v5196
        %v5236 = vadd.f32 %v5100, %v5198
        %v5237 = vadd.f32 %v5101, %v5201
        %v5238 = vadd.f32 %v5102, %v5204
        %v5239 = vadd.f32 %v5103, %v5206
        %v5240 = vadd.f32 %v5104, %v5208
        %v5241 = vld [vmem:[%s5056] sm:$0xfc]
        %v5242 = vld [vmem:[%s5056 + $0x8] sm:$0xfc]
        %v5243 = vld [vmem:[%s5056 + $0x20] sm:$0x3]
        %v5244 = vld [vmem:[%s5056 + $0x28] sm:$0x3]
        %v5245 = vld [vmem:[%s5056 + $0x30] sm:$0xfc]
        %v5246 = vld [vmem:[%s5056 + $0x38] sm:$0xfc]
        %v5247 = vld [vmem:[%s5056 + $0x50] sm:$0x3]
        %v5248 = vld [vmem:[%s5056 + $0x58] sm:$0x3]
        %v5249 = vld [vmem:[%s5056 + $0x60] sm:$0xfc]
        %v5250 = vld [vmem:[%s5056 + $0x68] sm:$0xfc]
        %v5251 = vld [vmem:[%s5056 + $0x80] sm:$0x3]
        %v5252 = vld [vmem:[%s5056 + $0x88] sm:$0x3]
        %v5253 = vld [vmem:[%s5056 + $0x90] sm:$0xfc]
        %v5254 = vld [vmem:[%s5056 + $0x98] sm:$0xfc]
        %v5255 = vld [vmem:[%s5056 + $0xb0] sm:$0x3]
        %v5256 = vld [vmem:[%s5056 + $0xb8] sm:$0x3]
        %v5257 = vmul.f32 %v5241, %v2206
        %v5258 = vmul.f32 %v5242, %v2210
        %v5259 = vmul.f32 %v5059, %v2206
        %v5260 = vmul.f32 %v5060, %v2210
        %v5261 = vmul.f32 %v5243, %v2206
        %v5262 = vmul.f32 %v5244, %v2210
        %v5263 = vmul.f32 %v5245, %v2206
        %v5264 = vmul.f32 %v5246, %v2210
        %v5265 = vmul.f32 %v5063, %v2206
        %v5266 = vmul.f32 %v5064, %v2210
        %v5267 = vmul.f32 %v5247, %v2206
        %v5268 = vmul.f32 %v5248, %v2210
        %v5269 = vmul.f32 %v5249, %v2206
        %v5270 = vmul.f32 %v5250, %v2210
        %v5271 = vmul.f32 %v5067, %v2206
        %v5272 = vmul.f32 %v5068, %v2210
        %v5273 = vmul.f32 %v5251, %v2206
        %v5274 = vmul.f32 %v5252, %v2210
        %v5275 = vmul.f32 %v5253, %v2206
        %v5276 = vmul.f32 %v5254, %v2210
        %v5277 = vmul.f32 %v5071, %v2206
        %v5278 = vmul.f32 %v5072, %v2210
        %v5279 = vmul.f32 %v5255, %v2206
        %v5280 = vmul.f32 %v5256, %v2210
        %v5305 = vrot.slane %v5257, 2
        %v5306 = vrot.slane %v5259, 2
        %v5307 = vsel %vm1569, %v5305, %v5306
        %v5308 = vrot.slane %v5258, 2
        %v5309 = vrot.slane %v5260, 2
        %v5310 = vsel %vm1569, %v5308, %v5309
        %v5311 = vrot.slane %v5261, 2
        %v5312 = vsel %vm1569, %v5306, %v5311
        %v5313 = vrot.slane %v5262, 2
        %v5314 = vsel %vm1569, %v5309, %v5313
        %v5315 = vrot.slane %v5263, 2
        %v5316 = vrot.slane %v5265, 2
        %v5317 = vsel %vm1569, %v5315, %v5316
        %v5318 = vrot.slane %v5264, 2
        %v5319 = vrot.slane %v5266, 2
        %v5320 = vsel %vm1569, %v5318, %v5319
        %v5321 = vrot.slane %v5267, 2
        %v5322 = vsel %vm1569, %v5316, %v5321
        %v5323 = vrot.slane %v5268, 2
        %v5324 = vsel %vm1569, %v5319, %v5323
        %v5325 = vrot.slane %v5269, 2
        %v5326 = vrot.slane %v5271, 2
        %v5327 = vsel %vm1569, %v5325, %v5326
        %v5328 = vrot.slane %v5270, 2
        %v5329 = vrot.slane %v5272, 2
        %v5330 = vsel %vm1569, %v5328, %v5329
        %v5331 = vrot.slane %v5273, 2
        %v5332 = vsel %vm1569, %v5326, %v5331
        %v5333 = vrot.slane %v5274, 2
        %v5334 = vsel %vm1569, %v5329, %v5333
        %v5335 = vrot.slane %v5275, 2
        %v5336 = vrot.slane %v5277, 2
        %v5337 = vsel %vm1569, %v5335, %v5336
        %v5338 = vrot.slane %v5276, 2
        %v5339 = vrot.slane %v5278, 2
        %v5340 = vsel %vm1569, %v5338, %v5339
        %v5341 = vrot.slane %v5279, 2
        %v5342 = vsel %vm1569, %v5336, %v5341
        %v5343 = vrot.slane %v5280, 2
        %v5344 = vsel %vm1569, %v5339, %v5343
        %v5361 = vadd.f32 %v5225, %v5307
        %v5362 = vadd.f32 %v5226, %v5310
        %v5363 = vadd.f32 %v5227, %v5312
        %v5364 = vadd.f32 %v5228, %v5314
        %v5365 = vadd.f32 %v5229, %v5317
        %v5366 = vadd.f32 %v5230, %v5320
        %v5367 = vadd.f32 %v5231, %v5322
        %v5368 = vadd.f32 %v5232, %v5324
        %v5369 = vadd.f32 %v5233, %v5327
        %v5370 = vadd.f32 %v5234, %v5330
        %v5371 = vadd.f32 %v5235, %v5332
        %v5372 = vadd.f32 %v5236, %v5334
        %v5373 = vadd.f32 %v5237, %v5337
        %v5374 = vadd.f32 %v5238, %v5340
        %v5375 = vadd.f32 %v5239, %v5342
        %v5376 = vadd.f32 %v5240, %v5344
        %v5377 = vadd.f32 %v5361, %v2335
        %v5378 = vadd.f32 %v5362, %v2339
        %v5379 = vadd.f32 %v5363, %v2335
        %v5380 = vadd.f32 %v5364, %v2339
        %v5381 = vadd.f32 %v5365, %v2335
        %v5382 = vadd.f32 %v5366, %v2339
        %v5383 = vadd.f32 %v5367, %v2335
        %v5384 = vadd.f32 %v5368, %v2339
        %v5385 = vadd.f32 %v5369, %v2335
        %v5386 = vadd.f32 %v5370, %v2339
        %v5387 = vadd.f32 %v5371, %v2335
        %v5388 = vadd.f32 %v5372, %v2339
        %v5389 = vadd.f32 %v5373, %v2335
        %v5390 = vadd.f32 %v5374, %v2339
        %v5391 = vadd.f32 %v5375, %v2335
        %v5392 = vadd.f32 %v5376, %v2339
        %v5393 = vmax.f32 %v5377, 0.0
        %v5394 = vmax.f32 %v5378, 0.0
        %v5395 = vmax.f32 %v5379, 0.0
        %v5396 = vmax.f32 %v5380, 0.0
        %v5397 = vmax.f32 %v5381, 0.0
        %v5398 = vmax.f32 %v5382, 0.0
        %v5399 = vmax.f32 %v5383, 0.0
        %v5400 = vmax.f32 %v5384, 0.0
        %v5401 = vmax.f32 %v5385, 0.0
        %v5402 = vmax.f32 %v5386, 0.0
        %v5403 = vmax.f32 %v5387, 0.0
        %v5404 = vmax.f32 %v5388, 0.0
        %v5405 = vmax.f32 %v5389, 0.0
        %v5406 = vmax.f32 %v5390, 0.0
        %v5407 = vmax.f32 %v5391, 0.0
        %v5408 = vmax.f32 %v5392, 0.0
        %v5409 = vmin.f32 %v5393, 6.0
        %v5410 = vmin.f32 %v5394, 6.0
        %v5411 = vmin.f32 %v5395, 6.0
        %v5412 = vmin.f32 %v5396, 6.0
        %v5413 = vmin.f32 %v5397, 6.0
        %v5414 = vmin.f32 %v5398, 6.0
        %v5415 = vmin.f32 %v5399, 6.0
        %v5416 = vmin.f32 %v5400, 6.0
        %v5417 = vmin.f32 %v5401, 6.0
        %v5418 = vmin.f32 %v5402, 6.0
        %v5419 = vmin.f32 %v5403, 6.0
        %v5420 = vmin.f32 %v5404, 6.0
        %v5421 = vmin.f32 %v5405, 6.0
        %v5422 = vmin.f32 %v5406, 6.0
        %v5423 = vmin.f32 %v5407, 6.0
        %v5424 = vmin.f32 %v5408, 6.0
        %s5425 = scalar_lea.vmem [#allocation3], 384
        %5426 = vst [vmem:[%s5425] sm:$0xff] %v5409
        %5427 = vst.msk [vmem:[%s5425 + $0x8] sm:$0xff] %vm838, %v5410
        %5428 = vst [vmem:[%s5425 + $0x10] sm:$0xff] %v5411
        %5429 = vst.msk [vmem:[%s5425 + $0x18] sm:$0xff] %vm838, %v5412
        %5430 = vst [vmem:[%s5425 + $0x20] sm:$0xff] %v5413
        %5431 = vst.msk [vmem:[%s5425 + $0x28] sm:$0xff] %vm838, %v5414
        %5432 = vst [vmem:[%s5425 + $0x30] sm:$0xff] %v5415
        %5433 = vst.msk [vmem:[%s5425 + $0x38] sm:$0xff] %vm838, %v5416
        %5434 = vst [vmem:[%s5425 + $0x40] sm:$0xff] %v5417
        %5435 = vst.msk [vmem:[%s5425 + $0x48] sm:$0xff] %vm838, %v5418
        %5436 = vst [vmem:[%s5425 + $0x50] sm:$0xff] %v5419
        %5437 = vst.msk [vmem:[%s5425 + $0x58] sm:$0xff] %vm838, %v5420
        %5438 = vst [vmem:[%s5425 + $0x60] sm:$0xff] %v5421
        %5439 = vst.msk [vmem:[%s5425 + $0x68] sm:$0xff] %vm838, %v5422
        %5440 = vst [vmem:[%s5425 + $0x70] sm:$0xff] %v5423
        %5441 = vst.msk [vmem:[%s5425 + $0x78] sm:$0xff] %vm838, %v5424
        %v5442 = vld [vmem:[#allocation3] sm:$0xff]
        %v5443 = vld [vmem:[#allocation3 + $0x8] sm:$0xff]
        %v5444 = vld [vmem:[#allocation3 + $0x10] sm:$0xff]
        %v5445 = vld [vmem:[#allocation3 + $0x18] sm:$0xff]
        %v5446 = vld [vmem:[#allocation3 + $0x20] sm:$0xff]
        %v5447 = vld [vmem:[#allocation3 + $0x28] sm:$0xff]
        %v5448 = vld [vmem:[#allocation3 + $0x30] sm:$0xff]
        %v5449 = vld [vmem:[#allocation3 + $0x38] sm:$0xff]
        %v5450 = vld [vmem:[#allocation3 + $0x40] sm:$0xff]
        %v5451 = vld [vmem:[#allocation3 + $0x48] sm:$0xff]
        %v5452 = vld [vmem:[#allocation3 + $0x50] sm:$0xff]
        %v5453 = vld [vmem:[#allocation3 + $0x58] sm:$0xff]
        %v5454 = vld [vmem:[#allocation3 + $0x60] sm:$0xff]
        %v5455 = vld [vmem:[#allocation3 + $0x68] sm:$0xff]
        %v5456 = vld [vmem:[#allocation3 + $0x70] sm:$0xff]
        %v5457 = vld [vmem:[#allocation3 + $0x78] sm:$0xff]
        %v5458 = vld [vmem:[#allocation3 + $0x80] sm:$0xff]
        %v5459 = vld [vmem:[#allocation3 + $0x88] sm:$0xff]
        %v5460 = vld [vmem:[#allocation3 + $0x90] sm:$0xff]
        %v5461 = vld [vmem:[#allocation3 + $0x98] sm:$0xff]
        %v5462 = vld [vmem:[#allocation3 + $0xa0] sm:$0xff]
        %v5463 = vld [vmem:[#allocation3 + $0xa8] sm:$0xff]
        %v5464 = vld [vmem:[#allocation3 + $0xb0] sm:$0xff]
        %v5465 = vld [vmem:[#allocation3 + $0xb8] sm:$0xff]
        %v5466 = vld [vmem:[#allocation3 + $0xc0] sm:$0xff]
        %v5467 = vld [vmem:[#allocation3 + $0xc8] sm:$0xff]
        %v5468 = vld [vmem:[#allocation3 + $0xd0] sm:$0xff]
        %v5469 = vld [vmem:[#allocation3 + $0xd8] sm:$0xff]
        %v5470 = vld [vmem:[#allocation3 + $0xe0] sm:$0xff]
        %v5471 = vld [vmem:[#allocation3 + $0xe8] sm:$0xff]
        %v5472 = vld [vmem:[#allocation3 + $0xf0] sm:$0xff]
        %v5473 = vld [vmem:[#allocation3 + $0xf8] sm:$0xff]
        %v5474 = vld [vmem:[#allocation3 + $0x100] sm:$0xff]
        %v5475 = vld [vmem:[#allocation3 + $0x108] sm:$0xff]
        %v5476 = vld [vmem:[#allocation3 + $0x110] sm:$0xff]
        %v5477 = vld [vmem:[#allocation3 + $0x118] sm:$0xff]
        %v5478 = vld [vmem:[#allocation3 + $0x120] sm:$0xff]
        %v5479 = vld [vmem:[#allocation3 + $0x128] sm:$0xff]
        %v5480 = vld [vmem:[#allocation3 + $0x130] sm:$0xff]
        %v5481 = vld [vmem:[#allocation3 + $0x138] sm:$0xff]
        %v5482 = vld [vmem:[#allocation3 + $0x140] sm:$0xff]
        %v5483 = vld [vmem:[#allocation3 + $0x148] sm:$0xff]
        %v5484 = vld [vmem:[#allocation3 + $0x150] sm:$0xff]
        %v5485 = vld [vmem:[#allocation3 + $0x158] sm:$0xff]
        %v5486 = vld [vmem:[#allocation3 + $0x160] sm:$0xff]
        %v5487 = vld [vmem:[#allocation3 + $0x168] sm:$0xff]
        %v5488 = vld [vmem:[#allocation3 + $0x170] sm:$0xff]
        %v5489 = vld [vmem:[#allocation3 + $0x178] sm:$0xff]
        %v5490 = vld [vmem:[#allocation3 + $0x180] sm:$0xff]
        %v5491 = vld [vmem:[#allocation3 + $0x188] sm:$0xff]
        %v5492 = vld [vmem:[#allocation3 + $0x190] sm:$0xff]
        %v5493 = vld [vmem:[#allocation3 + $0x198] sm:$0xff]
        %v5494 = vld [vmem:[#allocation3 + $0x1a0] sm:$0xff]
        %v5495 = vld [vmem:[#allocation3 + $0x1a8] sm:$0xff]
        %v5496 = vld [vmem:[#allocation3 + $0x1b0] sm:$0xff]
        %v5497 = vld [vmem:[#allocation3 + $0x1b8] sm:$0xff]
        %v5498 = vld [vmem:[#allocation3 + $0x1c0] sm:$0xff]
        %v5499 = vld [vmem:[#allocation3 + $0x1c8] sm:$0xff]
        %v5500 = vld [vmem:[#allocation3 + $0x1d0] sm:$0xff]
        %v5501 = vld [vmem:[#allocation3 + $0x1d8] sm:$0xff]
        %v5502 = vld [vmem:[#allocation3 + $0x1e0] sm:$0xff]
        %v5503 = vld [vmem:[#allocation3 + $0x1e8] sm:$0xff]
        %v5504 = vld [vmem:[#allocation3 + $0x1f0] sm:$0xff]
        %v5505 = vld [vmem:[#allocation3 + $0x1f8] sm:$0xff]
        %v5506 = vpack.c.bf16 %v5444, %v5442
        %v5507 = vpack.c.bf16 %v5445, %v5443
        %v5508 = vpack.c.bf16 %v5448, %v5446
        %v5509 = vpack.c.bf16 %v5449, %v5447
        %v5510 = vpack.c.bf16 %v5452, %v5450
        %v5511 = vpack.c.bf16 %v5453, %v5451
        %v5512 = vpack.c.bf16 %v5456, %v5454
        %v5513 = vpack.c.bf16 %v5457, %v5455
        %v5514 = vpack.c.bf16 %v5460, %v5458
        %v5515 = vpack.c.bf16 %v5461, %v5459
        %v5516 = vpack.c.bf16 %v5464, %v5462
        %v5517 = vpack.c.bf16 %v5465, %v5463
        %v5518 = vpack.c.bf16 %v5468, %v5466
        %v5519 = vpack.c.bf16 %v5469, %v5467
        %v5520 = vpack.c.bf16 %v5472, %v5470
        %v5521 = vpack.c.bf16 %v5473, %v5471
        %v5522 = vpack.c.bf16 %v5476, %v5474
        %v5523 = vpack.c.bf16 %v5477, %v5475
        %v5524 = vpack.c.bf16 %v5480, %v5478
        %v5525 = vpack.c.bf16 %v5481, %v5479
        %v5526 = vpack.c.bf16 %v5484, %v5482
        %v5527 = vpack.c.bf16 %v5485, %v5483
        %v5528 = vpack.c.bf16 %v5488, %v5486
        %v5529 = vpack.c.bf16 %v5489, %v5487
        %v5530 = vpack.c.bf16 %v5492, %v5490
        %v5531 = vpack.c.bf16 %v5493, %v5491
        %v5532 = vpack.c.bf16 %v5496, %v5494
        %v5533 = vpack.c.bf16 %v5497, %v5495
        %v5534 = vpack.c.bf16 %v5500, %v5498
        %v5535 = vpack.c.bf16 %v5501, %v5499
        %v5536 = vpack.c.bf16 %v5504, %v5502
        %v5537 = vpack.c.bf16 %v5505, %v5503
        %v5538 = vld [vmem:[#allocation10] sm:$0xf]
        %v5539 = vld [vmem:[#allocation10 + $0x4] sm:$0xf]
        %v5540 = vld [vmem:[#allocation10 + $0x8] sm:$0xf]
        %v5541 = vld [vmem:[#allocation10 + $0xc] sm:$0xf]
        %v5542 = vld [vmem:[#allocation10 + $0x10] sm:$0xf]
        %v5543 = vld [vmem:[#allocation10 + $0x14] sm:$0xf]
        %v5544 = vld [vmem:[#allocation10 + $0x18] sm:$0xf]
        %v5545 = vld [vmem:[#allocation10 + $0x1c] sm:$0xf]
        %v5546 = vld [vmem:[#allocation10 + $0x20] sm:$0xf]
        %v5547 = vld [vmem:[#allocation10 + $0x24] sm:$0xf]
        %v5548 = vld [vmem:[#allocation10 + $0x28] sm:$0xf]
        %v5549 = vld [vmem:[#allocation10 + $0x2c] sm:$0xf]
        %v5550 = vld [vmem:[#allocation10 + $0x30] sm:$0xf]
        %v5551 = vld [vmem:[#allocation10 + $0x34] sm:$0xf]
        %v5552 = vld [vmem:[#allocation10 + $0x38] sm:$0xf]
        %v5553 = vld [vmem:[#allocation10 + $0x3c] sm:$0xf]
        %v5554 = vld [vmem:[#allocation10 + $0x40] sm:$0xf]
        %v5555 = vld [vmem:[#allocation10 + $0x44] sm:$0xf]
        %v5556 = vld [vmem:[#allocation10 + $0x48] sm:$0xf]
        %v5557 = vld [vmem:[#allocation10 + $0x4c] sm:$0xf]
        %v5558 = vld [vmem:[#allocation10 + $0x50] sm:$0xf]
        %v5559 = vld [vmem:[#allocation10 + $0x54] sm:$0xf]
        %v5560 = vld [vmem:[#allocation10 + $0x58] sm:$0xf]
        %v5561 = vld [vmem:[#allocation10 + $0x5c] sm:$0xf]
        %v5562 = vld [vmem:[%s6] sm:$0x1]
        %v5564 = vlaneseq
        %v5565 = vshrl.u32 %v5564, 7
        %v5566 = vsub.s32 0, %v5565
        %v5567 = vrot.slane %v5562, %v5566
        %v5593 = vunpack.c.l.b16 %v5538
        %v5594 = vunpack.c.l.b16 %v5539
        %v5595 = vunpack.c.l.b16 %v5540
        %v5596 = vunpack.c.l.b16 %v5541
        %v5597 = vunpack.c.l.b16 %v5542
        %v5598 = vunpack.c.l.b16 %v5543
        %v5599 = vunpack.c.l.b16 %v5544
        %v5600 = vunpack.c.l.b16 %v5545
        %v5601 = vunpack.c.l.b16 %v5546
        %v5602 = vunpack.c.l.b16 %v5547
        %v5603 = vunpack.c.l.b16 %v5548
        %v5604 = vunpack.c.l.b16 %v5549
        %v5605 = vunpack.c.l.b16 %v5550
        %v5606 = vunpack.c.l.b16 %v5551
        %v5607 = vunpack.c.l.b16 %v5552
        %v5608 = vunpack.c.l.b16 %v5553
        %v5609 = vunpack.c.l.b16 %v5554
        %v5610 = vunpack.c.l.b16 %v5555
        %v5611 = vunpack.c.l.b16 %v5556
        %v5612 = vunpack.c.l.b16 %v5557
        %v5613 = vunpack.c.l.b16 %v5558
        %v5614 = vunpack.c.l.b16 %v5559
        %v5615 = vunpack.c.l.b16 %v5560
        %v5616 = vunpack.c.l.b16 %v5561
        %v5617 = vpack.c.b16 %v5594, %v5593
        %v5618 = vpack.c.b16 %v5596, %v5595
        %v5619 = vpack.c.b16 %v5598, %v5597
        %v5620 = vpack.c.b16 %v5600, %v5599
        %v5621 = vpack.c.b16 %v5602, %v5601
        %v5622 = vpack.c.b16 %v5604, %v5603
        %v5623 = vpack.c.b16 %v5606, %v5605
        %v5624 = vpack.c.b16 %v5608, %v5607
        %v5625 = vpack.c.b16 %v5610, %v5609
        %v5626 = vpack.c.b16 %v5612, %v5611
        %v5627 = vpack.c.b16 %v5614, %v5613
        %v5628 = vpack.c.b16 %v5616, %v5615
        %v5642 = vsel %vm838, %v5507, 0
        %v5645 = vsel %vm838, %v5509, 0
        %v5648 = vsel %vm838, %v5511, 0
        %v5651 = vsel %vm838, %v5513, 0
        %v5654 = vsel %vm838, %v5515, 0
        %v5657 = vsel %vm838, %v5517, 0
        %v5660 = vsel %vm838, %v5519, 0
        %v5663 = vsel %vm838, %v5521, 0
        %v5666 = vsel %vm838, %v5523, 0
        %v5669 = vsel %vm838, %v5525, 0
        %v5672 = vsel %vm838, %v5527, 0
        %v5675 = vsel %vm838, %v5529, 0
        %v5678 = vsel %vm838, %v5531, 0
        %v5681 = vsel %vm838, %v5533, 0
        %v5684 = vsel %vm838, %v5535, 0
        %v5687 = vsel %vm838, %v5537, 0
        %5689 = vmatprep.subr.bf16.mxu0 0
        %5690 = vmatpush1.bf16.msra.mxu0 %v5624
        %5691 = vmatprep.subr.bf16.mxu0 0
        %5692 = vmatpush1.bf16.msra.mxu0 %v5623
        %5693 = vmatprep.subr.bf16.mxu0 0
        %5694 = vmatpush1.bf16.msra.mxu0 %v5622
        %5695 = vmatprep.subr.bf16.mxu0 0
        %5696 = vmatpush1.bf16.msra.mxu0 %v5621
        %5697 = vmatprep.subr.bf16.mxu0 0
        %5698 = vmatpush1.bf16.msra.mxu0 %v5620
        %5699 = vmatprep.subr.bf16.mxu0 0
        %5700 = vmatpush1.bf16.msra.mxu0 %v5619
        %5701 = vmatprep.subr.bf16.mxu0 0
        %5702 = vmatpush1.bf16.msra.mxu0 %v5618
        %5703 = vmatprep.subr.bf16.mxu0 0
        %5704 = vmatpush1.bf16.msra.mxu0 %v5617
        %5705 = vmatprep.subr.bf16.mxu0 0
        %5706 = vmatpush2.bf16.msra.mxu0 0
        %5707 = vmatprep.subr.bf16.mxu0 0
        %5708 = vmatpush2.bf16.msra.mxu0 0
        %5709 = vmatprep.subr.bf16.mxu0 0
        %5710 = vmatpush2.bf16.msra.mxu0 0
        %5711 = vmatprep.subr.bf16.mxu0 0
        %5712 = vmatpush2.bf16.msra.mxu0 0
        %5713 = vmatprep.subr.bf16.mxu0 0
        %5714 = vmatpush2.bf16.msra.mxu0 %v5628
        %5715 = vmatprep.subr.bf16.mxu0 0
        %5716 = vmatpush2.bf16.msra.mxu0 %v5627
        %5717 = vmatprep.subr.bf16.mxu0 0
        %5718 = vmatpush2.bf16.msra.mxu0 %v5626
        %5719 = vmatprep.subr.bf16.mxu0 0
        %5720 = vmatpush2.bf16.msra.mxu0 %v5625
        %5721 = vmatprep.mubr.bf16.mxu0 %v5642
        %5722 = vmatmul.mubr.bf16.gmra.mxu0 %v5506
        %v5723 = vpop.f32.mrf.mxu0
        %v5724 = vadd.f32 %v5567, %v5723
        %v5725 = vpop.f32.mrf.mxu0
        %v5726 = vpop.f32.mrf.mxu0
        %v5727 = vadd.f32 %v5567, %v5726
        %v5728 = vpop.f32.mrf.mxu0
        %5729 = vmatprep.mubr.bf16.mxu0 %v5645
        %5730 = vmatmul.mubr.bf16.gmra.mxu0 %v5508
        %v5731 = vpop.f32.mrf.mxu0
        %v5732 = vadd.f32 %v5567, %v5731
        %v5733 = vpop.f32.mrf.mxu0
        %v5734 = vpop.f32.mrf.mxu0
        %v5735 = vadd.f32 %v5567, %v5734
        %v5736 = vpop.f32.mrf.mxu0
        %5737 = vmatprep.mubr.bf16.mxu0 %v5648
        %5738 = vmatmul.mubr.bf16.gmra.mxu0 %v5510
        %v5739 = vpop.f32.mrf.mxu0
        %v5740 = vadd.f32 %v5567, %v5739
        %v5741 = vpop.f32.mrf.mxu0
        %v5742 = vpop.f32.mrf.mxu0
        %v5743 = vadd.f32 %v5567, %v5742
        %v5744 = vpop.f32.mrf.mxu0
        %5745 = vmatprep.mubr.bf16.mxu0 %v5651
        %5746 = vmatmul.mubr.bf16.gmra.mxu0 %v5512
        %v5747 = vpop.f32.mrf.mxu0
        %v5748 = vadd.f32 %v5567, %v5747
        %v5749 = vpop.f32.mrf.mxu0
        %v5750 = vpop.f32.mrf.mxu0
        %v5751 = vadd.f32 %v5567, %v5750
        %v5752 = vpop.f32.mrf.mxu0
        %5753 = vmatprep.mubr.bf16.mxu0 %v5654
        %5754 = vmatmul.mubr.bf16.gmra.mxu0 %v5514
        %v5755 = vpop.f32.mrf.mxu0
        %v5756 = vadd.f32 %v5567, %v5755
        %v5757 = vpop.f32.mrf.mxu0
        %v5758 = vpop.f32.mrf.mxu0
        %v5759 = vadd.f32 %v5567, %v5758
        %v5760 = vpop.f32.mrf.mxu0
        %5761 = vmatprep.mubr.bf16.mxu0 %v5657
        %5762 = vmatmul.mubr.bf16.gmra.mxu0 %v5516
        %v5763 = vpop.f32.mrf.mxu0
        %v5764 = vadd.f32 %v5567, %v5763
        %v5765 = vpop.f32.mrf.mxu0
        %v5766 = vpop.f32.mrf.mxu0
        %v5767 = vadd.f32 %v5567, %v5766
        %v5768 = vpop.f32.mrf.mxu0
        %5769 = vmatprep.mubr.bf16.mxu0 %v5660
        %5770 = vmatmul.mubr.bf16.gmra.mxu0 %v5518
        %v5771 = vpop.f32.mrf.mxu0
        %v5772 = vadd.f32 %v5567, %v5771
        %v5773 = vpop.f32.mrf.mxu0
        %v5774 = vpop.f32.mrf.mxu0
        %v5775 = vadd.f32 %v5567, %v5774
        %v5776 = vpop.f32.mrf.mxu0
        %5777 = vmatprep.mubr.bf16.mxu0 %v5663
        %5778 = vmatmul.mubr.bf16.gmra.mxu0 %v5520
        %v5779 = vpop.f32.mrf.mxu0
        %v5780 = vadd.f32 %v5567, %v5779
        %v5781 = vpop.f32.mrf.mxu0
        %v5782 = vpop.f32.mrf.mxu0
        %v5783 = vadd.f32 %v5567, %v5782
        %v5784 = vpop.f32.mrf.mxu0
        %5785 = vmatprep.mubr.bf16.mxu0 %v5666
        %5786 = vmatmul.mubr.bf16.gmra.mxu0 %v5522
        %v5787 = vpop.f32.mrf.mxu0
        %v5788 = vadd.f32 %v5567, %v5787
        %v5789 = vpop.f32.mrf.mxu0
        %v5790 = vpop.f32.mrf.mxu0
        %v5791 = vadd.f32 %v5567, %v5790
        %v5792 = vpop.f32.mrf.mxu0
        %5793 = vmatprep.mubr.bf16.mxu0 %v5669
        %5794 = vmatmul.mubr.bf16.gmra.mxu0 %v5524
        %v5795 = vpop.f32.mrf.mxu0
        %v5796 = vadd.f32 %v5567, %v5795
        %v5797 = vpop.f32.mrf.mxu0
        %v5798 = vpop.f32.mrf.mxu0
        %v5799 = vadd.f32 %v5567, %v5798
        %v5800 = vpop.f32.mrf.mxu0
        %5801 = vmatprep.mubr.bf16.mxu0 %v5672
        %5802 = vmatmul.mubr.bf16.gmra.mxu0 %v5526
        %v5803 = vpop.f32.mrf.mxu0
        %v5804 = vadd.f32 %v5567, %v5803
        %v5805 = vpop.f32.mrf.mxu0
        %v5806 = vpop.f32.mrf.mxu0
        %v5807 = vadd.f32 %v5567, %v5806
        %v5808 = vpop.f32.mrf.mxu0
        %5809 = vmatprep.mubr.bf16.mxu0 %v5675
        %5810 = vmatmul.mubr.bf16.gmra.mxu0 %v5528
        %v5811 = vpop.f32.mrf.mxu0
        %v5812 = vadd.f32 %v5567, %v5811
        %v5813 = vpop.f32.mrf.mxu0
        %v5814 = vpop.f32.mrf.mxu0
        %v5815 = vadd.f32 %v5567, %v5814
        %v5816 = vpop.f32.mrf.mxu0
        %5817 = vmatprep.mubr.bf16.mxu0 %v5678
        %5818 = vmatmul.mubr.bf16.gmra.mxu0 %v5530
        %v5819 = vpop.f32.mrf.mxu0
        %v5820 = vadd.f32 %v5567, %v5819
        %v5821 = vpop.f32.mrf.mxu0
        %v5822 = vpop.f32.mrf.mxu0
        %v5823 = vadd.f32 %v5567, %v5822
        %v5824 = vpop.f32.mrf.mxu0
        %5825 = vmatprep.mubr.bf16.mxu0 %v5681
        %5826 = vmatmul.mubr.bf16.gmra.mxu0 %v5532
        %v5827 = vpop.f32.mrf.mxu0
        %v5828 = vadd.f32 %v5567, %v5827
        %v5829 = vpop.f32.mrf.mxu0
        %v5830 = vpop.f32.mrf.mxu0
        %v5831 = vadd.f32 %v5567, %v5830
        %v5832 = vpop.f32.mrf.mxu0
        %5833 = vmatprep.mubr.bf16.mxu0 %v5684
        %5834 = vmatmul.mubr.bf16.gmra.mxu0 %v5534
        %v5835 = vpop.f32.mrf.mxu0
        %v5836 = vadd.f32 %v5567, %v5835
        %v5837 = vpop.f32.mrf.mxu0
        %v5838 = vpop.f32.mrf.mxu0
        %v5839 = vadd.f32 %v5567, %v5838
        %v5840 = vpop.f32.mrf.mxu0
        %5841 = vmatprep.mubr.bf16.mxu0 %v5687
        %5842 = vmatmul.mubr.bf16.gmra.mxu0 %v5536
        %v5843 = vpop.f32.mrf.mxu0
        %v5844 = vadd.f32 %v5567, %v5843
        %v5845 = vpop.f32.mrf.mxu0
        %v5846 = vpop.f32.mrf.mxu0
        %v5847 = vadd.f32 %v5567, %v5846
        %v5848 = vpop.f32.mrf.mxu0
        %5849 = vdwg.mxu0
        %v5850 = vld [vmem:[#allocation12] sm:$0xff]
        %v5851 = vld [vmem:[#allocation12 + $0x8] sm:$0xff]
        %v5852 = vld [vmem:[#allocation12 + $0x10] sm:$0xff]
        %v5853 = vld [vmem:[#allocation12 + $0x18] sm:$0xff]
        %v5855 = vsel %vm467, %v383, 0
        %v5858 = vsel %vm467, %v384, 0
        %v5861 = vsel %vm467, %v385, 0
        %v5864 = vsel %vm467, %v386, 0
        %v5867 = vsel %vm467, %v387, 0
        %v5870 = vsel %vm467, %v388, 0
        %v5873 = vsel %vm467, %v389, 0
        %v5876 = vsel %vm467, %v390, 0
        %v5879 = vsel %vm467, %v391, 0
        %v5882 = vsel %vm467, %v392, 0
        %v5885 = vsel %vm467, %v393, 0
        %v5888 = vsel %vm467, %v394, 0
        %v5891 = vsel %vm467, %v395, 0
        %v5894 = vsel %vm467, %v396, 0
        %v5897 = vsel %vm467, %v397, 0
        %v5900 = vsel %vm467, %v398, 0
        %v5903 = vsel %vm467, %v399, 0
        %v5906 = vsel %vm467, %v400, 0
        %v5909 = vsel %vm467, %v401, 0
        %v5912 = vsel %vm467, %v402, 0
        %v5915 = vsel %vm467, %v403, 0
        %v5918 = vsel %vm467, %v404, 0
        %v5921 = vsel %vm467, %v405, 0
        %v5924 = vsel %vm467, %v406, 0
        %v5927 = vsel %vm467, %v407, 0
        %v5930 = vsel %vm467, %v408, 0
        %v5933 = vsel %vm467, %v409, 0
        %v5936 = vsel %vm467, %v410, 0
        %v5939 = vsel %vm467, %v411, 0
        %v5942 = vsel %vm467, %v412, 0
        %v5945 = vsel %vm467, %v413, 0
        %v5948 = vsel %vm467, %v414, 0
        %5950 = vmatprep.subr.mxu0 0.0
        %5951 = vmatpush1.msra.mxu0 0.0
        %5952 = vmatprep.subr.mxu0 0.0
        %5953 = vmatpush1.msra.mxu0 0.0
        %5954 = vmatprep.subr.mxu0 0.0
        %5955 = vmatpush1.msra.mxu0 0.0
        %5956 = vmatprep.subr.mxu0 0.0
        %5957 = vmatpush1.msra.mxu0 0.0
        %5958 = vmatprep.subr.mxu0 0.0
        %5959 = vmatpush1.msra.mxu0 0.0
        %5960 = vmatprep.subr.mxu0 0.0
        %5961 = vmatpush1.msra.mxu0 0.0
        %5962 = vmatprep.subr.mxu0 0.0
        %5963 = vmatpush1.msra.mxu0 0.0
        %5964 = vmatprep.subr.mxu0 0.0
        %5965 = vmatpush1.msra.mxu0 0.0
        %5966 = vmatprep.subr.mxu0 0.0
        %5967 = vmatpush1.msra.mxu0 0.0
        %5968 = vmatprep.subr.mxu0 0.0
        %5969 = vmatpush1.msra.mxu0 0.0
        %5970 = vmatprep.subr.mxu0 0.0
        %5971 = vmatpush1.msra.mxu0 0.0
        %5972 = vmatprep.subr.mxu0 0.0
        %5973 = vmatpush1.msra.mxu0 0.0
        %5974 = vmatprep.subr.mxu0 0.0
        %5975 = vmatpush1.msra.mxu0 %v5853
        %5976 = vmatprep.subr.mxu0 0.0
        %5977 = vmatpush1.msra.mxu0 %v5852
        %5978 = vmatprep.subr.mxu0 0.0
        %5979 = vmatpush1.msra.mxu0 %v5851
        %5980 = vmatprep.subr.mxu0 0.0
        %5981 = vmatpush1.msra.mxu0 %v5850
        %5982 = vmatprep.subr.mxu0 0.0
        %5983 = vmatpush2.msra.mxu0 0.0
        %5984 = vmatprep.subr.mxu0 0.0
        %5985 = vmatpush2.msra.mxu0 0.0
        %5986 = vmatprep.subr.mxu0 0.0
        %5987 = vmatpush2.msra.mxu0 0.0
        %5988 = vmatprep.subr.mxu0 0.0
        %5989 = vmatpush2.msra.mxu0 0.0
        %5990 = vmatprep.subr.mxu0 0.0
        %5991 = vmatpush2.msra.mxu0 0.0
        %5992 = vmatprep.subr.mxu0 0.0
        %5993 = vmatpush2.msra.mxu0 0.0
        %5994 = vmatprep.subr.mxu0 0.0
        %5995 = vmatpush2.msra.mxu0 0.0
        %5996 = vmatprep.subr.mxu0 0.0
        %5997 = vmatpush2.msra.mxu0 0.0
        %5998 = vmatprep.subr.mxu0 0.0
        %5999 = vmatpush2.msra.mxu0 0.0
        %6000 = vmatprep.subr.mxu0 0.0
        %6001 = vmatpush2.msra.mxu0 0.0
        %6002 = vmatprep.subr.mxu0 0.0
        %6003 = vmatpush2.msra.mxu0 0.0
        %6004 = vmatprep.subr.mxu0 0.0
        %6005 = vmatpush2.msra.mxu0 0.0
        %6006 = vmatprep.subr.mxu0 0.0
        %6007 = vmatpush2.msra.mxu0 0.0
        %6008 = vmatprep.subr.mxu0 0.0
        %6009 = vmatpush2.msra.mxu0 0.0
        %6010 = vmatprep.subr.mxu0 0.0
        %6011 = vmatpush2.msra.mxu0 0.0
        %6012 = vmatprep.subr.mxu0 0.0
        %6013 = vmatpush2.msra.mxu0 0.0
        %6014 = vmatprep.mubr.f32.mxu0 0.0
        %6015 = vmatmul.mubr.f32.gmra.mxu0 %v5855
        %v6016 = vpop.f32.mrf.mxu0
        %v6017 = vadd.f32 0.0, %v6016
        %v6018 = vpop.f32.mrf.mxu0
        %6019 = vmatprep.mubr.f32.mxu0 0.0
        %6020 = vmatmul.mubr.f32.gmra.mxu0 %v5858
        %v6021 = vpop.f32.mrf.mxu0
        %v6022 = vadd.f32 0.0, %v6021
        %v6023 = vpop.f32.mrf.mxu0
        %6024 = vmatprep.mubr.f32.mxu0 0.0
        %6025 = vmatmul.mubr.f32.gmra.mxu0 %v5861
        %v6026 = vpop.f32.mrf.mxu0
        %v6027 = vadd.f32 0.0, %v6026
        %v6028 = vpop.f32.mrf.mxu0
        %6029 = vmatprep.mubr.f32.mxu0 0.0
        %6030 = vmatmul.mubr.f32.gmra.mxu0 %v5864
        %v6031 = vpop.f32.mrf.mxu0
        %v6032 = vadd.f32 0.0, %v6031
        %v6033 = vpop.f32.mrf.mxu0
        %6034 = vmatprep.mubr.f32.mxu0 0.0
        %6035 = vmatmul.mubr.f32.gmra.mxu0 %v5867
        %v6036 = vpop.f32.mrf.mxu0
        %v6037 = vadd.f32 0.0, %v6036
        %v6038 = vpop.f32.mrf.mxu0
        %6039 = vmatprep.mubr.f32.mxu0 0.0
        %6040 = vmatmul.mubr.f32.gmra.mxu0 %v5870
        %v6041 = vpop.f32.mrf.mxu0
        %v6042 = vadd.f32 0.0, %v6041
        %v6043 = vpop.f32.mrf.mxu0
        %6044 = vmatprep.mubr.f32.mxu0 0.0
        %6045 = vmatmul.mubr.f32.gmra.mxu0 %v5873
        %v6046 = vpop.f32.mrf.mxu0
        %v6047 = vadd.f32 0.0, %v6046
        %v6048 = vpop.f32.mrf.mxu0
        %6049 = vmatprep.mubr.f32.mxu0 0.0
        %6050 = vmatmul.mubr.f32.gmra.mxu0 %v5876
        %v6051 = vpop.f32.mrf.mxu0
        %v6052 = vadd.f32 0.0, %v6051
        %v6053 = vpop.f32.mrf.mxu0
        %6054 = vmatprep.mubr.f32.mxu0 0.0
        %6055 = vmatmul.mubr.f32.gmra.mxu0 %v5879
        %v6056 = vpop.f32.mrf.mxu0
        %v6057 = vadd.f32 0.0, %v6056
        %v6058 = vpop.f32.mrf.mxu0
        %6059 = vmatprep.mubr.f32.mxu0 0.0
        %6060 = vmatmul.mubr.f32.gmra.mxu0 %v5882
        %v6061 = vpop.f32.mrf.mxu0
        %v6062 = vadd.f32 0.0, %v6061
        %v6063 = vpop.f32.mrf.mxu0
        %6064 = vmatprep.mubr.f32.mxu0 0.0
        %6065 = vmatmul.mubr.f32.gmra.mxu0 %v5885
        %v6066 = vpop.f32.mrf.mxu0
        %v6067 = vadd.f32 0.0, %v6066
        %v6068 = vpop.f32.mrf.mxu0
        %6069 = vmatprep.mubr.f32.mxu0 0.0
        %6070 = vmatmul.mubr.f32.gmra.mxu0 %v5888
        %v6071 = vpop.f32.mrf.mxu0
        %v6072 = vadd.f32 0.0, %v6071
        %v6073 = vpop.f32.mrf.mxu0
        %6074 = vmatprep.mubr.f32.mxu0 0.0
        %6075 = vmatmul.mubr.f32.gmra.mxu0 %v5891
        %v6076 = vpop.f32.mrf.mxu0
        %v6077 = vadd.f32 0.0, %v6076
        %v6078 = vpop.f32.mrf.mxu0
        %6079 = vmatprep.mubr.f32.mxu0 0.0
        %6080 = vmatmul.mubr.f32.gmra.mxu0 %v5894
        %v6081 = vpop.f32.mrf.mxu0
        %v6082 = vadd.f32 0.0, %v6081
        %v6083 = vpop.f32.mrf.mxu0
        %6084 = vmatprep.mubr.f32.mxu0 0.0
        %6085 = vmatmul.mubr.f32.gmra.mxu0 %v5897
        %v6086 = vpop.f32.mrf.mxu0
        %v6087 = vadd.f32 0.0, %v6086
        %v6088 = vpop.f32.mrf.mxu0
        %6089 = vmatprep.mubr.f32.mxu0 0.0
        %6090 = vmatmul.mubr.f32.gmra.mxu0 %v5900
        %v6091 = vpop.f32.mrf.mxu0
        %v6092 = vadd.f32 0.0, %v6091
        %v6093 = vpop.f32.mrf.mxu0
        %6094 = vmatprep.mubr.f32.mxu0 0.0
        %6095 = vmatmul.mubr.f32.gmra.mxu0 %v5903
        %v6096 = vpop.f32.mrf.mxu0
        %v6097 = vadd.f32 0.0, %v6096
        %v6098 = vpop.f32.mrf.mxu0
        %6099 = vmatprep.mubr.f32.mxu0 0.0
        %6100 = vmatmul.mubr.f32.gmra.mxu0 %v5906
        %v6101 = vpop.f32.mrf.mxu0
        %v6102 = vadd.f32 0.0, %v6101
        %v6103 = vpop.f32.mrf.mxu0
        %6104 = vmatprep.mubr.f32.mxu0 0.0
        %6105 = vmatmul.mubr.f32.gmra.mxu0 %v5909
        %v6106 = vpop.f32.mrf.mxu0
        %v6107 = vadd.f32 0.0, %v6106
        %v6108 = vpop.f32.mrf.mxu0
        %6109 = vmatprep.mubr.f32.mxu0 0.0
        %6110 = vmatmul.mubr.f32.gmra.mxu0 %v5912
        %v6111 = vpop.f32.mrf.mxu0
        %v6112 = vadd.f32 0.0, %v6111
        %v6113 = vpop.f32.mrf.mxu0
        %6114 = vmatprep.mubr.f32.mxu0 0.0
        %6115 = vmatmul.mubr.f32.gmra.mxu0 %v5915
        %v6116 = vpop.f32.mrf.mxu0
        %v6117 = vadd.f32 0.0, %v6116
        %v6118 = vpop.f32.mrf.mxu0
        %6119 = vmatprep.mubr.f32.mxu0 0.0
        %6120 = vmatmul.mubr.f32.gmra.mxu0 %v5918
        %v6121 = vpop.f32.mrf.mxu0
        %v6122 = vadd.f32 0.0, %v6121
        %v6123 = vpop.f32.mrf.mxu0
        %6124 = vmatprep.mubr.f32.mxu0 0.0
        %6125 = vmatmul.mubr.f32.gmra.mxu0 %v5921
        %v6126 = vpop.f32.mrf.mxu0
        %v6127 = vadd.f32 0.0, %v6126
        %v6128 = vpop.f32.mrf.mxu0
        %6129 = vmatprep.mubr.f32.mxu0 0.0
        %6130 = vmatmul.mubr.f32.gmra.mxu0 %v5924
        %v6131 = vpop.f32.mrf.mxu0
        %v6132 = vadd.f32 0.0, %v6131
        %v6133 = vpop.f32.mrf.mxu0
        %6134 = vmatprep.mubr.f32.mxu0 0.0
        %6135 = vmatmul.mubr.f32.gmra.mxu0 %v5927
        %v6136 = vpop.f32.mrf.mxu0
        %v6137 = vadd.f32 0.0, %v6136
        %v6138 = vpop.f32.mrf.mxu0
        %6139 = vmatprep.mubr.f32.mxu0 0.0
        %6140 = vmatmul.mubr.f32.gmra.mxu0 %v5930
        %v6141 = vpop.f32.mrf.mxu0
        %v6142 = vadd.f32 0.0, %v6141
        %v6143 = vpop.f32.mrf.mxu0
        %6144 = vmatprep.mubr.f32.mxu0 0.0
        %6145 = vmatmul.mubr.f32.gmra.mxu0 %v5933
        %v6146 = vpop.f32.mrf.mxu0
        %v6147 = vadd.f32 0.0, %v6146
        %v6148 = vpop.f32.mrf.mxu0
        %6149 = vmatprep.mubr.f32.mxu0 0.0
        %6150 = vmatmul.mubr.f32.gmra.mxu0 %v5936
        %v6151 = vpop.f32.mrf.mxu0
        %v6152 = vadd.f32 0.0, %v6151
        %v6153 = vpop.f32.mrf.mxu0
        %6154 = vmatprep.mubr.f32.mxu0 0.0
        %6155 = vmatmul.mubr.f32.gmra.mxu0 %v5939
        %v6156 = vpop.f32.mrf.mxu0
        %v6157 = vadd.f32 0.0, %v6156
        %v6158 = vpop.f32.mrf.mxu0
        %6159 = vmatprep.mubr.f32.mxu0 0.0
        %6160 = vmatmul.mubr.f32.gmra.mxu0 %v5942
        %v6161 = vpop.f32.mrf.mxu0
        %v6162 = vadd.f32 0.0, %v6161
        %v6163 = vpop.f32.mrf.mxu0
        %6164 = vmatprep.mubr.f32.mxu0 0.0
        %6165 = vmatmul.mubr.f32.gmra.mxu0 %v5945
        %v6166 = vpop.f32.mrf.mxu0
        %v6167 = vadd.f32 0.0, %v6166
        %v6168 = vpop.f32.mrf.mxu0
        %6169 = vmatprep.mubr.f32.mxu0 0.0
        %6170 = vmatmul.mubr.f32.gmra.mxu0 %v5948
        %v6171 = vpop.f32.mrf.mxu0
        %v6172 = vadd.f32 0.0, %v6171
        %v6173 = vpop.f32.mrf.mxu0
        %6174 = vdwg.mxu0
        %v6175 = vadd.f32 %v5724, %v6017
        %v6176 = vadd.f32 %v5727, %v6022
        %v6177 = vadd.f32 %v5732, %v6027
        %v6178 = vadd.f32 %v5735, %v6032
        %v6179 = vadd.f32 %v5740, %v6037
        %v6180 = vadd.f32 %v5743, %v6042
        %v6181 = vadd.f32 %v5748, %v6047
        %v6182 = vadd.f32 %v5751, %v6052
        %v6183 = vadd.f32 %v5756, %v6057
        %v6184 = vadd.f32 %v5759, %v6062
        %v6185 = vadd.f32 %v5764, %v6067
        %v6186 = vadd.f32 %v5767, %v6072
        %v6187 = vadd.f32 %v5772, %v6077
        %v6188 = vadd.f32 %v5775, %v6082
        %v6189 = vadd.f32 %v5780, %v6087
        %v6190 = vadd.f32 %v5783, %v6092
        %v6191 = vadd.f32 %v5788, %v6097
        %v6192 = vadd.f32 %v5791, %v6102
        %v6193 = vadd.f32 %v5796, %v6107
        %v6194 = vadd.f32 %v5799, %v6112
        %v6195 = vadd.f32 %v5804, %v6117
        %v6196 = vadd.f32 %v5807, %v6122
        %v6197 = vadd.f32 %v5812, %v6127
        %v6198 = vadd.f32 %v5815, %v6132
        %v6199 = vadd.f32 %v5820, %v6137
        %v6200 = vadd.f32 %v5823, %v6142
        %v6201 = vadd.f32 %v5828, %v6147
        %v6202 = vadd.f32 %v5831, %v6152
        %v6203 = vadd.f32 %v5836, %v6157
        %v6204 = vadd.f32 %v5839, %v6162
        %v6205 = vadd.f32 %v5844, %v6167
        %v6206 = vadd.f32 %v5847, %v6172
        %6207 = vst.msk [vmem:[%s381] sm:$0xff] %vm838, %v6175
        %6208 = vst.msk [vmem:[%s381 + $0x8] sm:$0xff] %vm838, %v6176
        %6209 = vst.msk [vmem:[%s381 + $0x10] sm:$0xff] %vm838, %v6177
        %6210 = vst.msk [vmem:[%s381 + $0x18] sm:$0xff] %vm838, %v6178
        %6211 = vst.msk [vmem:[%s381 + $0x20] sm:$0xff] %vm838, %v6179
        %6212 = vst.msk [vmem:[%s381 + $0x28] sm:$0xff] %vm838, %v6180
        %6213 = vst.msk [vmem:[%s381 + $0x30] sm:$0xff] %vm838, %v6181
        %6214 = vst.msk [vmem:[%s381 + $0x38] sm:$0xff] %vm838, %v6182
        %6215 = vst.msk [vmem:[%s381 + $0x40] sm:$0xff] %vm838, %v6183
        %6216 = vst.msk [vmem:[%s381 + $0x48] sm:$0xff] %vm838, %v6184
        %6217 = vst.msk [vmem:[%s381 + $0x50] sm:$0xff] %vm838, %v6185
        %6218 = vst.msk [vmem:[%s381 + $0x58] sm:$0xff] %vm838, %v6186
        %6219 = vst.msk [vmem:[%s381 + $0x60] sm:$0xff] %vm838, %v6187
        %6220 = vst.msk [vmem:[%s381 + $0x68] sm:$0xff] %vm838, %v6188
        %6221 = vst.msk [vmem:[%s381 + $0x70] sm:$0xff] %vm838, %v6189
        %6222 = vst.msk [vmem:[%s381 + $0x78] sm:$0xff] %vm838, %v6190
        %6223 = vst.msk [vmem:[%s381 + $0x80] sm:$0xff] %vm838, %v6191
        %6224 = vst.msk [vmem:[%s381 + $0x88] sm:$0xff] %vm838, %v6192
        %6225 = vst.msk [vmem:[%s381 + $0x90] sm:$0xff] %vm838, %v6193
        %6226 = vst.msk [vmem:[%s381 + $0x98] sm:$0xff] %vm838, %v6194
        %6227 = vst.msk [vmem:[%s381 + $0xa0] sm:$0xff] %vm838, %v6195
        %6228 = vst.msk [vmem:[%s381 + $0xa8] sm:$0xff] %vm838, %v6196
        %6229 = vst.msk [vmem:[%s381 + $0xb0] sm:$0xff] %vm838, %v6197
        %6230 = vst.msk [vmem:[%s381 + $0xb8] sm:$0xff] %vm838, %v6198
        %6231 = vst.msk [vmem:[%s381 + $0xc0] sm:$0xff] %vm838, %v6199
        %6232 = vst.msk [vmem:[%s381 + $0xc8] sm:$0xff] %vm838, %v6200
        %6233 = vst.msk [vmem:[%s381 + $0xd0] sm:$0xff] %vm838, %v6201
        %6234 = vst.msk [vmem:[%s381 + $0xd8] sm:$0xff] %vm838, %v6202
        %6235 = vst.msk [vmem:[%s381 + $0xe0] sm:$0xff] %vm838, %v6203
        %6236 = vst.msk [vmem:[%s381 + $0xe8] sm:$0xff] %vm838, %v6204
        %6237 = vst.msk [vmem:[%s381 + $0xf0] sm:$0xff] %vm838, %v6205
        %6238 = vst.msk [vmem:[%s381 + $0xf8] sm:$0xff] %vm838, %v6206
        %s6239 = sand.u32 %s208, 1
        %s6240 = scalar_lea.sflag [#allocation6], %s6239
        %s6241 = sand.u32 %s208, 1
        %s6242 = smul.addr %s6241, 256
        %s6243 = scalar_lea.vmem [#allocation13], %s6242
        // Predicated region
        $region73: #{_lambda_.1} parent=51 // pred_check
          %p6244 = pneg %p218
        $region74: #{_lambda_.1} parent=51 // pred_check_branch
          %6246 = sbr.rel (%p6244) target = $region76
        $region75: #{_lambda_.1} parent=51 // pred_region
          %s6248 = ssub.s32 4096, 4096
          %6249 = vsyncadd %s6240, %s6248
          %s6250 = smul.addr %s27, 32
          %s6251 = smul.addr %s6250, 128
          %s6252 = scalar_lea.hbm %s8, %s6251
          %s6253 = sshll.u32 %s6243, 4
          %s6254 = int_to_ptr.vmem [resolvable:$true] %s6253
          %6259 = dma.vmem_to_hbm [thread:$0]  %s6254, 4096, %s6252, %s6240, 128, 128, 8
        $region76: #{_lambda_.1} parent=51 // pred_fallthru
          _
      $region52: #{_lambda_.1} parent=5 // pred_fallthru
        _
      %p6260 = scmp.le.s32.totalorder 2, %s22
      // Predicated region
      $region77: #{_lambda_.1} parent=5 // pred_check
        %p6261 = pneg %p6260
      $region78: #{_lambda_.1} parent=5 // pred_check_branch
        %6263 = sbr.rel (%p6261) target = $region80
      $region79: #{_lambda_.1} parent=5 // pred_region
        %s6264 = ssub.s32 %s22, 2
        // Predicated region
        $region81: #{_lambda_.1} parent=79 // pred_check
          %p6265 = pneg %p224
        $region82: #{_lambda_.1} parent=79 // pred_check_branch
          %6267 = sbr.rel (%p6265) target = $region84
        $region83: #{_lambda_.1} parent=79 // pred_region
          %s6268 = sand.u32 %s209, 1
          %s6269 = scalar_lea.sflag [#allocation6], %s6268
          %s6270 = sand.u32 %s209, 1
          %s6271 = smul.addr %s6270, 256
          %s6272 = scalar_lea.vmem [#allocation13], %s6271
          %6273 = dma.done %s6269, 4096
        $region84: #{_lambda_.1} parent=79 // pred_fallthru
          _
      $region80: #{_lambda_.1} parent=5 // pred_fallthru
        _
    $region6: #{_lambda_.1} parent=1 // loop_footer
      %s26 = sadd.s32 1, %s22
    $region7: #{_lambda_.1} parent=1 // loop_footer_branch
      %21 = sbr.rel target = $region3
    $region8: #{_lambda_.1} parent=1 // loop_exit
      _
    %6274 = vsyncpa [#allocation5], 1
    %s6275 = scalar_lea.sflag [#allocation5], 1
    %6276 = vsyncpa %s6275, 1
    %6277 = vsyncpa [#allocation8], 1
    %6278 = vsyncpa [#allocation11], 1
    %6279 = vsyncpa [#allocation6], 1
    %s6280 = scalar_lea.sflag [#allocation6], 1
    %6281 = vsyncpa %s6280, 1

</llo_original>
